<compile_context>
chip_gen: v7x
topology: tpu7x:2x2x1
jax: 0.10.0
libtpu: 0.0.40
codegen_flags: <defaults>
</compile_context>

<pallas_src>
import math
import functools

import jax
import jax.numpy as jnp
from jax.experimental import pallas as pl
from jax.experimental.pallas import tpu as pltpu


def _round_up(x, m):
    return ((x + m - 1) // m) * m


# --------------------------- phase 1: correlation ----------------------------
def _corr_kernel(cos_ref, sin_ref, q_ref, k_ref, corr_ref, msum_ref, *, inv_length):
    """corr[tau, n] = sum_t q[(t+tau)%L, n] * k[t, n] via real-DFT matmuls (MXU).

    Blocks: cos/sin (L, L); q/k/corr (L, THE); msum (L, 1) accumulator resident
    across the lane-tile grid axis (axis 1, "arbitrary").
    """
    j = pl.program_id(1)
    c = cos_ref[...]
    s = sin_ref[...]
    q = q_ref[...].astype(jnp.float32)          # cast hoisted; done once per tile
    k = k_ref[...].astype(jnp.float32)

    dot = functools.partial(jnp.dot, preferred_element_type=jnp.float32,
                            precision=jax.lax.Precision.HIGHEST)
    qc, qs = dot(c, q), dot(s, q)
    kc, ks = dot(c, k), dot(s, k)
    re = qc * kc + qs * ks                      # Re(Q * conj(K))
    im = qc * ks - qs * kc                      # Im(Q * conj(K))
    corr = (dot(c, re) - dot(s, im)) * inv_length
    corr_ref[...] = corr.astype(corr_ref.dtype)

    # Fused partial row-sum (mean over H*E), accumulated across lane tiles.
    @pl.when(j == 0)
    def _():
        msum_ref[...] = jnp.zeros_like(msum_ref)

    msum_ref[...] += jnp.sum(corr, axis=1, keepdims=True)


# ----------------------- phase 2: time-delay aggregation ---------------------
def _agg_kernel(delay_ref, w_ref, v_ref, out_ref, v2_ref, *, top_k, length, chunk):
    """out[t, m] = sum_i w[b, i] * v[(t + delay[i]) % L, m] for one (b, hd-tile)."""
    b = pl.program_id(0)

    # Doubled copy of v (same dtype, no cast) so every circular shift becomes a
    # single contiguous sublane slice.
    v2_ref[pl.ds(0, length), :] = v_ref[...]
    v2_ref[pl.ds(length, length), :] = v_ref[...]

    # Hoist the SMEM scalar reads out of the chunk loop (top_k ~ log L).
    delays = [delay_ref[i] for i in range(top_k)]
    wgts = [w_ref[b * top_k + i] for i in range(top_k)]

    def body(cidx, carry):
        r0 = pl.multiple_of(cidx * chunk, chunk)
        acc = wgts[0] * v2_ref[pl.ds(r0 + delays[0], chunk), :].astype(jnp.float32)
        for i in range(1, top_k):
            acc = acc + wgts[i] * v2_ref[pl.ds(r0 + delays[i], chunk), :].astype(jnp.float32)
        out_ref[pl.ds(r0, chunk), :] = acc.astype(out_ref.dtype)
        return carry

    jax.lax.fori_loop(0, length // chunk, body, 0)


# --------------------------------- wrapper -----------------------------------
def autocorrelation_forward(queries, keys, values, *, factor=1):
    """JAX/Pallas equivalent of AutoCorrelation.forward (training branch)."""
    # Module semantics: inputs (B, H, L, E) / (B, H, S, D); permute to (B, L, H, E).
    q = jnp.transpose(queries, (0, 2, 1, 3))   # (B, L, H, E)
    k = jnp.transpose(keys, (0, 2, 1, 3))      # (B, S, H, E)
    v = jnp.transpose(values, (0, 2, 1, 3))    # (B, S, H, D)
    B, L, H, E = q.shape
    _, S, _, D = v.shape
    if L > S:
        v = jnp.concatenate([v, jnp.zeros((B, L - S, H, D), v.dtype)], axis=1)
        k = jnp.concatenate([k, jnp.zeros((B, L - S, H, E), k.dtype)], axis=1)
    else:
        v = v[:, :L]
        k = k[:, :L]

    # ---------------- phase 1: correlation on the MXU ----------------
    HE = H * E
    q_f = q.reshape(B, L, HE)                  # free reshape (contiguous trailing dims)
    k_f = k.reshape(B, L, HE)

    # Lane tile: multiple of 128 (256-multiples preferred for v6e/v7x MXU), sized
    # so double-buffered q/k/corr blocks + the two (L, L) DFT matrices stay well
    # under the smallest scoped-VMEM default (v5e: 16 MiB).
    if HE <= 256:
        THE = _round_up(max(HE, 1), 128)
    else:
        budget = 10 * 1024 * 1024 - 16 * L * L            # leave room for cos/sin
        cap = max(128, budget // (24 * L))                # 3 blocks x 2 bufs x 4 B
        THE = min(512, (cap // 128) * 128)
        if THE >= 256:
            THE = (THE // 256) * 256
        THE = max(128, min(THE, _round_up(HE, 128)))
    HE_pad = _round_up(HE, THE)
    if HE_pad != HE:
        pad = ((0, 0), (0, 0), (0, HE_pad - HE))
        q_f = jnp.pad(q_f, pad)
        k_f = jnp.pad(k_f, pad)

    # Real DFT matrices (symmetric): C[f, t] = cos(2*pi*f*t/L), S[f, t] = sin(...).
    t = jnp.arange(L, dtype=jnp.float32)
    ang = (2.0 * jnp.pi / L) * (t[:, None] * t[None, :])
    cos_m = jnp.cos(ang)
    sin_m = jnp.sin(ang)

    n_he = HE_pad // THE
    corr, msum = pl.pallas_call(
        functools.partial(_corr_kernel, inv_length=1.0 / L),
        out_shape=(
            jax.ShapeDtypeStruct((B, L, HE_pad), jnp.float32),   # corr (attn)
            jax.ShapeDtypeStruct((B, L, 1), jnp.float32),        # fused row sums
        ),
        grid=(B, n_he),
        in_specs=[
            pl.BlockSpec((L, L), lambda b, j: (0, 0)),
            pl.BlockSpec((L, L), lambda b, j: (0, 0)),
            pl.BlockSpec((None, L, THE), lambda b, j: (b, 0, j)),
            pl.BlockSpec((None, L, THE), lambda b, j: (b, 0, j)),
        ],
        out_specs=(
            pl.BlockSpec((None, L, THE), lambda b, j: (b, 0, j)),
            pl.BlockSpec((None, L, 1), lambda b, j: (b, 0, 0)),
        ),
        compiler_params=pltpu.CompilerParams(
            dimension_semantics=("parallel", "arbitrary")),
    )(cos_m, sin_m, q_f, k_f)

    attn = corr[:, :, :HE].reshape(B, L, H, E)     # free reshape -> (B, L, H, E)

    # ---- tiny data-dependent glue: top-k lags + softmax weights ----
    top_k = max(1, min(L, int(factor * math.log(L))))
    mean_value = msum[:, :, 0] * (1.0 / (H * E))   # (B, L), padded lanes were zero
    _, index = jax.lax.top_k(jnp.mean(mean_value, axis=0), top_k)
    weights = mean_value[:, index]                 # (B, top_k)
    tmp_corr = jax.nn.softmax(weights, axis=-1).astype(jnp.float32)
    delays = index.astype(jnp.int32)

    # ---------------- phase 2: time-delay aggregation ----------------
    HD = H * D
    v_f = v.reshape(B, L, HD)                      # free reshape

    if HD <= 1024:
        THD = HD
    else:
        cap = max(128, (8 * 1024 * 1024) // (24 * L))
        THD = max(128, min(1024, (cap // 128) * 128))
    HD_pad = _round_up(HD, THD)
    if HD_pad != HD:
        v_f = jnp.pad(v_f, ((0, 0), (0, 0), (0, HD_pad - HD)))

    chunk = 8 if (L % 8 == 0) else L               # 8-row chunks keep acc in vregs

    agg = pl.pallas_call(
        functools.partial(_agg_kernel, top_k=top_k, length=L, chunk=chunk),
        out_shape=jax.ShapeDtypeStruct((B, L, HD_pad), v.dtype),   # v's dtype
        grid=(B, HD_pad // THD),
        in_specs=[
            pl.BlockSpec(memory_space=pltpu.MemorySpace.SMEM),     # delays (top_k,)
            pl.BlockSpec(memory_space=pltpu.MemorySpace.SMEM),     # weights (B*top_k,)
            pl.BlockSpec((None, L, THD), lambda b, j: (b, 0, j)),  # values
        ],
        out_specs=pl.BlockSpec((None, L, THD), lambda b, j: (b, 0, j)),
        scratch_shapes=[pltpu.VMEM((2 * L, THD), v.dtype)],
        compiler_params=pltpu.CompilerParams(
            dimension_semantics=("parallel", "parallel")),
    )(delays, tmp_corr.reshape(-1), v_f)

    V = agg[:, :, :HD].reshape(B, L, H, D)         # (B, L, H, D)
    return V, attn


# ------------------------------- pure-JAX reference --------------------------
def _reference_forward(queries, keys, values, *, factor=1):
    """Pure-JAX reference mirroring the torch module (training branch, FFT)."""
    q = jnp.transpose(queries, (0, 2, 1, 3))
    k = jnp.transpose(keys, (0, 2, 1, 3))
    v = jnp.transpose(values, (0, 2, 1, 3))
    B, L, H, E = q.shape
    _, S, _, D = v.shape
    if L > S:
        v = jnp.concatenate([v, jnp.zeros((B, L - S, H, D), q.dtype)], axis=1)
        k = jnp.concatenate([k, jnp.zeros((B, L - S, H, E), q.dtype)], axis=1)
    else:
        v = v[:, :L]
        k = k[:, :L]
    q_fft = jnp.fft.rfft(jnp.transpose(q, (0, 2, 3, 1)), axis=-1)
    k_fft = jnp.fft.rfft(jnp.transpose(k, (0, 2, 3, 1)), axis=-1)
    corr = jnp.fft.irfft(q_fft * jnp.conj(k_fft), n=L, axis=-1)     # (B,H,E,L)
    top_k = max(1, min(L, int(factor * math.log(L))))
    mean_value = jnp.mean(corr, axis=(1, 2))
    _, index = jax.lax.top_k(jnp.mean(mean_value, axis=0), top_k)
    weights = mean_value[:, index]
    tmp_corr = jax.nn.softmax(weights, axis=-1)
    vals = jnp.transpose(v, (0, 2, 3, 1))                            # (B,H,D,L)
    agg = jnp.zeros_like(vals, dtype=jnp.float32)
    for i in range(top_k):
        pattern = jnp.roll(vals, -int(index[i]), axis=-1)
        agg = agg + pattern * tmp_corr[:, i][:, None, None, None]
    return jnp.transpose(agg, (0, 3, 1, 2)), jnp.transpose(corr, (0, 3, 1, 2))


if __name__ == "__main__":
    key = jax.random.PRNGKey(0)
    kq, kk, kv = jax.random.split(key, 3)
    B, H, L, E, D = 2, 2, 16, 8, 8
    queries = jax.random.normal(kq, (B, H, L, E), jnp.float32)
    keys_in = jax.random.normal(kk, (B, H, L, E), jnp.float32)
    values_in = jax.random.normal(kv, (B, H, L, D), jnp.float32)

    V, attn = autocorrelation_forward(queries, keys_in, values_in, factor=1)
    V = jax.block_until_ready(V)
    attn = jax.block_until_ready(attn)

    V_ref, attn_ref = _reference_forward(queries, keys_in, values_in, factor=1)
    assert V.shape == (B, L, H, D) and attn.shape == (B, L, H, E)
    assert jnp.allclose(attn, attn_ref, atol=2e-3, rtol=2e-3), \
        float(jnp.max(jnp.abs(attn - attn_ref)))
    assert jnp.allclose(V, V_ref, atol=2e-3, rtol=2e-3), \
        float(jnp.max(jnp.abs(V - V_ref)))

    print("KERNEL_OK")
</pallas_src>

<mosaic_0001>
module attributes {stable_mosaic.version = 11 : i64} {
  func.func @_corr_kernel(%arg0: i32, %arg1: i32, %arg2: memref<16x16xf32, #tpu.memory_space<vmem>>, %arg3: memref<16x16xf32, #tpu.memory_space<vmem>>, %arg4: memref<1x16x128xf32, #tpu.memory_space<vmem>>, %arg5: memref<1x16x128xf32, #tpu.memory_space<vmem>>, %arg6: memref<1x16x128xf32, #tpu.memory_space<vmem>>, %arg7: memref<1x16x1xf32, #tpu.memory_space<vmem>>) attributes {dimension_semantics = [#tpu.dimension_semantics<parallel>, #tpu.dimension_semantics<arbitrary>], iteration_bounds = array<i64: 2, 1>, scalar_prefetch = 0 : i64, scratch_operands = 0 : i64, tpu.core_type = #tpu.core_type<tc>, window_params = [{pipeline_mode = #tpu.pipeline_mode<synchronous>, transform_indices = @transform_0, window_bounds = array<i64: 16, 16>}, {pipeline_mode = #tpu.pipeline_mode<synchronous>, transform_indices = @transform_1, window_bounds = array<i64: 16, 16>}, {transform_indices = @transform_2, window_bounds = array<i64: 1, 16, 128>}, {transform_indices = @transform_3, window_bounds = array<i64: 1, 16, 128>}, {transform_indices = @transform_4, window_bounds = array<i64: 1, 16, 128>}, {transform_indices = @transform_5, window_bounds = array<i64: 1, 16, 1>}]} {
    %c0 = arith.constant 0 : index
    %c0_0 = arith.constant 0 : index
    %0 = vector.load %arg2[%c0, %c0_0] : memref<16x16xf32, #tpu.memory_space<vmem>>, vector<16x16xf32>
    %c0_1 = arith.constant 0 : index
    %c0_2 = arith.constant 0 : index
    %1 = vector.load %arg3[%c0_1, %c0_2] : memref<16x16xf32, #tpu.memory_space<vmem>>, vector<16x16xf32>
    %c0_3 = arith.constant 0 : index
    %c0_4 = arith.constant 0 : index
    %c0_5 = arith.constant 0 : index
    %2 = vector.load %arg4[%c0_3, %c0_4, %c0_5] : memref<1x16x128xf32, #tpu.memory_space<vmem>>, vector<1x16x128xf32>
    %3 = vector.shape_cast %2 : vector<1x16x128xf32> to vector<16x128xf32>
    %c0_6 = arith.constant 0 : index
    %c0_7 = arith.constant 0 : index
    %c0_8 = arith.constant 0 : index
    %4 = vector.load %arg5[%c0_6, %c0_7, %c0_8] : memref<1x16x128xf32, #tpu.memory_space<vmem>>, vector<1x16x128xf32>
    %5 = vector.shape_cast %4 : vector<1x16x128xf32> to vector<16x128xf32>
    %cst = arith.constant dense<0.000000e+00> : vector<16x128xf32>
    %6 = tpu.matmul %0, %3, %cst {dimension_numbers = #tpu.dot_dimension_numbers<[1], [0], [0], [1], [0, 0, 1, 1], [], []>, precision = #tpu.contract_precision<fp32>} : vector<16x16xf32>, vector<16x128xf32>, vector<16x128xf32> -> vector<16x128xf32>
    %cst_9 = arith.constant dense<0.000000e+00> : vector<16x128xf32>
    %7 = tpu.matmul %1, %3, %cst_9 {dimension_numbers = #tpu.dot_dimension_numbers<[1], [0], [0], [1], [0, 0, 1, 1], [], []>, precision = #tpu.contract_precision<fp32>} : vector<16x16xf32>, vector<16x128xf32>, vector<16x128xf32> -> vector<16x128xf32>
    %cst_10 = arith.constant dense<0.000000e+00> : vector<16x128xf32>
    %8 = tpu.matmul %0, %5, %cst_10 {dimension_numbers = #tpu.dot_dimension_numbers<[1], [0], [0], [1], [0, 0, 1, 1], [], []>, precision = #tpu.contract_precision<fp32>} : vector<16x16xf32>, vector<16x128xf32>, vector<16x128xf32> -> vector<16x128xf32>
    %cst_11 = arith.constant dense<0.000000e+00> : vector<16x128xf32>
    %9 = tpu.matmul %1, %5, %cst_11 {dimension_numbers = #tpu.dot_dimension_numbers<[1], [0], [0], [1], [0, 0, 1, 1], [], []>, precision = #tpu.contract_precision<fp32>} : vector<16x16xf32>, vector<16x128xf32>, vector<16x128xf32> -> vector<16x128xf32>
    %10 = arith.mulf %6, %8 : vector<16x128xf32>
    %11 = arith.mulf %7, %9 : vector<16x128xf32>
    %12 = arith.addf %10, %11 : vector<16x128xf32>
    %13 = arith.mulf %6, %9 : vector<16x128xf32>
    %14 = arith.mulf %7, %8 : vector<16x128xf32>
    %15 = arith.subf %13, %14 : vector<16x128xf32>
    %cst_12 = arith.constant dense<0.000000e+00> : vector<16x128xf32>
    %16 = tpu.matmul %0, %12, %cst_12 {dimension_numbers = #tpu.dot_dimension_numbers<[1], [0], [0], [1], [0, 0, 1, 1], [], []>, precision = #tpu.contract_precision<fp32>} : vector<16x16xf32>, vector<16x128xf32>, vector<16x128xf32> -> vector<16x128xf32>
    %cst_13 = arith.constant dense<0.000000e+00> : vector<16x128xf32>
    %17 = tpu.matmul %1, %15, %cst_13 {dimension_numbers = #tpu.dot_dimension_numbers<[1], [0], [0], [1], [0, 0, 1, 1], [], []>, precision = #tpu.contract_precision<fp32>} : vector<16x16xf32>, vector<16x128xf32>, vector<16x128xf32> -> vector<16x128xf32>
    %18 = arith.subf %16, %17 : vector<16x128xf32>
    %cst_14 = arith.constant 6.250000e-02 : f32
    %19 = vector.broadcast %cst_14 : f32 to vector<16x128xf32>
    %20 = arith.mulf %18, %19 : vector<16x128xf32>
    %c0_15 = arith.constant 0 : index
    %c0_16 = arith.constant 0 : index
    %c0_17 = arith.constant 0 : index
    %21 = vector.load %arg6[%c0_15, %c0_16, %c0_17] : memref<1x16x128xf32, #tpu.memory_space<vmem>>, vector<1x16x128xf32>
    %22 = vector.shape_cast %21 : vector<1x16x128xf32> to vector<16x128xf32>
    %23 = vector.shape_cast %20 : vector<16x128xf32> to vector<1x16x128xf32>
    tpu.vector_store %arg6[%c0_15, %c0_16, %c0_17], %23 {strides = array<i32>} : memref<1x16x128xf32, #tpu.memory_space<vmem>>, vector<1x16x128xf32>,
    %c0_i32 = arith.constant 0 : i32
    %24 = arith.cmpi eq, %arg1, %c0_i32 : i32
    %25 = arith.extui %24 : i1 to i32
    %c0_i32_18 = arith.constant 0 : i32
    %26 = arith.cmpi ne, %25, %c0_i32_18 : i32
    scf.if %26 {
      %cst_26 = arith.constant 0.000000e+00 : f32
      %35 = vector.broadcast %cst_26 : f32 to vector<16x1xf32>
      %c0_27 = arith.constant 0 : index
      %c0_28 = arith.constant 0 : index
      %c0_29 = arith.constant 0 : index
      %36 = vector.load %arg7[%c0_27, %c0_28, %c0_29] : memref<1x16x1xf32, #tpu.memory_space<vmem>>, vector<1x16x1xf32>
      %37 = vector.shape_cast %36 : vector<1x16x1xf32> to vector<16x1xf32>
      %38 = vector.shape_cast %35 : vector<16x1xf32> to vector<1x16x1xf32>
      tpu.vector_store %arg7[%c0_27, %c0_28, %c0_29], %38 {strides = array<i32>} : memref<1x16x1xf32, #tpu.memory_space<vmem>>, vector<1x16x1xf32>,
    } else {
    }
    %c0_19 = arith.constant 0 : index
    %c0_20 = arith.constant 0 : index
    %c0_21 = arith.constant 0 : index
    %27 = vector.load %arg7[%c0_19, %c0_20, %c0_21] : memref<1x16x1xf32, #tpu.memory_space<vmem>>, vector<1x16x1xf32>
    %28 = vector.shape_cast %27 : vector<1x16x1xf32> to vector<16x1xf32>
    %cst_22 = arith.constant dense<0.000000e+00> : vector<16xf32>
    %29 = vector.multi_reduction <add>, %20, %cst_22 [1] : vector<16x128xf32> to vector<16xf32>
    %30 = vector.shape_cast %29 : vector<16xf32> to vector<16x1xf32>
    %31 = arith.addf %28, %30 : vector<16x1xf32>
    %c0_23 = arith.constant 0 : index
    %c0_24 = arith.constant 0 : index
    %c0_25 = arith.constant 0 : index
    %32 = vector.load %arg7[%c0_23, %c0_24, %c0_25] : memref<1x16x1xf32, #tpu.memory_space<vmem>>, vector<1x16x1xf32>
    %33 = vector.shape_cast %32 : vector<1x16x1xf32> to vector<16x1xf32>
    %34 = vector.shape_cast %31 : vector<16x1xf32> to vector<1x16x1xf32>
    tpu.vector_store %arg7[%c0_23, %c0_24, %c0_25], %34 {strides = array<i32>} : memref<1x16x1xf32, #tpu.memory_space<vmem>>, vector<1x16x1xf32>,
    return
  }
  func.func @transform_0(%arg0: i32, %arg1: i32) -> (i32, i32) {
    %c0_i32 = arith.constant 0 : i32
    %c0_i32_0 = arith.constant 0 : i32
    %c0_i32_1 = arith.constant 0 : i32
    return %c0_i32, %c0_i32_0 : i32, i32
  }
  func.func @transform_1(%arg0: i32, %arg1: i32) -> (i32, i32) {
    %c0_i32 = arith.constant 0 : i32
    %c0_i32_0 = arith.constant 0 : i32
    %c0_i32_1 = arith.constant 0 : i32
    return %c0_i32, %c0_i32_0 : i32, i32
  }
  func.func @transform_2(%arg0: i32, %arg1: i32) -> (i32, i32, i32) {
    %c0_i32 = arith.constant 0 : i32
    %c0_i32_0 = arith.constant 0 : i32
    return %arg0, %c0_i32, %arg1 : i32, i32, i32
  }
  func.func @transform_3(%arg0: i32, %arg1: i32) -> (i32, i32, i32) {
    %c0_i32 = arith.constant 0 : i32
    %c0_i32_0 = arith.constant 0 : i32
    return %arg0, %c0_i32, %arg1 : i32, i32, i32
  }
  func.func @transform_4(%arg0: i32, %arg1: i32) -> (i32, i32, i32) {
    %c0_i32 = arith.constant 0 : i32
    %c0_i32_0 = arith.constant 0 : i32
    return %arg0, %c0_i32, %arg1 : i32, i32, i32
  }
  func.func @transform_5(%arg0: i32, %arg1: i32) -> (i32, i32, i32) {
    %c0_i32 = arith.constant 0 : i32
    %c0_i32_0 = arith.constant 0 : i32
    %c0_i32_1 = arith.constant 0 : i32
    return %arg0, %c0_i32, %c0_i32_0 : i32, i32, i32
  }
}

</mosaic_0001>

<llo_original>
// kernel: tpu_custom_call.1
$region0: #{tpu_custom_call.1}
  #allocation0 [shape = 'u32[]', space=smem, size = 0x4, offset = 0x4, fixed_abs, tag = 'smem constant byte address 0x4 - core index']
  #allocation1 [shape = 'u32[144,128]{1,0:T(1,128)}', space=vmem, size = 0x12000, scoped, tag = 'internal scratch']
  %s0 = inlined_call_operand.hbm [shape: f32[16,16], index: 0, kind: input, shape index: {}]
  %s1 = inlined_call_operand.hbm [shape: f32[16,16], index: 1, kind: input, shape index: {}]
  %s2 = inlined_call_operand.hbm [shape: f32[2,16,128], index: 2, kind: input, shape index: {}]
  %s3 = inlined_call_operand.hbm [shape: f32[2,16,128], index: 3, kind: input, shape index: {}]
  %s4 = inlined_call_operand.hbm [shape: f32[2,16,128], index: 4, kind: output, shape index: {0}]
  %s5 = inlined_call_operand.vmem [shape: f32[2,16,1], index: 5, kind: output, shape index: {1}]
  %6 = xla_tuple %s4, %s5
  %s7 = sld [smem:[#allocation0]]
  $region77: #{tpu_custom_call.1} parent=0
    _
  %s9 = ssub.s32 1, %s7
  %s10 = scalar_select 0, %s9, %s7
  $region1: #{tpu_custom_call.1} parent=0
    #allocation2 [shape = 'u8[8192]{0}', space=vmem, size = 0x2000, scoped, tag = 'input window, operand 0, single buffered']
    #allocation3 [shape = 's32[2]{0}', space=sflag, size = 0x8, scoped, tag = 'scoped memory for tpu_custom_call.1']
    #allocation4 [shape = 's32[2]{0}', space=sflag, size = 0x8, scoped, tag = 'scoped memory for tpu_custom_call.1']
    #allocation5 [shape = 'u8[8192]{0}', space=vmem, size = 0x2000, scoped, tag = 'input window, operand 1, single buffered']
    #allocation6 [shape = 's32[1]{0}', space=sflag, size = 0x4, scoped, tag = 'scoped memory for tpu_custom_call.1']
    #allocation7 [shape = 'u8[16384]{0}', space=vmem, size = 0x4000, scoped, tag = 'input window, operand 2']
    #allocation8 [shape = 'u8[16384]{0}', space=vmem, size = 0x4000, scoped, tag = 'input window, operand 3']
    #allocation9 [shape = 'u8[16384]{0}', space=vmem, size = 0x4000, scoped, tag = 'output window, operand 0']
    %11 = vsyncpa [#allocation3], 0
    %12 = vsyncpa [#allocation6], 0
    %13 = vsyncpa [#allocation4], 0
    %s14 = scalar_lea.sflag [#allocation4], 1
    %15 = vsyncpa %s14, 0
    loop: start=0, step=1, limit=4
    $region2: #{tpu_custom_call.1} parent=1 // loop_pre_header
      _
    $region3: #{tpu_custom_call.1} parent=1 // loop_header
      %s17 = sphi 0, %s21
      %p18 = scmp.ge.s32.totalorder %s17, 4
      %s24 = sphi 0, %s36
      %s25 = sphi 0, %s32
      %s26 = sphi 0, %s24
      %s27 = sphi 0, %s25
      %s28 = sphi 0, %s26
      %s29 = sphi 0, %s27
      %s37 = sphi 0, %s37
      %s39 = sphi 0, %s37
      %s40 = sphi 0, %s39
      %s54 = sphi 0, %s40
      %s58 = sphi 0, %s58
      %s60 = sphi 0, %s58
      %s61 = sphi 0, %s60
      %s75 = sphi 0, %s61
      %s83 = sphi 0, %s85
      %s86 = sphi 0, %s83
      %s87 = sphi 0, %s86
      %s103 = sphi 0, %s87
      %s111 = sphi 0, %s113
      %s114 = sphi 0, %s111
      %s115 = sphi 0, %s114
      %s131 = sphi 0, %s115
      %s139 = sphi 0, %s141
      %s142 = sphi 0, %s139
      %s143 = sphi 0, %s142
      %s159 = sphi 0, %s143
      %s165 = sphi 0, %s167
      %s168 = sphi 0, %s165
      %s169 = sphi 0, %s168
      %s185 = sphi 0, %s169
    $region4: #{tpu_custom_call.1} parent=1 // loop_header_branch
      %20 = sbr.rel (%p18) target = $region8
    $region5: #{tpu_custom_call.1} parent=1 // loop_body
      %s22 = ssub.s32 %s17, 1
      %s23 = ssub.s32 %s17, 2
      %s30 = sadd.s32 1, %s25
      %p31 = scmp.ge.s32.totalorder %s30, 1
      %s32 = scalar_select %p31, 0, %s30
      %s33 = sadd.s32 1, %s24
      %s34 = scalar_select %p31, %s33, %s24
      %p35 = scmp.ge.s32.totalorder %s34, 2
      %s36 = scalar_select %p35, 0, %s34
      %s38 = sadd.s32 %s37, 1
      %p41 = scmp.eq.s32.totalorder %s17, 1
      %p42 = scmp.ne.s32.totalorder %s37, %s39
      %p43 = scmp.eq.s32.totalorder %s17, 0
      %p44 = por %p42, %p43
      %p45 = scmp.ne.s32.totalorder %s37, %s39
      %p46 = scmp.eq.s32.totalorder %s22, 1
      %p47 = por %p45, %p46
      %p48 = scmp.ne.s32.totalorder %s39, %s40
      %p49 = scmp.eq.s32.totalorder %s22, 0
      %p50 = por %p48, %p49
      %p51 = scmp.ne.s32.totalorder %s39, %s40
      %p52 = scmp.eq.s32.totalorder %s23, 1
      %p53 = por %p51, %p52
      %p55 = scmp.ne.s32.totalorder %s40, %s54
      %p56 = scmp.eq.s32.totalorder %s23, 0
      %p57 = por %p55, %p56
      %s59 = sadd.s32 %s58, 1
      %p62 = scmp.eq.s32.totalorder %s17, 1
      %p63 = scmp.ne.s32.totalorder %s58, %s60
      %p64 = scmp.eq.s32.totalorder %s17, 0
      %p65 = por %p63, %p64
      %p66 = scmp.ne.s32.totalorder %s58, %s60
      %p67 = scmp.eq.s32.totalorder %s22, 1
      %p68 = por %p66, %p67
      %p69 = scmp.ne.s32.totalorder %s60, %s61
      %p70 = scmp.eq.s32.totalorder %s22, 0
      %p71 = por %p69, %p70
      %p72 = scmp.ne.s32.totalorder %s60, %s61
      %p73 = scmp.eq.s32.totalorder %s23, 1
      %p74 = por %p72, %p73
      %p76 = scmp.ne.s32.totalorder %s61, %s75
      %p77 = scmp.eq.s32.totalorder %s23, 0
      %p78 = por %p76, %p77
      %s79 = ssub.s32 %s24, %s36
      %s80 = ssub.s32 %s25, %s32
      %s81 = sor.u32 %s79, %s80
      %p82 = scmp.eq.s32.totalorder %s81, 0
      %s84 = sadd.s32 %s83, 1
      %s85 = scalar_select %p82, %s83, %s84
      %p88 = pneg %p82
      %p89 = scmp.eq.s32.totalorder %s17, 1
      %p90 = por %p88, %p89
      %p91 = scmp.ne.s32.totalorder %s83, %s86
      %p92 = scmp.eq.s32.totalorder %s17, 0
      %p93 = por %p91, %p92
      %p94 = scmp.ne.s32.totalorder %s83, %s86
      %p95 = scmp.eq.s32.totalorder %s22, 1
      %p96 = por %p94, %p95
      %p97 = scmp.ne.s32.totalorder %s86, %s87
      %p98 = scmp.eq.s32.totalorder %s22, 0
      %p99 = por %p97, %p98
      %p100 = scmp.ne.s32.totalorder %s86, %s87
      %p101 = scmp.eq.s32.totalorder %s23, 1
      %p102 = por %p100, %p101
      %p104 = scmp.ne.s32.totalorder %s87, %s103
      %p105 = scmp.eq.s32.totalorder %s23, 0
      %p106 = por %p104, %p105
      %s107 = ssub.s32 %s24, %s36
      %s108 = ssub.s32 %s25, %s32
      %s109 = sor.u32 %s107, %s108
      %p110 = scmp.eq.s32.totalorder %s109, 0
      %s112 = sadd.s32 %s111, 1
      %s113 = scalar_select %p110, %s111, %s112
      %p116 = pneg %p110
      %p117 = scmp.eq.s32.totalorder %s17, 1
      %p118 = por %p116, %p117
      %p119 = scmp.ne.s32.totalorder %s111, %s114
      %p120 = scmp.eq.s32.totalorder %s17, 0
      %p121 = por %p119, %p120
      %p122 = scmp.ne.s32.totalorder %s111, %s114
      %p123 = scmp.eq.s32.totalorder %s22, 1
      %p124 = por %p122, %p123
      %p125 = scmp.ne.s32.totalorder %s114, %s115
      %p126 = scmp.eq.s32.totalorder %s22, 0
      %p127 = por %p125, %p126
      %p128 = scmp.ne.s32.totalorder %s114, %s115
      %p129 = scmp.eq.s32.totalorder %s23, 1
      %p130 = por %p128, %p129
      %p132 = scmp.ne.s32.totalorder %s115, %s131
      %p133 = scmp.eq.s32.totalorder %s23, 0
      %p134 = por %p132, %p133
      %s135 = ssub.s32 %s24, %s36
      %s136 = ssub.s32 %s25, %s32
      %s137 = sor.u32 %s135, %s136
      %p138 = scmp.eq.s32.totalorder %s137, 0
      %s140 = sadd.s32 %s139, 1
      %s141 = scalar_select %p138, %s139, %s140
      %p144 = pneg %p138
      %p145 = scmp.eq.s32.totalorder %s17, 1
      %p146 = por %p144, %p145
      %p147 = scmp.ne.s32.totalorder %s139, %s142
      %p148 = scmp.eq.s32.totalorder %s17, 0
      %p149 = por %p147, %p148
      %p150 = scmp.ne.s32.totalorder %s139, %s142
      %p151 = scmp.eq.s32.totalorder %s22, 1
      %p152 = por %p150, %p151
      %p153 = scmp.ne.s32.totalorder %s142, %s143
      %p154 = scmp.eq.s32.totalorder %s22, 0
      %p155 = por %p153, %p154
      %p156 = scmp.ne.s32.totalorder %s142, %s143
      %p157 = scmp.eq.s32.totalorder %s23, 1
      %p158 = por %p156, %p157
      %p160 = scmp.ne.s32.totalorder %s143, %s159
      %p161 = scmp.eq.s32.totalorder %s23, 0
      %p162 = por %p160, %p161
      %s163 = ssub.s32 %s24, %s36
      %p164 = scmp.eq.s32.totalorder %s163, 0
      %s166 = sadd.s32 %s165, 1
      %s167 = scalar_select %p164, %s165, %s166
      %p170 = pneg %p164
      %p171 = scmp.eq.s32.totalorder %s17, 1
      %p172 = por %p170, %p171
      %p173 = scmp.ne.s32.totalorder %s165, %s168
      %p174 = scmp.eq.s32.totalorder %s17, 0
      %p175 = por %p173, %p174
      %p176 = scmp.ne.s32.totalorder %s165, %s168
      %p177 = scmp.eq.s32.totalorder %s22, 1
      %p178 = por %p176, %p177
      %p179 = scmp.ne.s32.totalorder %s168, %s169
      %p180 = scmp.eq.s32.totalorder %s22, 0
      %p181 = por %p179, %p180
      %p182 = scmp.ne.s32.totalorder %s168, %s169
      %p183 = scmp.eq.s32.totalorder %s23, 1
      %p184 = por %p182, %p183
      %p186 = scmp.ne.s32.totalorder %s169, %s185
      %p187 = scmp.eq.s32.totalorder %s23, 0
      %p188 = por %p186, %p187
      %p189 = scmp.le.s32.totalorder 1, %s17
      %p190 = scmp.lt.s32.totalorder %s17, 3
      %p191 = pnand %p189, %p190
      %p192 = pneg %p191
      // Predicated region
      $region9: #{tpu_custom_call.1} parent=5 // pred_check
        _
      $region10: #{tpu_custom_call.1} parent=5 // pred_check_branch
        %194 = sbr.rel (%p191) target = $region12
      $region11: #{tpu_custom_call.1} parent=5 // pred_region
        %s195 = ssub.s32 %s17, 1
        // Predicated region
        $region13: #{tpu_custom_call.1} parent=11 // pred_check
          %p196 = pneg %p50
        $region14: #{tpu_custom_call.1} parent=11 // pred_check_branch
          %198 = sbr.rel (%p196) target = $region16
        $region15: #{tpu_custom_call.1} parent=11 // pred_region
          %s200 = ssub.s32 256, 256
          %201 = vsyncadd [#allocation3], %s200
          %s202 = sshll.u32 [#allocation2], 4
          %s203 = int_to_ptr.vmem [resolvable:$true] %s202
          %208 = dma.hbm_to_vmem [thread:$0]  %s0, 256, %s203, [#allocation3], 128, 128, 8
        $region16: #{tpu_custom_call.1} parent=11 // pred_fallthru
          _
        // Predicated region
        $region17: #{tpu_custom_call.1} parent=11 // pred_check
          %p209 = pneg %p71
        $region18: #{tpu_custom_call.1} parent=11 // pred_check_branch
          %211 = sbr.rel (%p209) target = $region20
        $region19: #{tpu_custom_call.1} parent=11 // pred_region
          %s213 = ssub.s32 256, 256
          %214 = vsyncadd [#allocation6], %s213
          %s215 = sshll.u32 [#allocation5], 4
          %s216 = int_to_ptr.vmem [resolvable:$true] %s215
          %221 = dma.hbm_to_vmem [thread:$0]  %s1, 256, %s216, [#allocation6], 128, 128, 8
        $region20: #{tpu_custom_call.1} parent=11 // pred_fallthru
          _
      $region12: #{tpu_custom_call.1} parent=5 // pred_fallthru
        _
      %p222 = scmp.lt.s32.totalorder %s17, 2
      // Predicated region
      $region21: #{tpu_custom_call.1} parent=5 // pred_check
        %p223 = pneg %p222
      $region22: #{tpu_custom_call.1} parent=5 // pred_check_branch
        %225 = sbr.rel (%p223) target = $region24
      $region23: #{tpu_custom_call.1} parent=5 // pred_region
        // Predicated region
        $region25: #{tpu_custom_call.1} parent=23 // pred_check
          %p226 = pneg %p93
        $region26: #{tpu_custom_call.1} parent=23 // pred_check_branch
          %228 = sbr.rel (%p226) target = $region28
        $region27: #{tpu_custom_call.1} parent=23 // pred_region
          %s229 = sand.u32 %s17, 1
          %s230 = scalar_lea.sflag [#allocation3], %s229
          %s231 = sand.u32 %s83, 1
          %s232 = smul.addr %s231, 16
          %s233 = scalar_lea.vmem [#allocation7], %s232
          %s235 = ssub.s32 256, 256
          %236 = vsyncadd %s230, %s235
          %s237 = smul.addr %s24, 2
          %s238 = sadd.s32 %s25, %s237
          %s239 = smul.addr %s238, 128
          %s240 = scalar_lea.hbm %s2, %s239
          %s241 = sshll.u32 %s233, 4
          %s242 = int_to_ptr.vmem [resolvable:$true] %s241
          %247 = dma.hbm_to_vmem [thread:$0]  %s240, 256, %s242, %s230, 128, 128, 8
        $region28: #{tpu_custom_call.1} parent=23 // pred_fallthru
          _
        // Predicated region
        $region29: #{tpu_custom_call.1} parent=23 // pred_check
          %p248 = pneg %p121
        $region30: #{tpu_custom_call.1} parent=23 // pred_check_branch
          %250 = sbr.rel (%p248) target = $region32
        $region31: #{tpu_custom_call.1} parent=23 // pred_region
          %s251 = sand.u32 %s17, 1
          %s252 = scalar_lea.sflag [#allocation3], %s251
          %s253 = sand.u32 %s111, 1
          %s254 = smul.addr %s253, 16
          %s255 = scalar_lea.vmem [#allocation8], %s254
          %s257 = ssub.s32 256, 256
          %258 = vsyncadd %s252, %s257
          %s259 = smul.addr %s24, 2
          %s260 = sadd.s32 %s25, %s259
          %s261 = smul.addr %s260, 128
          %s262 = scalar_lea.hbm %s3, %s261
          %s263 = sshll.u32 %s255, 4
          %s264 = int_to_ptr.vmem [resolvable:$true] %s263
          %269 = dma.hbm_to_vmem [thread:$0]  %s262, 256, %s264, %s252, 128, 128, 8
        $region32: #{tpu_custom_call.1} parent=23 // pred_fallthru
          _
      $region24: #{tpu_custom_call.1} parent=5 // pred_fallthru
        _
      %p270 = scmp.le.s32.totalorder 1, %s17
      %p271 = scmp.lt.s32.totalorder %s17, 3
      %p272 = pnand %p270, %p271
      %p273 = pneg %p272
      // Predicated region
      $region33: #{tpu_custom_call.1} parent=5 // pred_check
        _
      $region34: #{tpu_custom_call.1} parent=5 // pred_check_branch
        %275 = sbr.rel (%p272) target = $region36
      $region35: #{tpu_custom_call.1} parent=5 // pred_region
        %s276 = ssub.s32 %s17, 1
        // Predicated region
        $region37: #{tpu_custom_call.1} parent=35 // pred_check
          %p277 = pneg %p50
        $region38: #{tpu_custom_call.1} parent=35 // pred_check_branch
          %279 = sbr.rel (%p277) target = $region40
        $region39: #{tpu_custom_call.1} parent=35 // pred_region
          %280 = dma.done [#allocation3], 256
        $region40: #{tpu_custom_call.1} parent=35 // pred_fallthru
          _
        // Predicated region
        $region41: #{tpu_custom_call.1} parent=35 // pred_check
          %p281 = pneg %p71
        $region42: #{tpu_custom_call.1} parent=35 // pred_check_branch
          %283 = sbr.rel (%p281) target = $region44
        $region43: #{tpu_custom_call.1} parent=35 // pred_region
          %284 = dma.done [#allocation6], 256
        $region44: #{tpu_custom_call.1} parent=35 // pred_fallthru
          _
        %s285 = sand.u32 %s22, 1
        %s286 = scalar_lea.sflag [#allocation3], %s285
        %s287 = sand.u32 %s86, 1
        %s288 = smul.addr %s287, 16
        %s289 = scalar_lea.vmem [#allocation7], %s288
        // Predicated region
        $region45: #{tpu_custom_call.1} parent=35 // pred_check
          %p290 = pneg %p99
        $region46: #{tpu_custom_call.1} parent=35 // pred_check_branch
          %292 = sbr.rel (%p290) target = $region48
        $region47: #{tpu_custom_call.1} parent=35 // pred_region
          %293 = dma.done %s286, 256
        $region48: #{tpu_custom_call.1} parent=35 // pred_fallthru
          _
        %s294 = sand.u32 %s22, 1
        %s295 = scalar_lea.sflag [#allocation3], %s294
        %s296 = sand.u32 %s114, 1
        %s297 = smul.addr %s296, 16
        %s298 = scalar_lea.vmem [#allocation8], %s297
        // Predicated region
        $region49: #{tpu_custom_call.1} parent=35 // pred_check
          %p299 = pneg %p127
        $region50: #{tpu_custom_call.1} parent=35 // pred_check_branch
          %301 = sbr.rel (%p299) target = $region52
        $region51: #{tpu_custom_call.1} parent=35 // pred_region
          %302 = dma.done %s295, 256
        $region52: #{tpu_custom_call.1} parent=35 // pred_fallthru
          _
        %p303 = pneg %p50
        %p304 = pneg %p47
        %p305 = pneg %p71
        %p306 = pneg %p68
        %s307 = sand.u32 %s22, 1
        %s308 = scalar_lea.sflag [#allocation3], %s307
        %s309 = sand.u32 %s86, 1
        %s310 = smul.addr %s309, 16
        %s311 = scalar_lea.vmem [#allocation7], %s310
        %p312 = pneg %p99
        %p313 = pneg %p96
        %s314 = sand.u32 %s22, 1
        %s315 = scalar_lea.sflag [#allocation3], %s314
        %s316 = sand.u32 %s114, 1
        %s317 = smul.addr %s316, 16
        %s318 = scalar_lea.vmem [#allocation8], %s317
        %p319 = pneg %p127
        %p320 = pneg %p124
        %p321 = pneg %p155
        %p322 = pneg %p152
        %s323 = sand.u32 %s142, 1
        %s324 = scalar_lea.sflag [#allocation4], %s323
        %s325 = sand.u32 %s142, 1
        %s326 = smul.addr %s325, 16
        %s327 = scalar_lea.vmem [#allocation9], %s326
        %p328 = pneg %p181
        %p329 = pneg %p178
        %p330 = scmp.lt.s32.totalorder %s26, 1
        %s331 = scalar_select %p330, %s26, 1
        %s332 = smul.addr %s331, 2
        %s333 = smul.addr %s332, 8
        %s334 = scalar_lea.vmem %s5, %s333
        %p335 = scmp.lt.s32.totalorder %s26, 1
        %s336 = scalar_select %p335, %s26, 1
        %s337 = smul.addr %s336, 2
        %s338 = smul.addr %s337, 8
        %s339 = scalar_lea.vmem %s5, %s338
        %v340 = vld [vmem:[#allocation2] sm:$0xff]
        %v341 = vld [vmem:[#allocation2 + $0x8] sm:$0xff]
        %v342 = vld [vmem:[#allocation5] sm:$0xff]
        %v343 = vld [vmem:[#allocation5 + $0x8] sm:$0xff]
        %v344 = vld [vmem:[%s289] sm:$0xff]
        %v345 = vld [vmem:[%s289 + $0x8] sm:$0xff]
        %v346 = vld [vmem:[%s298] sm:$0xff]
        %v347 = vld [vmem:[%s298 + $0x8] sm:$0xff]
        %vm348 = vcmask 130048
        %v350 = vsel %vm348, %v340, 0
        %v353 = vsel %vm348, %v341, 0
        %355 = vmatprep.subr.mxu0 0.0
        %v356 = vand.u32 %v344, 4294901760
        %357 = vmatpush1.msra.mxu0 %v356
        %358 = vmatprep.subr.mxu0 0.0
        %v359 = vand.u32 %v345, 4294901760
        %360 = vmatpush1.msra.mxu0 %v359
        %361 = vmatprep.subr.mxu0 0.0
        %362 = vmatpush1.msra.mxu0 0.0
        %363 = vmatprep.subr.mxu0 0.0
        %364 = vmatpush1.msra.mxu0 0.0
        %365 = vmatprep.subr.mxu0 0.0
        %366 = vmatpush1.msra.mxu0 0.0
        %367 = vmatprep.subr.mxu0 0.0
        %368 = vmatpush1.msra.mxu0 0.0
        %369 = vmatprep.subr.mxu0 0.0
        %370 = vmatpush1.msra.mxu0 0.0
        %371 = vmatprep.subr.mxu0 0.0
        %372 = vmatpush1.msra.mxu0 0.0
        %373 = vmatprep.subr.mxu0 0.0
        %374 = vmatpush1.msra.mxu0 0.0
        %375 = vmatprep.subr.mxu0 0.0
        %376 = vmatpush1.msra.mxu0 0.0
        %377 = vmatprep.subr.mxu0 0.0
        %378 = vmatpush1.msra.mxu0 0.0
        %379 = vmatprep.subr.mxu0 0.0
        %380 = vmatpush1.msra.mxu0 0.0
        %381 = vmatprep.subr.mxu0 0.0
        %382 = vmatpush1.msra.mxu0 0.0
        %383 = vmatprep.subr.mxu0 0.0
        %384 = vmatpush1.msra.mxu0 0.0
        %385 = vmatprep.subr.mxu0 0.0
        %386 = vmatpush1.msra.mxu0 0.0
        %387 = vmatprep.subr.mxu0 0.0
        %388 = vmatpush1.msra.mxu0 0.0
        %389 = vmatprep.subr.mxu0 0.0
        %390 = vmatpush1.msra.mxu0 0.0
        %391 = vmatprep.subr.mxu0 0.0
        %392 = vmatpush1.msra.mxu0 0.0
        %393 = vmatprep.subr.mxu0 0.0
        %394 = vmatpush1.msra.mxu0 0.0
        %395 = vmatprep.subr.mxu0 0.0
        %396 = vmatpush1.msra.mxu0 0.0
        %397 = vmatprep.subr.mxu0 0.0
        %398 = vmatpush1.msra.mxu0 0.0
        %399 = vmatprep.subr.mxu0 0.0
        %400 = vmatpush1.msra.mxu0 0.0
        %401 = vmatprep.subr.mxu0 0.0
        %402 = vmatpush1.msra.mxu0 0.0
        %403 = vmatprep.subr.mxu0 0.0
        %404 = vmatpush1.msra.mxu0 0.0
        %405 = vmatprep.subr.mxu0 0.0
        %406 = vmatpush1.msra.mxu0 0.0
        %407 = vmatprep.subr.mxu0 0.0
        %408 = vmatpush1.msra.mxu0 0.0
        %409 = vmatprep.subr.mxu0 0.0
        %410 = vmatpush1.msra.mxu0 0.0
        %411 = vmatprep.subr.mxu0 0.0
        %412 = vmatpush1.msra.mxu0 0.0
        %413 = vmatprep.subr.mxu0 0.0
        %414 = vmatpush1.msra.mxu0 0.0
        %415 = vmatprep.subr.mxu0 0.0
        %416 = vmatpush1.msra.mxu0 0.0
        %417 = vmatprep.subr.mxu0 0.0
        %418 = vmatpush1.msra.mxu0 0.0
        %419 = vmatprep.subr.mxu0 0.0
        %420 = vmatpush1.msra.mxu0 0.0
        %421 = vmatprep.mubr.f32.mxu0 0.0
        %v422 = vand.u32 %v350, 4294901760
        %v423 = vsub.f32 %v350, %v422
        %v424 = vand.u32 %v423, 4294901760
        %v425 = vsub.f32 %v423, %v424
        %v426 = vand.u32 %v425, 4294901760
        %427 = vmatmul.mubr.f32.gmra.mrb[0].mxu0 %v426
        %v428 = vpop.f32.mrb[0].mxu0
        %v429 = vadd.f32 0.0, %v428
        %v430 = vpop.f32.mrb[0].mxu0
        %431 = vmatprep.mubr.f32.mxu0 0.0
        %v432 = vand.u32 %v353, 4294901760
        %v433 = vsub.f32 %v353, %v432
        %v434 = vand.u32 %v433, 4294901760
        %v435 = vsub.f32 %v433, %v434
        %v436 = vand.u32 %v435, 4294901760
        %437 = vmatmul.mubr.f32.gmra.mrb[0].mxu0 %v436
        %v438 = vpop.f32.mrb[0].mxu0
        %v439 = vadd.f32 0.0, %v438
        %v440 = vpop.f32.mrb[0].mxu0
        %441 = vdwg.mxu0
        %442 = vmatprep.subr.mxu0 0.0
        %v443 = vand.u32 %v344, 4294901760
        %v444 = vsub.f32 %v344, %v443
        %v445 = vand.u32 %v444, 4294901760
        %v446 = vsub.f32 %v444, %v445
        %v447 = vand.u32 %v446, 4294901760
        %448 = vmatpush1.msra.mxu0 %v447
        %449 = vmatprep.subr.mxu0 0.0
        %v450 = vand.u32 %v345, 4294901760
        %v451 = vsub.f32 %v345, %v450
        %v452 = vand.u32 %v451, 4294901760
        %v453 = vsub.f32 %v451, %v452
        %v454 = vand.u32 %v453, 4294901760
        %455 = vmatpush1.msra.mxu0 %v454
        %456 = vmatprep.subr.mxu0 0.0
        %457 = vmatpush1.msra.mxu0 0.0
        %458 = vmatprep.subr.mxu0 0.0
        %459 = vmatpush1.msra.mxu0 0.0
        %460 = vmatprep.subr.mxu0 0.0
        %461 = vmatpush1.msra.mxu0 0.0
        %462 = vmatprep.subr.mxu0 0.0
        %463 = vmatpush1.msra.mxu0 0.0
        %464 = vmatprep.subr.mxu0 0.0
        %465 = vmatpush1.msra.mxu0 0.0
        %466 = vmatprep.subr.mxu0 0.0
        %467 = vmatpush1.msra.mxu0 0.0
        %468 = vmatprep.subr.mxu0 0.0
        %469 = vmatpush1.msra.mxu0 0.0
        %470 = vmatprep.subr.mxu0 0.0
        %471 = vmatpush1.msra.mxu0 0.0
        %472 = vmatprep.subr.mxu0 0.0
        %473 = vmatpush1.msra.mxu0 0.0
        %474 = vmatprep.subr.mxu0 0.0
        %475 = vmatpush1.msra.mxu0 0.0
        %476 = vmatprep.subr.mxu0 0.0
        %477 = vmatpush1.msra.mxu0 0.0
        %478 = vmatprep.subr.mxu0 0.0
        %479 = vmatpush1.msra.mxu0 0.0
        %480 = vmatprep.subr.mxu0 0.0
        %481 = vmatpush1.msra.mxu0 0.0
        %482 = vmatprep.subr.mxu0 0.0
        %483 = vmatpush1.msra.mxu0 0.0
        %484 = vmatprep.subr.mxu0 0.0
        %485 = vmatpush1.msra.mxu0 0.0
        %486 = vmatprep.subr.mxu0 0.0
        %487 = vmatpush1.msra.mxu0 0.0
        %488 = vmatprep.subr.mxu0 0.0
        %489 = vmatpush1.msra.mxu0 0.0
        %490 = vmatprep.subr.mxu0 0.0
        %491 = vmatpush1.msra.mxu0 0.0
        %492 = vmatprep.subr.mxu0 0.0
        %493 = vmatpush1.msra.mxu0 0.0
        %494 = vmatprep.subr.mxu0 0.0
        %495 = vmatpush1.msra.mxu0 0.0
        %496 = vmatprep.subr.mxu0 0.0
        %497 = vmatpush1.msra.mxu0 0.0
        %498 = vmatprep.subr.mxu0 0.0
        %499 = vmatpush1.msra.mxu0 0.0
        %500 = vmatprep.subr.mxu0 0.0
        %501 = vmatpush1.msra.mxu0 0.0
        %502 = vmatprep.subr.mxu0 0.0
        %503 = vmatpush1.msra.mxu0 0.0
        %504 = vmatprep.subr.mxu0 0.0
        %505 = vmatpush1.msra.mxu0 0.0
        %506 = vmatprep.subr.mxu0 0.0
        %507 = vmatpush1.msra.mxu0 0.0
        %508 = vmatprep.subr.mxu0 0.0
        %509 = vmatpush1.msra.mxu0 0.0
        %510 = vmatprep.subr.mxu0 0.0
        %511 = vmatpush1.msra.mxu0 0.0
        %512 = vmatprep.subr.mxu0 0.0
        %513 = vmatpush1.msra.mxu0 0.0
        %514 = vmatprep.subr.mxu0 0.0
        %515 = vmatpush1.msra.mxu0 0.0
        %516 = vmatprep.mubr.f32.mxu0 0.0
        %v517 = vand.u32 %v350, 4294901760
        %518 = vmatmul.mubr.f32.gmra.mrb[0].mxu0 %v517
        %v519 = vpop.f32.mrb[0].mxu0
        %v520 = vadd.f32 %v429, %v519
        %v521 = vpop.f32.mrb[0].mxu0
        %522 = vmatprep.mubr.f32.mxu0 0.0
        %v523 = vand.u32 %v353, 4294901760
        %524 = vmatmul.mubr.f32.gmra.mrb[0].mxu0 %v523
        %v525 = vpop.f32.mrb[0].mxu0
        %v526 = vadd.f32 %v439, %v525
        %v527 = vpop.f32.mrb[0].mxu0
        %528 = vdwg.mxu0
        %529 = vmatprep.subr.mxu0 0.0
        %v530 = vand.u32 %v344, 4294901760
        %v531 = vsub.f32 %v344, %v530
        %532 = vmatpush1.msra.mxu0 %v531
        %533 = vmatprep.subr.mxu0 0.0
        %v534 = vand.u32 %v345, 4294901760
        %v535 = vsub.f32 %v345, %v534
        %536 = vmatpush1.msra.mxu0 %v535
        %537 = vmatprep.subr.mxu0 0.0
        %538 = vmatpush1.msra.mxu0 0.0
        %539 = vmatprep.subr.mxu0 0.0
        %540 = vmatpush1.msra.mxu0 0.0
        %541 = vmatprep.subr.mxu0 0.0
        %542 = vmatpush1.msra.mxu0 0.0
        %543 = vmatprep.subr.mxu0 0.0
        %544 = vmatpush1.msra.mxu0 0.0
        %545 = vmatprep.subr.mxu0 0.0
        %546 = vmatpush1.msra.mxu0 0.0
        %547 = vmatprep.subr.mxu0 0.0
        %548 = vmatpush1.msra.mxu0 0.0
        %549 = vmatprep.subr.mxu0 0.0
        %550 = vmatpush1.msra.mxu0 0.0
        %551 = vmatprep.subr.mxu0 0.0
        %552 = vmatpush1.msra.mxu0 0.0
        %553 = vmatprep.subr.mxu0 0.0
        %554 = vmatpush1.msra.mxu0 0.0
        %555 = vmatprep.subr.mxu0 0.0
        %556 = vmatpush1.msra.mxu0 0.0
        %557 = vmatprep.subr.mxu0 0.0
        %558 = vmatpush1.msra.mxu0 0.0
        %559 = vmatprep.subr.mxu0 0.0
        %560 = vmatpush1.msra.mxu0 0.0
        %561 = vmatprep.subr.mxu0 0.0
        %562 = vmatpush1.msra.mxu0 0.0
        %563 = vmatprep.subr.mxu0 0.0
        %564 = vmatpush1.msra.mxu0 0.0
        %565 = vmatprep.subr.mxu0 0.0
        %566 = vmatpush1.msra.mxu0 0.0
        %567 = vmatprep.subr.mxu0 0.0
        %568 = vmatpush1.msra.mxu0 0.0
        %569 = vmatprep.subr.mxu0 0.0
        %570 = vmatpush1.msra.mxu0 0.0
        %571 = vmatprep.subr.mxu0 0.0
        %572 = vmatpush1.msra.mxu0 0.0
        %573 = vmatprep.subr.mxu0 0.0
        %574 = vmatpush1.msra.mxu0 0.0
        %575 = vmatprep.subr.mxu0 0.0
        %576 = vmatpush1.msra.mxu0 0.0
        %577 = vmatprep.subr.mxu0 0.0
        %578 = vmatpush1.msra.mxu0 0.0
        %579 = vmatprep.subr.mxu0 0.0
        %580 = vmatpush1.msra.mxu0 0.0
        %581 = vmatprep.subr.mxu0 0.0
        %582 = vmatpush1.msra.mxu0 0.0
        %583 = vmatprep.subr.mxu0 0.0
        %584 = vmatpush1.msra.mxu0 0.0
        %585 = vmatprep.subr.mxu0 0.0
        %586 = vmatpush1.msra.mxu0 0.0
        %587 = vmatprep.subr.mxu0 0.0
        %588 = vmatpush1.msra.mxu0 0.0
        %589 = vmatprep.subr.mxu0 0.0
        %590 = vmatpush1.msra.mxu0 0.0
        %591 = vmatprep.subr.mxu0 0.0
        %592 = vmatpush1.msra.mxu0 0.0
        %593 = vmatprep.subr.mxu0 0.0
        %594 = vmatpush1.msra.mxu0 0.0
        %595 = vmatprep.subr.mxu0 0.0
        %596 = vmatpush1.msra.mxu0 0.0
        %597 = vmatprep.mubr.f32.mxu0 0.0
        %v598 = vand.u32 %v350, 4294901760
        %v599 = vsub.f32 %v350, %v598
        %600 = vmatmul.mubr.f32.gmra.mrb[0].mxu0 %v599
        %v601 = vpop.f32.mrb[0].mxu0
        %v602 = vadd.f32 %v520, %v601
        %v603 = vpop.f32.mrb[0].mxu0
        %604 = vmatprep.mubr.f32.mxu0 0.0
        %v605 = vand.u32 %v353, 4294901760
        %v606 = vsub.f32 %v353, %v605
        %607 = vmatmul.mubr.f32.gmra.mrb[0].mxu0 %v606
        %v608 = vpop.f32.mrb[0].mxu0
        %v609 = vadd.f32 %v526, %v608
        %v610 = vpop.f32.mrb[0].mxu0
        %611 = vdwg.mxu0
        %612 = vmatprep.subr.mxu0 0.0
        %v613 = vand.u32 %v344, 4294901760
        %614 = vmatpush1.msra.mxu0 %v613
        %615 = vmatprep.subr.mxu0 0.0
        %v616 = vand.u32 %v345, 4294901760
        %617 = vmatpush1.msra.mxu0 %v616
        %618 = vmatprep.subr.mxu0 0.0
        %619 = vmatpush1.msra.mxu0 0.0
        %620 = vmatprep.subr.mxu0 0.0
        %621 = vmatpush1.msra.mxu0 0.0
        %622 = vmatprep.subr.mxu0 0.0
        %623 = vmatpush1.msra.mxu0 0.0
        %624 = vmatprep.subr.mxu0 0.0
        %625 = vmatpush1.msra.mxu0 0.0
        %626 = vmatprep.subr.mxu0 0.0
        %627 = vmatpush1.msra.mxu0 0.0
        %628 = vmatprep.subr.mxu0 0.0
        %629 = vmatpush1.msra.mxu0 0.0
        %630 = vmatprep.subr.mxu0 0.0
        %631 = vmatpush1.msra.mxu0 0.0
        %632 = vmatprep.subr.mxu0 0.0
        %633 = vmatpush1.msra.mxu0 0.0
        %634 = vmatprep.subr.mxu0 0.0
        %635 = vmatpush1.msra.mxu0 0.0
        %636 = vmatprep.subr.mxu0 0.0
        %637 = vmatpush1.msra.mxu0 0.0
        %638 = vmatprep.subr.mxu0 0.0
        %639 = vmatpush1.msra.mxu0 0.0
        %640 = vmatprep.subr.mxu0 0.0
        %641 = vmatpush1.msra.mxu0 0.0
        %642 = vmatprep.subr.mxu0 0.0
        %643 = vmatpush1.msra.mxu0 0.0
        %644 = vmatprep.subr.mxu0 0.0
        %645 = vmatpush1.msra.mxu0 0.0
        %646 = vmatprep.subr.mxu0 0.0
        %647 = vmatpush1.msra.mxu0 0.0
        %648 = vmatprep.subr.mxu0 0.0
        %649 = vmatpush1.msra.mxu0 0.0
        %650 = vmatprep.subr.mxu0 0.0
        %651 = vmatpush1.msra.mxu0 0.0
        %652 = vmatprep.subr.mxu0 0.0
        %653 = vmatpush1.msra.mxu0 0.0
        %654 = vmatprep.subr.mxu0 0.0
        %655 = vmatpush1.msra.mxu0 0.0
        %656 = vmatprep.subr.mxu0 0.0
        %657 = vmatpush1.msra.mxu0 0.0
        %658 = vmatprep.subr.mxu0 0.0
        %659 = vmatpush1.msra.mxu0 0.0
        %660 = vmatprep.subr.mxu0 0.0
        %661 = vmatpush1.msra.mxu0 0.0
        %662 = vmatprep.subr.mxu0 0.0
        %663 = vmatpush1.msra.mxu0 0.0
        %664 = vmatprep.subr.mxu0 0.0
        %665 = vmatpush1.msra.mxu0 0.0
        %666 = vmatprep.subr.mxu0 0.0
        %667 = vmatpush1.msra.mxu0 0.0
        %668 = vmatprep.subr.mxu0 0.0
        %669 = vmatpush1.msra.mxu0 0.0
        %670 = vmatprep.subr.mxu0 0.0
        %671 = vmatpush1.msra.mxu0 0.0
        %672 = vmatprep.subr.mxu0 0.0
        %673 = vmatpush1.msra.mxu0 0.0
        %674 = vmatprep.subr.mxu0 0.0
        %675 = vmatpush1.msra.mxu0 0.0
        %676 = vmatprep.subr.mxu0 0.0
        %677 = vmatpush1.msra.mxu0 0.0
        %678 = vmatprep.mubr.f32.mxu0 0.0
        %v679 = vand.u32 %v350, 4294901760
        %v680 = vsub.f32 %v350, %v679
        %v681 = vand.u32 %v680, 4294901760
        %682 = vmatmul.mubr.f32.gmra.mrb[0].mxu0 %v681
        %v683 = vpop.f32.mrb[0].mxu0
        %v684 = vadd.f32 %v602, %v683
        %v685 = vpop.f32.mrb[0].mxu0
        %686 = vmatprep.mubr.f32.mxu0 0.0
        %v687 = vand.u32 %v353, 4294901760
        %v688 = vsub.f32 %v353, %v687
        %v689 = vand.u32 %v688, 4294901760
        %690 = vmatmul.mubr.f32.gmra.mrb[0].mxu0 %v689
        %v691 = vpop.f32.mrb[0].mxu0
        %v692 = vadd.f32 %v609, %v691
        %v693 = vpop.f32.mrb[0].mxu0
        %694 = vdwg.mxu0
        %695 = vmatprep.subr.mxu0 0.0
        %v696 = vand.u32 %v344, 4294901760
        %v697 = vsub.f32 %v344, %v696
        %v698 = vand.u32 %v697, 4294901760
        %699 = vmatpush1.msra.mxu0 %v698
        %700 = vmatprep.subr.mxu0 0.0
        %v701 = vand.u32 %v345, 4294901760
        %v702 = vsub.f32 %v345, %v701
        %v703 = vand.u32 %v702, 4294901760
        %704 = vmatpush1.msra.mxu0 %v703
        %705 = vmatprep.subr.mxu0 0.0
        %706 = vmatpush1.msra.mxu0 0.0
        %707 = vmatprep.subr.mxu0 0.0
        %708 = vmatpush1.msra.mxu0 0.0
        %709 = vmatprep.subr.mxu0 0.0
        %710 = vmatpush1.msra.mxu0 0.0
        %711 = vmatprep.subr.mxu0 0.0
        %712 = vmatpush1.msra.mxu0 0.0
        %713 = vmatprep.subr.mxu0 0.0
        %714 = vmatpush1.msra.mxu0 0.0
        %715 = vmatprep.subr.mxu0 0.0
        %716 = vmatpush1.msra.mxu0 0.0
        %717 = vmatprep.subr.mxu0 0.0
        %718 = vmatpush1.msra.mxu0 0.0
        %719 = vmatprep.subr.mxu0 0.0
        %720 = vmatpush1.msra.mxu0 0.0
        %721 = vmatprep.subr.mxu0 0.0
        %722 = vmatpush1.msra.mxu0 0.0
        %723 = vmatprep.subr.mxu0 0.0
        %724 = vmatpush1.msra.mxu0 0.0
        %725 = vmatprep.subr.mxu0 0.0
        %726 = vmatpush1.msra.mxu0 0.0
        %727 = vmatprep.subr.mxu0 0.0
        %728 = vmatpush1.msra.mxu0 0.0
        %729 = vmatprep.subr.mxu0 0.0
        %730 = vmatpush1.msra.mxu0 0.0
        %731 = vmatprep.subr.mxu0 0.0
        %732 = vmatpush1.msra.mxu0 0.0
        %733 = vmatprep.subr.mxu0 0.0
        %734 = vmatpush1.msra.mxu0 0.0
        %735 = vmatprep.subr.mxu0 0.0
        %736 = vmatpush1.msra.mxu0 0.0
        %737 = vmatprep.subr.mxu0 0.0
        %738 = vmatpush1.msra.mxu0 0.0
        %739 = vmatprep.subr.mxu0 0.0
        %740 = vmatpush1.msra.mxu0 0.0
        %741 = vmatprep.subr.mxu0 0.0
        %742 = vmatpush1.msra.mxu0 0.0
        %743 = vmatprep.subr.mxu0 0.0
        %744 = vmatpush1.msra.mxu0 0.0
        %745 = vmatprep.subr.mxu0 0.0
        %746 = vmatpush1.msra.mxu0 0.0
        %747 = vmatprep.subr.mxu0 0.0
        %748 = vmatpush1.msra.mxu0 0.0
        %749 = vmatprep.subr.mxu0 0.0
        %750 = vmatpush1.msra.mxu0 0.0
        %751 = vmatprep.subr.mxu0 0.0
        %752 = vmatpush1.msra.mxu0 0.0
        %753 = vmatprep.subr.mxu0 0.0
        %754 = vmatpush1.msra.mxu0 0.0
        %755 = vmatprep.subr.mxu0 0.0
        %756 = vmatpush1.msra.mxu0 0.0
        %757 = vmatprep.subr.mxu0 0.0
        %758 = vmatpush1.msra.mxu0 0.0
        %759 = vmatprep.subr.mxu0 0.0
        %760 = vmatpush1.msra.mxu0 0.0
        %761 = vmatprep.subr.mxu0 0.0
        %762 = vmatpush1.msra.mxu0 0.0
        %763 = vmatprep.subr.mxu0 0.0
        %764 = vmatpush1.msra.mxu0 0.0
        %765 = vmatprep.mubr.f32.mxu0 0.0
        %v766 = vand.u32 %v350, 4294901760
        %767 = vmatmul.mubr.f32.gmra.mrb[0].mxu0 %v766
        %v768 = vpop.f32.mrb[0].mxu0
        %v769 = vadd.f32 %v684, %v768
        %v770 = vpop.f32.mrb[0].mxu0
        %771 = vmatprep.mubr.f32.mxu0 0.0
        %v772 = vand.u32 %v353, 4294901760
        %773 = vmatmul.mubr.f32.gmra.mrb[0].mxu0 %v772
        %v774 = vpop.f32.mrb[0].mxu0
        %v775 = vadd.f32 %v692, %v774
        %v776 = vpop.f32.mrb[0].mxu0
        %777 = vdwg.mxu0
        %778 = vmatprep.subr.mxu0 0.0
        %v779 = vand.u32 %v344, 4294901760
        %780 = vmatpush1.msra.mxu0 %v779
        %781 = vmatprep.subr.mxu0 0.0
        %v782 = vand.u32 %v345, 4294901760
        %783 = vmatpush1.msra.mxu0 %v782
        %784 = vmatprep.subr.mxu0 0.0
        %785 = vmatpush1.msra.mxu0 0.0
        %786 = vmatprep.subr.mxu0 0.0
        %787 = vmatpush1.msra.mxu0 0.0
        %788 = vmatprep.subr.mxu0 0.0
        %789 = vmatpush1.msra.mxu0 0.0
        %790 = vmatprep.subr.mxu0 0.0
        %791 = vmatpush1.msra.mxu0 0.0
        %792 = vmatprep.subr.mxu0 0.0
        %793 = vmatpush1.msra.mxu0 0.0
        %794 = vmatprep.subr.mxu0 0.0
        %795 = vmatpush1.msra.mxu0 0.0
        %796 = vmatprep.subr.mxu0 0.0
        %797 = vmatpush1.msra.mxu0 0.0
        %798 = vmatprep.subr.mxu0 0.0
        %799 = vmatpush1.msra.mxu0 0.0
        %800 = vmatprep.subr.mxu0 0.0
        %801 = vmatpush1.msra.mxu0 0.0
        %802 = vmatprep.subr.mxu0 0.0
        %803 = vmatpush1.msra.mxu0 0.0
        %804 = vmatprep.subr.mxu0 0.0
        %805 = vmatpush1.msra.mxu0 0.0
        %806 = vmatprep.subr.mxu0 0.0
        %807 = vmatpush1.msra.mxu0 0.0
        %808 = vmatprep.subr.mxu0 0.0
        %809 = vmatpush1.msra.mxu0 0.0
        %810 = vmatprep.subr.mxu0 0.0
        %811 = vmatpush1.msra.mxu0 0.0
        %812 = vmatprep.subr.mxu0 0.0
        %813 = vmatpush1.msra.mxu0 0.0
        %814 = vmatprep.subr.mxu0 0.0
        %815 = vmatpush1.msra.mxu0 0.0
        %816 = vmatprep.subr.mxu0 0.0
        %817 = vmatpush1.msra.mxu0 0.0
        %818 = vmatprep.subr.mxu0 0.0
        %819 = vmatpush1.msra.mxu0 0.0
        %820 = vmatprep.subr.mxu0 0.0
        %821 = vmatpush1.msra.mxu0 0.0
        %822 = vmatprep.subr.mxu0 0.0
        %823 = vmatpush1.msra.mxu0 0.0
        %824 = vmatprep.subr.mxu0 0.0
        %825 = vmatpush1.msra.mxu0 0.0
        %826 = vmatprep.subr.mxu0 0.0
        %827 = vmatpush1.msra.mxu0 0.0
        %828 = vmatprep.subr.mxu0 0.0
        %829 = vmatpush1.msra.mxu0 0.0
        %830 = vmatprep.subr.mxu0 0.0
        %831 = vmatpush1.msra.mxu0 0.0
        %832 = vmatprep.subr.mxu0 0.0
        %833 = vmatpush1.msra.mxu0 0.0
        %834 = vmatprep.subr.mxu0 0.0
        %835 = vmatpush1.msra.mxu0 0.0
        %836 = vmatprep.subr.mxu0 0.0
        %837 = vmatpush1.msra.mxu0 0.0
        %838 = vmatprep.subr.mxu0 0.0
        %839 = vmatpush1.msra.mxu0 0.0
        %840 = vmatprep.subr.mxu0 0.0
        %841 = vmatpush1.msra.mxu0 0.0
        %842 = vmatprep.subr.mxu0 0.0
        %843 = vmatpush1.msra.mxu0 0.0
        %844 = vmatprep.mubr.f32.mxu0 0.0
        %v845 = vand.u32 %v350, 4294901760
        %846 = vmatmul.mubr.f32.gmra.mrb[0].mxu0 %v845
        %v847 = vpop.f32.mrb[0].mxu0
        %v848 = vadd.f32 %v769, %v847
        %v849 = vpop.f32.mrb[0].mxu0
        %850 = vmatprep.mubr.f32.mxu0 0.0
        %v851 = vand.u32 %v353, 4294901760
        %852 = vmatmul.mubr.f32.gmra.mrb[0].mxu0 %v851
        %v853 = vpop.f32.mrb[0].mxu0
        %v854 = vadd.f32 %v775, %v853
        %v855 = vpop.f32.mrb[0].mxu0
        %856 = vdwg.mxu0
        %v858 = vsel %vm348, %v342, 0
        %v861 = vsel %vm348, %v343, 0
        %863 = vmatprep.subr.mxu0 0.0
        %v864 = vand.u32 %v344, 4294901760
        %865 = vmatpush1.msra.mxu0 %v864
        %866 = vmatprep.subr.mxu0 0.0
        %v867 = vand.u32 %v345, 4294901760
        %868 = vmatpush1.msra.mxu0 %v867
        %869 = vmatprep.subr.mxu0 0.0
        %870 = vmatpush1.msra.mxu0 0.0
        %871 = vmatprep.subr.mxu0 0.0
        %872 = vmatpush1.msra.mxu0 0.0
        %873 = vmatprep.subr.mxu0 0.0
        %874 = vmatpush1.msra.mxu0 0.0
        %875 = vmatprep.subr.mxu0 0.0
        %876 = vmatpush1.msra.mxu0 0.0
        %877 = vmatprep.subr.mxu0 0.0
        %878 = vmatpush1.msra.mxu0 0.0
        %879 = vmatprep.subr.mxu0 0.0
        %880 = vmatpush1.msra.mxu0 0.0
        %881 = vmatprep.subr.mxu0 0.0
        %882 = vmatpush1.msra.mxu0 0.0
        %883 = vmatprep.subr.mxu0 0.0
        %884 = vmatpush1.msra.mxu0 0.0
        %885 = vmatprep.subr.mxu0 0.0
        %886 = vmatpush1.msra.mxu0 0.0
        %887 = vmatprep.subr.mxu0 0.0
        %888 = vmatpush1.msra.mxu0 0.0
        %889 = vmatprep.subr.mxu0 0.0
        %890 = vmatpush1.msra.mxu0 0.0
        %891 = vmatprep.subr.mxu0 0.0
        %892 = vmatpush1.msra.mxu0 0.0
        %893 = vmatprep.subr.mxu0 0.0
        %894 = vmatpush1.msra.mxu0 0.0
        %895 = vmatprep.subr.mxu0 0.0
        %896 = vmatpush1.msra.mxu0 0.0
        %897 = vmatprep.subr.mxu0 0.0
        %898 = vmatpush1.msra.mxu0 0.0
        %899 = vmatprep.subr.mxu0 0.0
        %900 = vmatpush1.msra.mxu0 0.0
        %901 = vmatprep.subr.mxu0 0.0
        %902 = vmatpush1.msra.mxu0 0.0
        %903 = vmatprep.subr.mxu0 0.0
        %904 = vmatpush1.msra.mxu0 0.0
        %905 = vmatprep.subr.mxu0 0.0
        %906 = vmatpush1.msra.mxu0 0.0
        %907 = vmatprep.subr.mxu0 0.0
        %908 = vmatpush1.msra.mxu0 0.0
        %909 = vmatprep.subr.mxu0 0.0
        %910 = vmatpush1.msra.mxu0 0.0
        %911 = vmatprep.subr.mxu0 0.0
        %912 = vmatpush1.msra.mxu0 0.0
        %913 = vmatprep.subr.mxu0 0.0
        %914 = vmatpush1.msra.mxu0 0.0
        %915 = vmatprep.subr.mxu0 0.0
        %916 = vmatpush1.msra.mxu0 0.0
        %917 = vmatprep.subr.mxu0 0.0
        %918 = vmatpush1.msra.mxu0 0.0
        %919 = vmatprep.subr.mxu0 0.0
        %920 = vmatpush1.msra.mxu0 0.0
        %921 = vmatprep.subr.mxu0 0.0
        %922 = vmatpush1.msra.mxu0 0.0
        %923 = vmatprep.subr.mxu0 0.0
        %924 = vmatpush1.msra.mxu0 0.0
        %925 = vmatprep.subr.mxu0 0.0
        %926 = vmatpush1.msra.mxu0 0.0
        %927 = vmatprep.subr.mxu0 0.0
        %928 = vmatpush1.msra.mxu0 0.0
        %929 = vmatprep.mubr.f32.mxu0 0.0
        %v930 = vand.u32 %v858, 4294901760
        %v931 = vsub.f32 %v858, %v930
        %v932 = vand.u32 %v931, 4294901760
        %v933 = vsub.f32 %v931, %v932
        %v934 = vand.u32 %v933, 4294901760
        %935 = vmatmul.mubr.f32.gmra.mrb[0].mxu0 %v934
        %v936 = vpop.f32.mrb[0].mxu0
        %v937 = vadd.f32 0.0, %v936
        %v938 = vpop.f32.mrb[0].mxu0
        %939 = vmatprep.mubr.f32.mxu0 0.0
        %v940 = vand.u32 %v861, 4294901760
        %v941 = vsub.f32 %v861, %v940
        %v942 = vand.u32 %v941, 4294901760
        %v943 = vsub.f32 %v941, %v942
        %v944 = vand.u32 %v943, 4294901760
        %945 = vmatmul.mubr.f32.gmra.mrb[0].mxu0 %v944
        %v946 = vpop.f32.mrb[0].mxu0
        %v947 = vadd.f32 0.0, %v946
        %v948 = vpop.f32.mrb[0].mxu0
        %949 = vdwg.mxu0
        %950 = vmatprep.subr.mxu0 0.0
        %v951 = vand.u32 %v344, 4294901760
        %v952 = vsub.f32 %v344, %v951
        %v953 = vand.u32 %v952, 4294901760
        %v954 = vsub.f32 %v952, %v953
        %v955 = vand.u32 %v954, 4294901760
        %956 = vmatpush1.msra.mxu0 %v955
        %957 = vmatprep.subr.mxu0 0.0
        %v958 = vand.u32 %v345, 4294901760
        %v959 = vsub.f32 %v345, %v958
        %v960 = vand.u32 %v959, 4294901760
        %v961 = vsub.f32 %v959, %v960
        %v962 = vand.u32 %v961, 4294901760
        %963 = vmatpush1.msra.mxu0 %v962
        %964 = vmatprep.subr.mxu0 0.0
        %965 = vmatpush1.msra.mxu0 0.0
        %966 = vmatprep.subr.mxu0 0.0
        %967 = vmatpush1.msra.mxu0 0.0
        %968 = vmatprep.subr.mxu0 0.0
        %969 = vmatpush1.msra.mxu0 0.0
        %970 = vmatprep.subr.mxu0 0.0
        %971 = vmatpush1.msra.mxu0 0.0
        %972 = vmatprep.subr.mxu0 0.0
        %973 = vmatpush1.msra.mxu0 0.0
        %974 = vmatprep.subr.mxu0 0.0
        %975 = vmatpush1.msra.mxu0 0.0
        %976 = vmatprep.subr.mxu0 0.0
        %977 = vmatpush1.msra.mxu0 0.0
        %978 = vmatprep.subr.mxu0 0.0
        %979 = vmatpush1.msra.mxu0 0.0
        %980 = vmatprep.subr.mxu0 0.0
        %981 = vmatpush1.msra.mxu0 0.0
        %982 = vmatprep.subr.mxu0 0.0
        %983 = vmatpush1.msra.mxu0 0.0
        %984 = vmatprep.subr.mxu0 0.0
        %985 = vmatpush1.msra.mxu0 0.0
        %986 = vmatprep.subr.mxu0 0.0
        %987 = vmatpush1.msra.mxu0 0.0
        %988 = vmatprep.subr.mxu0 0.0
        %989 = vmatpush1.msra.mxu0 0.0
        %990 = vmatprep.subr.mxu0 0.0
        %991 = vmatpush1.msra.mxu0 0.0
        %992 = vmatprep.subr.mxu0 0.0
        %993 = vmatpush1.msra.mxu0 0.0
        %994 = vmatprep.subr.mxu0 0.0
        %995 = vmatpush1.msra.mxu0 0.0
        %996 = vmatprep.subr.mxu0 0.0
        %997 = vmatpush1.msra.mxu0 0.0
        %998 = vmatprep.subr.mxu0 0.0
        %999 = vmatpush1.msra.mxu0 0.0
        %1000 = vmatprep.subr.mxu0 0.0
        %1001 = vmatpush1.msra.mxu0 0.0
        %1002 = vmatprep.subr.mxu0 0.0
        %1003 = vmatpush1.msra.mxu0 0.0
        %1004 = vmatprep.subr.mxu0 0.0
        %1005 = vmatpush1.msra.mxu0 0.0
        %1006 = vmatprep.subr.mxu0 0.0
        %1007 = vmatpush1.msra.mxu0 0.0
        %1008 = vmatprep.subr.mxu0 0.0
        %1009 = vmatpush1.msra.mxu0 0.0
        %1010 = vmatprep.subr.mxu0 0.0
        %1011 = vmatpush1.msra.mxu0 0.0
        %1012 = vmatprep.subr.mxu0 0.0
        %1013 = vmatpush1.msra.mxu0 0.0
        %1014 = vmatprep.subr.mxu0 0.0
        %1015 = vmatpush1.msra.mxu0 0.0
        %1016 = vmatprep.subr.mxu0 0.0
        %1017 = vmatpush1.msra.mxu0 0.0
        %1018 = vmatprep.subr.mxu0 0.0
        %1019 = vmatpush1.msra.mxu0 0.0
        %1020 = vmatprep.subr.mxu0 0.0
        %1021 = vmatpush1.msra.mxu0 0.0
        %1022 = vmatprep.subr.mxu0 0.0
        %1023 = vmatpush1.msra.mxu0 0.0
        %1024 = vmatprep.mubr.f32.mxu0 0.0
        %v1025 = vand.u32 %v858, 4294901760
        %1026 = vmatmul.mubr.f32.gmra.mrb[0].mxu0 %v1025
        %v1027 = vpop.f32.mrb[0].mxu0
        %v1028 = vadd.f32 %v937, %v1027
        %v1029 = vpop.f32.mrb[0].mxu0
        %1030 = vmatprep.mubr.f32.mxu0 0.0
        %v1031 = vand.u32 %v861, 4294901760
        %1032 = vmatmul.mubr.f32.gmra.mrb[0].mxu0 %v1031
        %v1033 = vpop.f32.mrb[0].mxu0
        %v1034 = vadd.f32 %v947, %v1033
        %v1035 = vpop.f32.mrb[0].mxu0
        %1036 = vdwg.mxu0
        %1037 = vmatprep.subr.mxu0 0.0
        %v1038 = vand.u32 %v344, 4294901760
        %v1039 = vsub.f32 %v344, %v1038
        %1040 = vmatpush1.msra.mxu0 %v1039
        %1041 = vmatprep.subr.mxu0 0.0
        %v1042 = vand.u32 %v345, 4294901760
        %v1043 = vsub.f32 %v345, %v1042
        %1044 = vmatpush1.msra.mxu0 %v1043
        %1045 = vmatprep.subr.mxu0 0.0
        %1046 = vmatpush1.msra.mxu0 0.0
        %1047 = vmatprep.subr.mxu0 0.0
        %1048 = vmatpush1.msra.mxu0 0.0
        %1049 = vmatprep.subr.mxu0 0.0
        %1050 = vmatpush1.msra.mxu0 0.0
        %1051 = vmatprep.subr.mxu0 0.0
        %1052 = vmatpush1.msra.mxu0 0.0
        %1053 = vmatprep.subr.mxu0 0.0
        %1054 = vmatpush1.msra.mxu0 0.0
        %1055 = vmatprep.subr.mxu0 0.0
        %1056 = vmatpush1.msra.mxu0 0.0
        %1057 = vmatprep.subr.mxu0 0.0
        %1058 = vmatpush1.msra.mxu0 0.0
        %1059 = vmatprep.subr.mxu0 0.0
        %1060 = vmatpush1.msra.mxu0 0.0
        %1061 = vmatprep.subr.mxu0 0.0
        %1062 = vmatpush1.msra.mxu0 0.0
        %1063 = vmatprep.subr.mxu0 0.0
        %1064 = vmatpush1.msra.mxu0 0.0
        %1065 = vmatprep.subr.mxu0 0.0
        %1066 = vmatpush1.msra.mxu0 0.0
        %1067 = vmatprep.subr.mxu0 0.0
        %1068 = vmatpush1.msra.mxu0 0.0
        %1069 = vmatprep.subr.mxu0 0.0
        %1070 = vmatpush1.msra.mxu0 0.0
        %1071 = vmatprep.subr.mxu0 0.0
        %1072 = vmatpush1.msra.mxu0 0.0
        %1073 = vmatprep.subr.mxu0 0.0
        %1074 = vmatpush1.msra.mxu0 0.0
        %1075 = vmatprep.subr.mxu0 0.0
        %1076 = vmatpush1.msra.mxu0 0.0
        %1077 = vmatprep.subr.mxu0 0.0
        %1078 = vmatpush1.msra.mxu0 0.0
        %1079 = vmatprep.subr.mxu0 0.0
        %1080 = vmatpush1.msra.mxu0 0.0
        %1081 = vmatprep.subr.mxu0 0.0
        %1082 = vmatpush1.msra.mxu0 0.0
        %1083 = vmatprep.subr.mxu0 0.0
        %1084 = vmatpush1.msra.mxu0 0.0
        %1085 = vmatprep.subr.mxu0 0.0
        %1086 = vmatpush1.msra.mxu0 0.0
        %1087 = vmatprep.subr.mxu0 0.0
        %1088 = vmatpush1.msra.mxu0 0.0
        %1089 = vmatprep.subr.mxu0 0.0
        %1090 = vmatpush1.msra.mxu0 0.0
        %1091 = vmatprep.subr.mxu0 0.0
        %1092 = vmatpush1.msra.mxu0 0.0
        %1093 = vmatprep.subr.mxu0 0.0
        %1094 = vmatpush1.msra.mxu0 0.0
        %1095 = vmatprep.subr.mxu0 0.0
        %1096 = vmatpush1.msra.mxu0 0.0
        %1097 = vmatprep.subr.mxu0 0.0
        %1098 = vmatpush1.msra.mxu0 0.0
        %1099 = vmatprep.subr.mxu0 0.0
        %1100 = vmatpush1.msra.mxu0 0.0
        %1101 = vmatprep.subr.mxu0 0.0
        %1102 = vmatpush1.msra.mxu0 0.0
        %1103 = vmatprep.subr.mxu0 0.0
        %1104 = vmatpush1.msra.mxu0 0.0
        %1105 = vmatprep.mubr.f32.mxu0 0.0
        %v1106 = vand.u32 %v858, 4294901760
        %v1107 = vsub.f32 %v858, %v1106
        %1108 = vmatmul.mubr.f32.gmra.mrb[0].mxu0 %v1107
        %v1109 = vpop.f32.mrb[0].mxu0
        %v1110 = vadd.f32 %v1028, %v1109
        %v1111 = vpop.f32.mrb[0].mxu0
        %1112 = vmatprep.mubr.f32.mxu0 0.0
        %v1113 = vand.u32 %v861, 4294901760
        %v1114 = vsub.f32 %v861, %v1113
        %1115 = vmatmul.mubr.f32.gmra.mrb[0].mxu0 %v1114
        %v1116 = vpop.f32.mrb[0].mxu0
        %v1117 = vadd.f32 %v1034, %v1116
        %v1118 = vpop.f32.mrb[0].mxu0
        %1119 = vdwg.mxu0
        %1120 = vmatprep.subr.mxu0 0.0
        %v1121 = vand.u32 %v344, 4294901760
        %1122 = vmatpush1.msra.mxu0 %v1121
        %1123 = vmatprep.subr.mxu0 0.0
        %v1124 = vand.u32 %v345, 4294901760
        %1125 = vmatpush1.msra.mxu0 %v1124
        %1126 = vmatprep.subr.mxu0 0.0
        %1127 = vmatpush1.msra.mxu0 0.0
        %1128 = vmatprep.subr.mxu0 0.0
        %1129 = vmatpush1.msra.mxu0 0.0
        %1130 = vmatprep.subr.mxu0 0.0
        %1131 = vmatpush1.msra.mxu0 0.0
        %1132 = vmatprep.subr.mxu0 0.0
        %1133 = vmatpush1.msra.mxu0 0.0
        %1134 = vmatprep.subr.mxu0 0.0
        %1135 = vmatpush1.msra.mxu0 0.0
        %1136 = vmatprep.subr.mxu0 0.0
        %1137 = vmatpush1.msra.mxu0 0.0
        %1138 = vmatprep.subr.mxu0 0.0
        %1139 = vmatpush1.msra.mxu0 0.0
        %1140 = vmatprep.subr.mxu0 0.0
        %1141 = vmatpush1.msra.mxu0 0.0
        %1142 = vmatprep.subr.mxu0 0.0
        %1143 = vmatpush1.msra.mxu0 0.0
        %1144 = vmatprep.subr.mxu0 0.0
        %1145 = vmatpush1.msra.mxu0 0.0
        %1146 = vmatprep.subr.mxu0 0.0
        %1147 = vmatpush1.msra.mxu0 0.0
        %1148 = vmatprep.subr.mxu0 0.0
        %1149 = vmatpush1.msra.mxu0 0.0
        %1150 = vmatprep.subr.mxu0 0.0
        %1151 = vmatpush1.msra.mxu0 0.0
        %1152 = vmatprep.subr.mxu0 0.0
        %1153 = vmatpush1.msra.mxu0 0.0
        %1154 = vmatprep.subr.mxu0 0.0
        %1155 = vmatpush1.msra.mxu0 0.0
        %1156 = vmatprep.subr.mxu0 0.0
        %1157 = vmatpush1.msra.mxu0 0.0
        %1158 = vmatprep.subr.mxu0 0.0
        %1159 = vmatpush1.msra.mxu0 0.0
        %1160 = vmatprep.subr.mxu0 0.0
        %1161 = vmatpush1.msra.mxu0 0.0
        %1162 = vmatprep.subr.mxu0 0.0
        %1163 = vmatpush1.msra.mxu0 0.0
        %1164 = vmatprep.subr.mxu0 0.0
        %1165 = vmatpush1.msra.mxu0 0.0
        %1166 = vmatprep.subr.mxu0 0.0
        %1167 = vmatpush1.msra.mxu0 0.0
        %1168 = vmatprep.subr.mxu0 0.0
        %1169 = vmatpush1.msra.mxu0 0.0
        %1170 = vmatprep.subr.mxu0 0.0
        %1171 = vmatpush1.msra.mxu0 0.0
        %1172 = vmatprep.subr.mxu0 0.0
        %1173 = vmatpush1.msra.mxu0 0.0
        %1174 = vmatprep.subr.mxu0 0.0
        %1175 = vmatpush1.msra.mxu0 0.0
        %1176 = vmatprep.subr.mxu0 0.0
        %1177 = vmatpush1.msra.mxu0 0.0
        %1178 = vmatprep.subr.mxu0 0.0
        %1179 = vmatpush1.msra.mxu0 0.0
        %1180 = vmatprep.subr.mxu0 0.0
        %1181 = vmatpush1.msra.mxu0 0.0
        %1182 = vmatprep.subr.mxu0 0.0
        %1183 = vmatpush1.msra.mxu0 0.0
        %1184 = vmatprep.subr.mxu0 0.0
        %1185 = vmatpush1.msra.mxu0 0.0
        %1186 = vmatprep.mubr.f32.mxu0 0.0
        %v1187 = vand.u32 %v858, 4294901760
        %v1188 = vsub.f32 %v858, %v1187
        %v1189 = vand.u32 %v1188, 4294901760
        %1190 = vmatmul.mubr.f32.gmra.mrb[0].mxu0 %v1189
        %v1191 = vpop.f32.mrb[0].mxu0
        %v1192 = vadd.f32 %v1110, %v1191
        %v1193 = vpop.f32.mrb[0].mxu0
        %1194 = vmatprep.mubr.f32.mxu0 0.0
        %v1195 = vand.u32 %v861, 4294901760
        %v1196 = vsub.f32 %v861, %v1195
        %v1197 = vand.u32 %v1196, 4294901760
        %1198 = vmatmul.mubr.f32.gmra.mrb[0].mxu0 %v1197
        %v1199 = vpop.f32.mrb[0].mxu0
        %v1200 = vadd.f32 %v1117, %v1199
        %v1201 = vpop.f32.mrb[0].mxu0
        %1202 = vdwg.mxu0
        %1203 = vmatprep.subr.mxu0 0.0
        %v1204 = vand.u32 %v344, 4294901760
        %v1205 = vsub.f32 %v344, %v1204
        %v1206 = vand.u32 %v1205, 4294901760
        %1207 = vmatpush1.msra.mxu0 %v1206
        %1208 = vmatprep.subr.mxu0 0.0
        %v1209 = vand.u32 %v345, 4294901760
        %v1210 = vsub.f32 %v345, %v1209
        %v1211 = vand.u32 %v1210, 4294901760
        %1212 = vmatpush1.msra.mxu0 %v1211
        %1213 = vmatprep.subr.mxu0 0.0
        %1214 = vmatpush1.msra.mxu0 0.0
        %1215 = vmatprep.subr.mxu0 0.0
        %1216 = vmatpush1.msra.mxu0 0.0
        %1217 = vmatprep.subr.mxu0 0.0
        %1218 = vmatpush1.msra.mxu0 0.0
        %1219 = vmatprep.subr.mxu0 0.0
        %1220 = vmatpush1.msra.mxu0 0.0
        %1221 = vmatprep.subr.mxu0 0.0
        %1222 = vmatpush1.msra.mxu0 0.0
        %1223 = vmatprep.subr.mxu0 0.0
        %1224 = vmatpush1.msra.mxu0 0.0
        %1225 = vmatprep.subr.mxu0 0.0
        %1226 = vmatpush1.msra.mxu0 0.0
        %1227 = vmatprep.subr.mxu0 0.0
        %1228 = vmatpush1.msra.mxu0 0.0
        %1229 = vmatprep.subr.mxu0 0.0
        %1230 = vmatpush1.msra.mxu0 0.0
        %1231 = vmatprep.subr.mxu0 0.0
        %1232 = vmatpush1.msra.mxu0 0.0
        %1233 = vmatprep.subr.mxu0 0.0
        %1234 = vmatpush1.msra.mxu0 0.0
        %1235 = vmatprep.subr.mxu0 0.0
        %1236 = vmatpush1.msra.mxu0 0.0
        %1237 = vmatprep.subr.mxu0 0.0
        %1238 = vmatpush1.msra.mxu0 0.0
        %1239 = vmatprep.subr.mxu0 0.0
        %1240 = vmatpush1.msra.mxu0 0.0
        %1241 = vmatprep.subr.mxu0 0.0
        %1242 = vmatpush1.msra.mxu0 0.0
        %1243 = vmatprep.subr.mxu0 0.0
        %1244 = vmatpush1.msra.mxu0 0.0
        %1245 = vmatprep.subr.mxu0 0.0
        %1246 = vmatpush1.msra.mxu0 0.0
        %1247 = vmatprep.subr.mxu0 0.0
        %1248 = vmatpush1.msra.mxu0 0.0
        %1249 = vmatprep.subr.mxu0 0.0
        %1250 = vmatpush1.msra.mxu0 0.0
        %1251 = vmatprep.subr.mxu0 0.0
        %1252 = vmatpush1.msra.mxu0 0.0
        %1253 = vmatprep.subr.mxu0 0.0
        %1254 = vmatpush1.msra.mxu0 0.0
        %1255 = vmatprep.subr.mxu0 0.0
        %1256 = vmatpush1.msra.mxu0 0.0
        %1257 = vmatprep.subr.mxu0 0.0
        %1258 = vmatpush1.msra.mxu0 0.0
        %1259 = vmatprep.subr.mxu0 0.0
        %1260 = vmatpush1.msra.mxu0 0.0
        %1261 = vmatprep.subr.mxu0 0.0
        %1262 = vmatpush1.msra.mxu0 0.0
        %1263 = vmatprep.subr.mxu0 0.0
        %1264 = vmatpush1.msra.mxu0 0.0
        %1265 = vmatprep.subr.mxu0 0.0
        %1266 = vmatpush1.msra.mxu0 0.0
        %1267 = vmatprep.subr.mxu0 0.0
        %1268 = vmatpush1.msra.mxu0 0.0
        %1269 = vmatprep.subr.mxu0 0.0
        %1270 = vmatpush1.msra.mxu0 0.0
        %1271 = vmatprep.subr.mxu0 0.0
        %1272 = vmatpush1.msra.mxu0 0.0
        %1273 = vmatprep.mubr.f32.mxu0 0.0
        %v1274 = vand.u32 %v858, 4294901760
        %1275 = vmatmul.mubr.f32.gmra.mrb[0].mxu0 %v1274
        %v1276 = vpop.f32.mrb[0].mxu0
        %v1277 = vadd.f32 %v1192, %v1276
        %v1278 = vpop.f32.mrb[0].mxu0
        %1279 = vmatprep.mubr.f32.mxu0 0.0
        %v1280 = vand.u32 %v861, 4294901760
        %1281 = vmatmul.mubr.f32.gmra.mrb[0].mxu0 %v1280
        %v1282 = vpop.f32.mrb[0].mxu0
        %v1283 = vadd.f32 %v1200, %v1282
        %v1284 = vpop.f32.mrb[0].mxu0
        %1285 = vdwg.mxu0
        %1286 = vmatprep.subr.mxu0 0.0
        %v1287 = vand.u32 %v344, 4294901760
        %1288 = vmatpush1.msra.mxu0 %v1287
        %1289 = vmatprep.subr.mxu0 0.0
        %v1290 = vand.u32 %v345, 4294901760
        %1291 = vmatpush1.msra.mxu0 %v1290
        %1292 = vmatprep.subr.mxu0 0.0
        %1293 = vmatpush1.msra.mxu0 0.0
        %1294 = vmatprep.subr.mxu0 0.0
        %1295 = vmatpush1.msra.mxu0 0.0
        %1296 = vmatprep.subr.mxu0 0.0
        %1297 = vmatpush1.msra.mxu0 0.0
        %1298 = vmatprep.subr.mxu0 0.0
        %1299 = vmatpush1.msra.mxu0 0.0
        %1300 = vmatprep.subr.mxu0 0.0
        %1301 = vmatpush1.msra.mxu0 0.0
        %1302 = vmatprep.subr.mxu0 0.0
        %1303 = vmatpush1.msra.mxu0 0.0
        %1304 = vmatprep.subr.mxu0 0.0
        %1305 = vmatpush1.msra.mxu0 0.0
        %1306 = vmatprep.subr.mxu0 0.0
        %1307 = vmatpush1.msra.mxu0 0.0
        %1308 = vmatprep.subr.mxu0 0.0
        %1309 = vmatpush1.msra.mxu0 0.0
        %1310 = vmatprep.subr.mxu0 0.0
        %1311 = vmatpush1.msra.mxu0 0.0
        %1312 = vmatprep.subr.mxu0 0.0
        %1313 = vmatpush1.msra.mxu0 0.0
        %1314 = vmatprep.subr.mxu0 0.0
        %1315 = vmatpush1.msra.mxu0 0.0
        %1316 = vmatprep.subr.mxu0 0.0
        %1317 = vmatpush1.msra.mxu0 0.0
        %1318 = vmatprep.subr.mxu0 0.0
        %1319 = vmatpush1.msra.mxu0 0.0
        %1320 = vmatprep.subr.mxu0 0.0
        %1321 = vmatpush1.msra.mxu0 0.0
        %1322 = vmatprep.subr.mxu0 0.0
        %1323 = vmatpush1.msra.mxu0 0.0
        %1324 = vmatprep.subr.mxu0 0.0
        %1325 = vmatpush1.msra.mxu0 0.0
        %1326 = vmatprep.subr.mxu0 0.0
        %1327 = vmatpush1.msra.mxu0 0.0
        %1328 = vmatprep.subr.mxu0 0.0
        %1329 = vmatpush1.msra.mxu0 0.0
        %1330 = vmatprep.subr.mxu0 0.0
        %1331 = vmatpush1.msra.mxu0 0.0
        %1332 = vmatprep.subr.mxu0 0.0
        %1333 = vmatpush1.msra.mxu0 0.0
        %1334 = vmatprep.subr.mxu0 0.0
        %1335 = vmatpush1.msra.mxu0 0.0
        %1336 = vmatprep.subr.mxu0 0.0
        %1337 = vmatpush1.msra.mxu0 0.0
        %1338 = vmatprep.subr.mxu0 0.0
        %1339 = vmatpush1.msra.mxu0 0.0
        %1340 = vmatprep.subr.mxu0 0.0
        %1341 = vmatpush1.msra.mxu0 0.0
        %1342 = vmatprep.subr.mxu0 0.0
        %1343 = vmatpush1.msra.mxu0 0.0
        %1344 = vmatprep.subr.mxu0 0.0
        %1345 = vmatpush1.msra.mxu0 0.0
        %1346 = vmatprep.subr.mxu0 0.0
        %1347 = vmatpush1.msra.mxu0 0.0
        %1348 = vmatprep.subr.mxu0 0.0
        %1349 = vmatpush1.msra.mxu0 0.0
        %1350 = vmatprep.subr.mxu0 0.0
        %1351 = vmatpush1.msra.mxu0 0.0
        %1352 = vmatprep.mubr.f32.mxu0 0.0
        %v1353 = vand.u32 %v858, 4294901760
        %1354 = vmatmul.mubr.f32.gmra.mrb[0].mxu0 %v1353
        %v1355 = vpop.f32.mrb[0].mxu0
        %v1356 = vadd.f32 %v1277, %v1355
        %v1357 = vpop.f32.mrb[0].mxu0
        %1358 = vmatprep.mubr.f32.mxu0 0.0
        %v1359 = vand.u32 %v861, 4294901760
        %1360 = vmatmul.mubr.f32.gmra.mrb[0].mxu0 %v1359
        %v1361 = vpop.f32.mrb[0].mxu0
        %v1362 = vadd.f32 %v1283, %v1361
        %v1363 = vpop.f32.mrb[0].mxu0
        %1364 = vdwg.mxu0
        %1365 = vmatprep.subr.mxu0 0.0
        %v1366 = vand.u32 %v346, 4294901760
        %1367 = vmatpush1.msra.mxu0 %v1366
        %1368 = vmatprep.subr.mxu0 0.0
        %v1369 = vand.u32 %v347, 4294901760
        %1370 = vmatpush1.msra.mxu0 %v1369
        %1371 = vmatprep.subr.mxu0 0.0
        %1372 = vmatpush1.msra.mxu0 0.0
        %1373 = vmatprep.subr.mxu0 0.0
        %1374 = vmatpush1.msra.mxu0 0.0
        %1375 = vmatprep.subr.mxu0 0.0
        %1376 = vmatpush1.msra.mxu0 0.0
        %1377 = vmatprep.subr.mxu0 0.0
        %1378 = vmatpush1.msra.mxu0 0.0
        %1379 = vmatprep.subr.mxu0 0.0
        %1380 = vmatpush1.msra.mxu0 0.0
        %1381 = vmatprep.subr.mxu0 0.0
        %1382 = vmatpush1.msra.mxu0 0.0
        %1383 = vmatprep.subr.mxu0 0.0
        %1384 = vmatpush1.msra.mxu0 0.0
        %1385 = vmatprep.subr.mxu0 0.0
        %1386 = vmatpush1.msra.mxu0 0.0
        %1387 = vmatprep.subr.mxu0 0.0
        %1388 = vmatpush1.msra.mxu0 0.0
        %1389 = vmatprep.subr.mxu0 0.0
        %1390 = vmatpush1.msra.mxu0 0.0
        %1391 = vmatprep.subr.mxu0 0.0
        %1392 = vmatpush1.msra.mxu0 0.0
        %1393 = vmatprep.subr.mxu0 0.0
        %1394 = vmatpush1.msra.mxu0 0.0
        %1395 = vmatprep.subr.mxu0 0.0
        %1396 = vmatpush1.msra.mxu0 0.0
        %1397 = vmatprep.subr.mxu0 0.0
        %1398 = vmatpush1.msra.mxu0 0.0
        %1399 = vmatprep.subr.mxu0 0.0
        %1400 = vmatpush1.msra.mxu0 0.0
        %1401 = vmatprep.subr.mxu0 0.0
        %1402 = vmatpush1.msra.mxu0 0.0
        %1403 = vmatprep.subr.mxu0 0.0
        %1404 = vmatpush1.msra.mxu0 0.0
        %1405 = vmatprep.subr.mxu0 0.0
        %1406 = vmatpush1.msra.mxu0 0.0
        %1407 = vmatprep.subr.mxu0 0.0
        %1408 = vmatpush1.msra.mxu0 0.0
        %1409 = vmatprep.subr.mxu0 0.0
        %1410 = vmatpush1.msra.mxu0 0.0
        %1411 = vmatprep.subr.mxu0 0.0
        %1412 = vmatpush1.msra.mxu0 0.0
        %1413 = vmatprep.subr.mxu0 0.0
        %1414 = vmatpush1.msra.mxu0 0.0
        %1415 = vmatprep.subr.mxu0 0.0
        %1416 = vmatpush1.msra.mxu0 0.0
        %1417 = vmatprep.subr.mxu0 0.0
        %1418 = vmatpush1.msra.mxu0 0.0
        %1419 = vmatprep.subr.mxu0 0.0
        %1420 = vmatpush1.msra.mxu0 0.0
        %1421 = vmatprep.subr.mxu0 0.0
        %1422 = vmatpush1.msra.mxu0 0.0
        %1423 = vmatprep.subr.mxu0 0.0
        %1424 = vmatpush1.msra.mxu0 0.0
        %1425 = vmatprep.subr.mxu0 0.0
        %1426 = vmatpush1.msra.mxu0 0.0
        %1427 = vmatprep.subr.mxu0 0.0
        %1428 = vmatpush1.msra.mxu0 0.0
        %1429 = vmatprep.subr.mxu0 0.0
        %1430 = vmatpush1.msra.mxu0 0.0
        %1431 = vmatprep.mubr.f32.mxu0 0.0
        %v1432 = vand.u32 %v350, 4294901760
        %v1433 = vsub.f32 %v350, %v1432
        %v1434 = vand.u32 %v1433, 4294901760
        %v1435 = vsub.f32 %v1433, %v1434
        %v1436 = vand.u32 %v1435, 4294901760
        %1437 = vmatmul.mubr.f32.gmra.mrb[0].mxu0 %v1436
        %v1438 = vpop.f32.mrb[0].mxu0
        %v1439 = vadd.f32 0.0, %v1438
        %v1440 = vpop.f32.mrb[0].mxu0
        %1441 = vmatprep.mubr.f32.mxu0 0.0
        %v1442 = vand.u32 %v353, 4294901760
        %v1443 = vsub.f32 %v353, %v1442
        %v1444 = vand.u32 %v1443, 4294901760
        %v1445 = vsub.f32 %v1443, %v1444
        %v1446 = vand.u32 %v1445, 4294901760
        %1447 = vmatmul.mubr.f32.gmra.mrb[0].mxu0 %v1446
        %v1448 = vpop.f32.mrb[0].mxu0
        %v1449 = vadd.f32 0.0, %v1448
        %v1450 = vpop.f32.mrb[0].mxu0
        %1451 = vdwg.mxu0
        %1452 = vmatprep.subr.mxu0 0.0
        %v1453 = vand.u32 %v346, 4294901760
        %v1454 = vsub.f32 %v346, %v1453
        %v1455 = vand.u32 %v1454, 4294901760
        %v1456 = vsub.f32 %v1454, %v1455
        %v1457 = vand.u32 %v1456, 4294901760
        %1458 = vmatpush1.msra.mxu0 %v1457
        %1459 = vmatprep.subr.mxu0 0.0
        %v1460 = vand.u32 %v347, 4294901760
        %v1461 = vsub.f32 %v347, %v1460
        %v1462 = vand.u32 %v1461, 4294901760
        %v1463 = vsub.f32 %v1461, %v1462
        %v1464 = vand.u32 %v1463, 4294901760
        %1465 = vmatpush1.msra.mxu0 %v1464
        %1466 = vmatprep.subr.mxu0 0.0
        %1467 = vmatpush1.msra.mxu0 0.0
        %1468 = vmatprep.subr.mxu0 0.0
        %1469 = vmatpush1.msra.mxu0 0.0
        %1470 = vmatprep.subr.mxu0 0.0
        %1471 = vmatpush1.msra.mxu0 0.0
        %1472 = vmatprep.subr.mxu0 0.0
        %1473 = vmatpush1.msra.mxu0 0.0
        %1474 = vmatprep.subr.mxu0 0.0
        %1475 = vmatpush1.msra.mxu0 0.0
        %1476 = vmatprep.subr.mxu0 0.0
        %1477 = vmatpush1.msra.mxu0 0.0
        %1478 = vmatprep.subr.mxu0 0.0
        %1479 = vmatpush1.msra.mxu0 0.0
        %1480 = vmatprep.subr.mxu0 0.0
        %1481 = vmatpush1.msra.mxu0 0.0
        %1482 = vmatprep.subr.mxu0 0.0
        %1483 = vmatpush1.msra.mxu0 0.0
        %1484 = vmatprep.subr.mxu0 0.0
        %1485 = vmatpush1.msra.mxu0 0.0
        %1486 = vmatprep.subr.mxu0 0.0
        %1487 = vmatpush1.msra.mxu0 0.0
        %1488 = vmatprep.subr.mxu0 0.0
        %1489 = vmatpush1.msra.mxu0 0.0
        %1490 = vmatprep.subr.mxu0 0.0
        %1491 = vmatpush1.msra.mxu0 0.0
        %1492 = vmatprep.subr.mxu0 0.0
        %1493 = vmatpush1.msra.mxu0 0.0
        %1494 = vmatprep.subr.mxu0 0.0
        %1495 = vmatpush1.msra.mxu0 0.0
        %1496 = vmatprep.subr.mxu0 0.0
        %1497 = vmatpush1.msra.mxu0 0.0
        %1498 = vmatprep.subr.mxu0 0.0
        %1499 = vmatpush1.msra.mxu0 0.0
        %1500 = vmatprep.subr.mxu0 0.0
        %1501 = vmatpush1.msra.mxu0 0.0
        %1502 = vmatprep.subr.mxu0 0.0
        %1503 = vmatpush1.msra.mxu0 0.0
        %1504 = vmatprep.subr.mxu0 0.0
        %1505 = vmatpush1.msra.mxu0 0.0
        %1506 = vmatprep.subr.mxu0 0.0
        %1507 = vmatpush1.msra.mxu0 0.0
        %1508 = vmatprep.subr.mxu0 0.0
        %1509 = vmatpush1.msra.mxu0 0.0
        %1510 = vmatprep.subr.mxu0 0.0
        %1511 = vmatpush1.msra.mxu0 0.0
        %1512 = vmatprep.subr.mxu0 0.0
        %1513 = vmatpush1.msra.mxu0 0.0
        %1514 = vmatprep.subr.mxu0 0.0
        %1515 = vmatpush1.msra.mxu0 0.0
        %1516 = vmatprep.subr.mxu0 0.0
        %1517 = vmatpush1.msra.mxu0 0.0
        %1518 = vmatprep.subr.mxu0 0.0
        %1519 = vmatpush1.msra.mxu0 0.0
        %1520 = vmatprep.subr.mxu0 0.0
        %1521 = vmatpush1.msra.mxu0 0.0
        %1522 = vmatprep.subr.mxu0 0.0
        %1523 = vmatpush1.msra.mxu0 0.0
        %1524 = vmatprep.subr.mxu0 0.0
        %1525 = vmatpush1.msra.mxu0 0.0
        %1526 = vmatprep.mubr.f32.mxu0 0.0
        %v1527 = vand.u32 %v350, 4294901760
        %1528 = vmatmul.mubr.f32.gmra.mrb[0].mxu0 %v1527
        %v1529 = vpop.f32.mrb[0].mxu0
        %v1530 = vadd.f32 %v1439, %v1529
        %v1531 = vpop.f32.mrb[0].mxu0
        %1532 = vmatprep.mubr.f32.mxu0 0.0
        %v1533 = vand.u32 %v353, 4294901760
        %1534 = vmatmul.mubr.f32.gmra.mrb[0].mxu0 %v1533
        %v1535 = vpop.f32.mrb[0].mxu0
        %v1536 = vadd.f32 %v1449, %v1535
        %v1537 = vpop.f32.mrb[0].mxu0
        %1538 = vdwg.mxu0
        %1539 = vmatprep.subr.mxu0 0.0
        %v1540 = vand.u32 %v346, 4294901760
        %v1541 = vsub.f32 %v346, %v1540
        %1542 = vmatpush1.msra.mxu0 %v1541
        %1543 = vmatprep.subr.mxu0 0.0
        %v1544 = vand.u32 %v347, 4294901760
        %v1545 = vsub.f32 %v347, %v1544
        %1546 = vmatpush1.msra.mxu0 %v1545
        %1547 = vmatprep.subr.mxu0 0.0
        %1548 = vmatpush1.msra.mxu0 0.0
        %1549 = vmatprep.subr.mxu0 0.0
        %1550 = vmatpush1.msra.mxu0 0.0
        %1551 = vmatprep.subr.mxu0 0.0
        %1552 = vmatpush1.msra.mxu0 0.0
        %1553 = vmatprep.subr.mxu0 0.0
        %1554 = vmatpush1.msra.mxu0 0.0
        %1555 = vmatprep.subr.mxu0 0.0
        %1556 = vmatpush1.msra.mxu0 0.0
        %1557 = vmatprep.subr.mxu0 0.0
        %1558 = vmatpush1.msra.mxu0 0.0
        %1559 = vmatprep.subr.mxu0 0.0
        %1560 = vmatpush1.msra.mxu0 0.0
        %1561 = vmatprep.subr.mxu0 0.0
        %1562 = vmatpush1.msra.mxu0 0.0
        %1563 = vmatprep.subr.mxu0 0.0
        %1564 = vmatpush1.msra.mxu0 0.0
        %1565 = vmatprep.subr.mxu0 0.0
        %1566 = vmatpush1.msra.mxu0 0.0
        %1567 = vmatprep.subr.mxu0 0.0
        %1568 = vmatpush1.msra.mxu0 0.0
        %1569 = vmatprep.subr.mxu0 0.0
        %1570 = vmatpush1.msra.mxu0 0.0
        %1571 = vmatprep.subr.mxu0 0.0
        %1572 = vmatpush1.msra.mxu0 0.0
        %1573 = vmatprep.subr.mxu0 0.0
        %1574 = vmatpush1.msra.mxu0 0.0
        %1575 = vmatprep.subr.mxu0 0.0
        %1576 = vmatpush1.msra.mxu0 0.0
        %1577 = vmatprep.subr.mxu0 0.0
        %1578 = vmatpush1.msra.mxu0 0.0
        %1579 = vmatprep.subr.mxu0 0.0
        %1580 = vmatpush1.msra.mxu0 0.0
        %1581 = vmatprep.subr.mxu0 0.0
        %1582 = vmatpush1.msra.mxu0 0.0
        %1583 = vmatprep.subr.mxu0 0.0
        %1584 = vmatpush1.msra.mxu0 0.0
        %1585 = vmatprep.subr.mxu0 0.0
        %1586 = vmatpush1.msra.mxu0 0.0
        %1587 = vmatprep.subr.mxu0 0.0
        %1588 = vmatpush1.msra.mxu0 0.0
        %1589 = vmatprep.subr.mxu0 0.0
        %1590 = vmatpush1.msra.mxu0 0.0
        %1591 = vmatprep.subr.mxu0 0.0
        %1592 = vmatpush1.msra.mxu0 0.0
        %1593 = vmatprep.subr.mxu0 0.0
        %1594 = vmatpush1.msra.mxu0 0.0
        %1595 = vmatprep.subr.mxu0 0.0
        %1596 = vmatpush1.msra.mxu0 0.0
        %1597 = vmatprep.subr.mxu0 0.0
        %1598 = vmatpush1.msra.mxu0 0.0
        %1599 = vmatprep.subr.mxu0 0.0
        %1600 = vmatpush1.msra.mxu0 0.0
        %1601 = vmatprep.subr.mxu0 0.0
        %1602 = vmatpush1.msra.mxu0 0.0
        %1603 = vmatprep.subr.mxu0 0.0
        %1604 = vmatpush1.msra.mxu0 0.0
        %1605 = vmatprep.subr.mxu0 0.0
        %1606 = vmatpush1.msra.mxu0 0.0
        %1607 = vmatprep.mubr.f32.mxu0 0.0
        %v1608 = vand.u32 %v350, 4294901760
        %v1609 = vsub.f32 %v350, %v1608
        %1610 = vmatmul.mubr.f32.gmra.mrb[0].mxu0 %v1609
        %v1611 = vpop.f32.mrb[0].mxu0
        %v1612 = vadd.f32 %v1530, %v1611
        %v1613 = vpop.f32.mrb[0].mxu0
        %1614 = vmatprep.mubr.f32.mxu0 0.0
        %v1615 = vand.u32 %v353, 4294901760
        %v1616 = vsub.f32 %v353, %v1615
        %1617 = vmatmul.mubr.f32.gmra.mrb[0].mxu0 %v1616
        %v1618 = vpop.f32.mrb[0].mxu0
        %v1619 = vadd.f32 %v1536, %v1618
        %v1620 = vpop.f32.mrb[0].mxu0
        %1621 = vdwg.mxu0
        %1622 = vmatprep.subr.mxu0 0.0
        %v1623 = vand.u32 %v346, 4294901760
        %1624 = vmatpush1.msra.mxu0 %v1623
        %1625 = vmatprep.subr.mxu0 0.0
        %v1626 = vand.u32 %v347, 4294901760
        %1627 = vmatpush1.msra.mxu0 %v1626
        %1628 = vmatprep.subr.mxu0 0.0
        %1629 = vmatpush1.msra.mxu0 0.0
        %1630 = vmatprep.subr.mxu0 0.0
        %1631 = vmatpush1.msra.mxu0 0.0
        %1632 = vmatprep.subr.mxu0 0.0
        %1633 = vmatpush1.msra.mxu0 0.0
        %1634 = vmatprep.subr.mxu0 0.0
        %1635 = vmatpush1.msra.mxu0 0.0
        %1636 = vmatprep.subr.mxu0 0.0
        %1637 = vmatpush1.msra.mxu0 0.0
        %1638 = vmatprep.subr.mxu0 0.0
        %1639 = vmatpush1.msra.mxu0 0.0
        %1640 = vmatprep.subr.mxu0 0.0
        %1641 = vmatpush1.msra.mxu0 0.0
        %1642 = vmatprep.subr.mxu0 0.0
        %1643 = vmatpush1.msra.mxu0 0.0
        %1644 = vmatprep.subr.mxu0 0.0
        %1645 = vmatpush1.msra.mxu0 0.0
        %1646 = vmatprep.subr.mxu0 0.0
        %1647 = vmatpush1.msra.mxu0 0.0
        %1648 = vmatprep.subr.mxu0 0.0
        %1649 = vmatpush1.msra.mxu0 0.0
        %1650 = vmatprep.subr.mxu0 0.0
        %1651 = vmatpush1.msra.mxu0 0.0
        %1652 = vmatprep.subr.mxu0 0.0
        %1653 = vmatpush1.msra.mxu0 0.0
        %1654 = vmatprep.subr.mxu0 0.0
        %1655 = vmatpush1.msra.mxu0 0.0
        %1656 = vmatprep.subr.mxu0 0.0
        %1657 = vmatpush1.msra.mxu0 0.0
        %1658 = vmatprep.subr.mxu0 0.0
        %1659 = vmatpush1.msra.mxu0 0.0
        %1660 = vmatprep.subr.mxu0 0.0
        %1661 = vmatpush1.msra.mxu0 0.0
        %1662 = vmatprep.subr.mxu0 0.0
        %1663 = vmatpush1.msra.mxu0 0.0
        %1664 = vmatprep.subr.mxu0 0.0
        %1665 = vmatpush1.msra.mxu0 0.0
        %1666 = vmatprep.subr.mxu0 0.0
        %1667 = vmatpush1.msra.mxu0 0.0
        %1668 = vmatprep.subr.mxu0 0.0
        %1669 = vmatpush1.msra.mxu0 0.0
        %1670 = vmatprep.subr.mxu0 0.0
        %1671 = vmatpush1.msra.mxu0 0.0
        %1672 = vmatprep.subr.mxu0 0.0
        %1673 = vmatpush1.msra.mxu0 0.0
        %1674 = vmatprep.subr.mxu0 0.0
        %1675 = vmatpush1.msra.mxu0 0.0
        %1676 = vmatprep.subr.mxu0 0.0
        %1677 = vmatpush1.msra.mxu0 0.0
        %1678 = vmatprep.subr.mxu0 0.0
        %1679 = vmatpush1.msra.mxu0 0.0
        %1680 = vmatprep.subr.mxu0 0.0
        %1681 = vmatpush1.msra.mxu0 0.0
        %1682 = vmatprep.subr.mxu0 0.0
        %1683 = vmatpush1.msra.mxu0 0.0
        %1684 = vmatprep.subr.mxu0 0.0
        %1685 = vmatpush1.msra.mxu0 0.0
        %1686 = vmatprep.subr.mxu0 0.0
        %1687 = vmatpush1.msra.mxu0 0.0
        %1688 = vmatprep.mubr.f32.mxu0 0.0
        %v1689 = vand.u32 %v350, 4294901760
        %v1690 = vsub.f32 %v350, %v1689
        %v1691 = vand.u32 %v1690, 4294901760
        %1692 = vmatmul.mubr.f32.gmra.mrb[0].mxu0 %v1691
        %v1693 = vpop.f32.mrb[0].mxu0
        %v1694 = vadd.f32 %v1612, %v1693
        %v1695 = vpop.f32.mrb[0].mxu0
        %1696 = vmatprep.mubr.f32.mxu0 0.0
        %v1697 = vand.u32 %v353, 4294901760
        %v1698 = vsub.f32 %v353, %v1697
        %v1699 = vand.u32 %v1698, 4294901760
        %1700 = vmatmul.mubr.f32.gmra.mrb[0].mxu0 %v1699
        %v1701 = vpop.f32.mrb[0].mxu0
        %v1702 = vadd.f32 %v1619, %v1701
        %v1703 = vpop.f32.mrb[0].mxu0
        %1704 = vdwg.mxu0
        %1705 = vmatprep.subr.mxu0 0.0
        %v1706 = vand.u32 %v346, 4294901760
        %v1707 = vsub.f32 %v346, %v1706
        %v1708 = vand.u32 %v1707, 4294901760
        %1709 = vmatpush1.msra.mxu0 %v1708
        %1710 = vmatprep.subr.mxu0 0.0
        %v1711 = vand.u32 %v347, 4294901760
        %v1712 = vsub.f32 %v347, %v1711
        %v1713 = vand.u32 %v1712, 4294901760
        %1714 = vmatpush1.msra.mxu0 %v1713
        %1715 = vmatprep.subr.mxu0 0.0
        %1716 = vmatpush1.msra.mxu0 0.0
        %1717 = vmatprep.subr.mxu0 0.0
        %1718 = vmatpush1.msra.mxu0 0.0
        %1719 = vmatprep.subr.mxu0 0.0
        %1720 = vmatpush1.msra.mxu0 0.0
        %1721 = vmatprep.subr.mxu0 0.0
        %1722 = vmatpush1.msra.mxu0 0.0
        %1723 = vmatprep.subr.mxu0 0.0
        %1724 = vmatpush1.msra.mxu0 0.0
        %1725 = vmatprep.subr.mxu0 0.0
        %1726 = vmatpush1.msra.mxu0 0.0
        %1727 = vmatprep.subr.mxu0 0.0
        %1728 = vmatpush1.msra.mxu0 0.0
        %1729 = vmatprep.subr.mxu0 0.0
        %1730 = vmatpush1.msra.mxu0 0.0
        %1731 = vmatprep.subr.mxu0 0.0
        %1732 = vmatpush1.msra.mxu0 0.0
        %1733 = vmatprep.subr.mxu0 0.0
        %1734 = vmatpush1.msra.mxu0 0.0
        %1735 = vmatprep.subr.mxu0 0.0
        %1736 = vmatpush1.msra.mxu0 0.0
        %1737 = vmatprep.subr.mxu0 0.0
        %1738 = vmatpush1.msra.mxu0 0.0
        %1739 = vmatprep.subr.mxu0 0.0
        %1740 = vmatpush1.msra.mxu0 0.0
        %1741 = vmatprep.subr.mxu0 0.0
        %1742 = vmatpush1.msra.mxu0 0.0
        %1743 = vmatprep.subr.mxu0 0.0
        %1744 = vmatpush1.msra.mxu0 0.0
        %1745 = vmatprep.subr.mxu0 0.0
        %1746 = vmatpush1.msra.mxu0 0.0
        %1747 = vmatprep.subr.mxu0 0.0
        %1748 = vmatpush1.msra.mxu0 0.0
        %1749 = vmatprep.subr.mxu0 0.0
        %1750 = vmatpush1.msra.mxu0 0.0
        %1751 = vmatprep.subr.mxu0 0.0
        %1752 = vmatpush1.msra.mxu0 0.0
        %1753 = vmatprep.subr.mxu0 0.0
        %1754 = vmatpush1.msra.mxu0 0.0
        %1755 = vmatprep.subr.mxu0 0.0
        %1756 = vmatpush1.msra.mxu0 0.0
        %1757 = vmatprep.subr.mxu0 0.0
        %1758 = vmatpush1.msra.mxu0 0.0
        %1759 = vmatprep.subr.mxu0 0.0
        %1760 = vmatpush1.msra.mxu0 0.0
        %1761 = vmatprep.subr.mxu0 0.0
        %1762 = vmatpush1.msra.mxu0 0.0
        %1763 = vmatprep.subr.mxu0 0.0
        %1764 = vmatpush1.msra.mxu0 0.0
        %1765 = vmatprep.subr.mxu0 0.0
        %1766 = vmatpush1.msra.mxu0 0.0
        %1767 = vmatprep.subr.mxu0 0.0
        %1768 = vmatpush1.msra.mxu0 0.0
        %1769 = vmatprep.subr.mxu0 0.0
        %1770 = vmatpush1.msra.mxu0 0.0
        %1771 = vmatprep.subr.mxu0 0.0
        %1772 = vmatpush1.msra.mxu0 0.0
        %1773 = vmatprep.subr.mxu0 0.0
        %1774 = vmatpush1.msra.mxu0 0.0
        %1775 = vmatprep.mubr.f32.mxu0 0.0
        %v1776 = vand.u32 %v350, 4294901760
        %1777 = vmatmul.mubr.f32.gmra.mrb[0].mxu0 %v1776
        %v1778 = vpop.f32.mrb[0].mxu0
        %v1779 = vadd.f32 %v1694, %v1778
        %v1780 = vpop.f32.mrb[0].mxu0
        %1781 = vmatprep.mubr.f32.mxu0 0.0
        %v1782 = vand.u32 %v353, 4294901760
        %1783 = vmatmul.mubr.f32.gmra.mrb[0].mxu0 %v1782
        %v1784 = vpop.f32.mrb[0].mxu0
        %v1785 = vadd.f32 %v1702, %v1784
        %v1786 = vpop.f32.mrb[0].mxu0
        %1787 = vdwg.mxu0
        %1788 = vmatprep.subr.mxu0 0.0
        %v1789 = vand.u32 %v346, 4294901760
        %1790 = vmatpush1.msra.mxu0 %v1789
        %1791 = vmatprep.subr.mxu0 0.0
        %v1792 = vand.u32 %v347, 4294901760
        %1793 = vmatpush1.msra.mxu0 %v1792
        %1794 = vmatprep.subr.mxu0 0.0
        %1795 = vmatpush1.msra.mxu0 0.0
        %1796 = vmatprep.subr.mxu0 0.0
        %1797 = vmatpush1.msra.mxu0 0.0
        %1798 = vmatprep.subr.mxu0 0.0
        %1799 = vmatpush1.msra.mxu0 0.0
        %1800 = vmatprep.subr.mxu0 0.0
        %1801 = vmatpush1.msra.mxu0 0.0
        %1802 = vmatprep.subr.mxu0 0.0
        %1803 = vmatpush1.msra.mxu0 0.0
        %1804 = vmatprep.subr.mxu0 0.0
        %1805 = vmatpush1.msra.mxu0 0.0
        %1806 = vmatprep.subr.mxu0 0.0
        %1807 = vmatpush1.msra.mxu0 0.0
        %1808 = vmatprep.subr.mxu0 0.0
        %1809 = vmatpush1.msra.mxu0 0.0
        %1810 = vmatprep.subr.mxu0 0.0
        %1811 = vmatpush1.msra.mxu0 0.0
        %1812 = vmatprep.subr.mxu0 0.0
        %1813 = vmatpush1.msra.mxu0 0.0
        %1814 = vmatprep.subr.mxu0 0.0
        %1815 = vmatpush1.msra.mxu0 0.0
        %1816 = vmatprep.subr.mxu0 0.0
        %1817 = vmatpush1.msra.mxu0 0.0
        %1818 = vmatprep.subr.mxu0 0.0
        %1819 = vmatpush1.msra.mxu0 0.0
        %1820 = vmatprep.subr.mxu0 0.0
        %1821 = vmatpush1.msra.mxu0 0.0
        %1822 = vmatprep.subr.mxu0 0.0
        %1823 = vmatpush1.msra.mxu0 0.0
        %1824 = vmatprep.subr.mxu0 0.0
        %1825 = vmatpush1.msra.mxu0 0.0
        %1826 = vmatprep.subr.mxu0 0.0
        %1827 = vmatpush1.msra.mxu0 0.0
        %1828 = vmatprep.subr.mxu0 0.0
        %1829 = vmatpush1.msra.mxu0 0.0
        %1830 = vmatprep.subr.mxu0 0.0
        %1831 = vmatpush1.msra.mxu0 0.0
        %1832 = vmatprep.subr.mxu0 0.0
        %1833 = vmatpush1.msra.mxu0 0.0
        %1834 = vmatprep.subr.mxu0 0.0
        %1835 = vmatpush1.msra.mxu0 0.0
        %1836 = vmatprep.subr.mxu0 0.0
        %1837 = vmatpush1.msra.mxu0 0.0
        %1838 = vmatprep.subr.mxu0 0.0
        %1839 = vmatpush1.msra.mxu0 0.0
        %1840 = vmatprep.subr.mxu0 0.0
        %1841 = vmatpush1.msra.mxu0 0.0
        %1842 = vmatprep.subr.mxu0 0.0
        %1843 = vmatpush1.msra.mxu0 0.0
        %1844 = vmatprep.subr.mxu0 0.0
        %1845 = vmatpush1.msra.mxu0 0.0
        %1846 = vmatprep.subr.mxu0 0.0
        %1847 = vmatpush1.msra.mxu0 0.0
        %1848 = vmatprep.subr.mxu0 0.0
        %1849 = vmatpush1.msra.mxu0 0.0
        %1850 = vmatprep.subr.mxu0 0.0
        %1851 = vmatpush1.msra.mxu0 0.0
        %1852 = vmatprep.subr.mxu0 0.0
        %1853 = vmatpush1.msra.mxu0 0.0
        %1854 = vmatprep.mubr.f32.mxu0 0.0
        %v1855 = vand.u32 %v350, 4294901760
        %1856 = vmatmul.mubr.f32.gmra.mrb[0].mxu0 %v1855
        %v1857 = vpop.f32.mrb[0].mxu0
        %v1858 = vadd.f32 %v1779, %v1857
        %v1859 = vpop.f32.mrb[0].mxu0
        %1860 = vmatprep.mubr.f32.mxu0 0.0
        %v1861 = vand.u32 %v353, 4294901760
        %1862 = vmatmul.mubr.f32.gmra.mrb[0].mxu0 %v1861
        %v1863 = vpop.f32.mrb[0].mxu0
        %v1864 = vadd.f32 %v1785, %v1863
        %v1865 = vpop.f32.mrb[0].mxu0
        %1866 = vdwg.mxu0
        %1867 = vmatprep.subr.mxu0 0.0
        %v1868 = vand.u32 %v346, 4294901760
        %1869 = vmatpush1.msra.mxu0 %v1868
        %1870 = vmatprep.subr.mxu0 0.0
        %v1871 = vand.u32 %v347, 4294901760
        %1872 = vmatpush1.msra.mxu0 %v1871
        %1873 = vmatprep.subr.mxu0 0.0
        %1874 = vmatpush1.msra.mxu0 0.0
        %1875 = vmatprep.subr.mxu0 0.0
        %1876 = vmatpush1.msra.mxu0 0.0
        %1877 = vmatprep.subr.mxu0 0.0
        %1878 = vmatpush1.msra.mxu0 0.0
        %1879 = vmatprep.subr.mxu0 0.0
        %1880 = vmatpush1.msra.mxu0 0.0
        %1881 = vmatprep.subr.mxu0 0.0
        %1882 = vmatpush1.msra.mxu0 0.0
        %1883 = vmatprep.subr.mxu0 0.0
        %1884 = vmatpush1.msra.mxu0 0.0
        %1885 = vmatprep.subr.mxu0 0.0
        %1886 = vmatpush1.msra.mxu0 0.0
        %1887 = vmatprep.subr.mxu0 0.0
        %1888 = vmatpush1.msra.mxu0 0.0
        %1889 = vmatprep.subr.mxu0 0.0
        %1890 = vmatpush1.msra.mxu0 0.0
        %1891 = vmatprep.subr.mxu0 0.0
        %1892 = vmatpush1.msra.mxu0 0.0
        %1893 = vmatprep.subr.mxu0 0.0
        %1894 = vmatpush1.msra.mxu0 0.0
        %1895 = vmatprep.subr.mxu0 0.0
        %1896 = vmatpush1.msra.mxu0 0.0
        %1897 = vmatprep.subr.mxu0 0.0
        %1898 = vmatpush1.msra.mxu0 0.0
        %1899 = vmatprep.subr.mxu0 0.0
        %1900 = vmatpush1.msra.mxu0 0.0
        %1901 = vmatprep.subr.mxu0 0.0
        %1902 = vmatpush1.msra.mxu0 0.0
        %1903 = vmatprep.subr.mxu0 0.0
        %1904 = vmatpush1.msra.mxu0 0.0
        %1905 = vmatprep.subr.mxu0 0.0
        %1906 = vmatpush1.msra.mxu0 0.0
        %1907 = vmatprep.subr.mxu0 0.0
        %1908 = vmatpush1.msra.mxu0 0.0
        %1909 = vmatprep.subr.mxu0 0.0
        %1910 = vmatpush1.msra.mxu0 0.0
        %1911 = vmatprep.subr.mxu0 0.0
        %1912 = vmatpush1.msra.mxu0 0.0
        %1913 = vmatprep.subr.mxu0 0.0
        %1914 = vmatpush1.msra.mxu0 0.0
        %1915 = vmatprep.subr.mxu0 0.0
        %1916 = vmatpush1.msra.mxu0 0.0
        %1917 = vmatprep.subr.mxu0 0.0
        %1918 = vmatpush1.msra.mxu0 0.0
        %1919 = vmatprep.subr.mxu0 0.0
        %1920 = vmatpush1.msra.mxu0 0.0
        %1921 = vmatprep.subr.mxu0 0.0
        %1922 = vmatpush1.msra.mxu0 0.0
        %1923 = vmatprep.subr.mxu0 0.0
        %1924 = vmatpush1.msra.mxu0 0.0
        %1925 = vmatprep.subr.mxu0 0.0
        %1926 = vmatpush1.msra.mxu0 0.0
        %1927 = vmatprep.subr.mxu0 0.0
        %1928 = vmatpush1.msra.mxu0 0.0
        %1929 = vmatprep.subr.mxu0 0.0
        %1930 = vmatpush1.msra.mxu0 0.0
        %1931 = vmatprep.subr.mxu0 0.0
        %1932 = vmatpush1.msra.mxu0 0.0
        %1933 = vmatprep.mubr.f32.mxu0 0.0
        %v1934 = vand.u32 %v858, 4294901760
        %v1935 = vsub.f32 %v858, %v1934
        %v1936 = vand.u32 %v1935, 4294901760
        %v1937 = vsub.f32 %v1935, %v1936
        %v1938 = vand.u32 %v1937, 4294901760
        %1939 = vmatmul.mubr.f32.gmra.mrb[0].mxu0 %v1938
        %v1940 = vpop.f32.mrb[0].mxu0
        %v1941 = vadd.f32 0.0, %v1940
        %v1942 = vpop.f32.mrb[0].mxu0
        %1943 = vmatprep.mubr.f32.mxu0 0.0
        %v1944 = vand.u32 %v861, 4294901760
        %v1945 = vsub.f32 %v861, %v1944
        %v1946 = vand.u32 %v1945, 4294901760
        %v1947 = vsub.f32 %v1945, %v1946
        %v1948 = vand.u32 %v1947, 4294901760
        %1949 = vmatmul.mubr.f32.gmra.mrb[0].mxu0 %v1948
        %v1950 = vpop.f32.mrb[0].mxu0
        %v1951 = vadd.f32 0.0, %v1950
        %v1952 = vpop.f32.mrb[0].mxu0
        %1953 = vdwg.mxu0
        %1954 = vmatprep.subr.mxu0 0.0
        %v1955 = vand.u32 %v346, 4294901760
        %v1956 = vsub.f32 %v346, %v1955
        %v1957 = vand.u32 %v1956, 4294901760
        %v1958 = vsub.f32 %v1956, %v1957
        %v1959 = vand.u32 %v1958, 4294901760
        %1960 = vmatpush1.msra.mxu0 %v1959
        %1961 = vmatprep.subr.mxu0 0.0
        %v1962 = vand.u32 %v347, 4294901760
        %v1963 = vsub.f32 %v347, %v1962
        %v1964 = vand.u32 %v1963, 4294901760
        %v1965 = vsub.f32 %v1963, %v1964
        %v1966 = vand.u32 %v1965, 4294901760
        %1967 = vmatpush1.msra.mxu0 %v1966
        %1968 = vmatprep.subr.mxu0 0.0
        %1969 = vmatpush1.msra.mxu0 0.0
        %1970 = vmatprep.subr.mxu0 0.0
        %1971 = vmatpush1.msra.mxu0 0.0
        %1972 = vmatprep.subr.mxu0 0.0
        %1973 = vmatpush1.msra.mxu0 0.0
        %1974 = vmatprep.subr.mxu0 0.0
        %1975 = vmatpush1.msra.mxu0 0.0
        %1976 = vmatprep.subr.mxu0 0.0
        %1977 = vmatpush1.msra.mxu0 0.0
        %1978 = vmatprep.subr.mxu0 0.0
        %1979 = vmatpush1.msra.mxu0 0.0
        %1980 = vmatprep.subr.mxu0 0.0
        %1981 = vmatpush1.msra.mxu0 0.0
        %1982 = vmatprep.subr.mxu0 0.0
        %1983 = vmatpush1.msra.mxu0 0.0
        %1984 = vmatprep.subr.mxu0 0.0
        %1985 = vmatpush1.msra.mxu0 0.0
        %1986 = vmatprep.subr.mxu0 0.0
        %1987 = vmatpush1.msra.mxu0 0.0
        %1988 = vmatprep.subr.mxu0 0.0
        %1989 = vmatpush1.msra.mxu0 0.0
        %1990 = vmatprep.subr.mxu0 0.0
        %1991 = vmatpush1.msra.mxu0 0.0
        %1992 = vmatprep.subr.mxu0 0.0
        %1993 = vmatpush1.msra.mxu0 0.0
        %1994 = vmatprep.subr.mxu0 0.0
        %1995 = vmatpush1.msra.mxu0 0.0
        %1996 = vmatprep.subr.mxu0 0.0
        %1997 = vmatpush1.msra.mxu0 0.0
        %1998 = vmatprep.subr.mxu0 0.0
        %1999 = vmatpush1.msra.mxu0 0.0
        %2000 = vmatprep.subr.mxu0 0.0
        %2001 = vmatpush1.msra.mxu0 0.0
        %2002 = vmatprep.subr.mxu0 0.0
        %2003 = vmatpush1.msra.mxu0 0.0
        %2004 = vmatprep.subr.mxu0 0.0
        %2005 = vmatpush1.msra.mxu0 0.0
        %2006 = vmatprep.subr.mxu0 0.0
        %2007 = vmatpush1.msra.mxu0 0.0
        %2008 = vmatprep.subr.mxu0 0.0
        %2009 = vmatpush1.msra.mxu0 0.0
        %2010 = vmatprep.subr.mxu0 0.0
        %2011 = vmatpush1.msra.mxu0 0.0
        %2012 = vmatprep.subr.mxu0 0.0
        %2013 = vmatpush1.msra.mxu0 0.0
        %2014 = vmatprep.subr.mxu0 0.0
        %2015 = vmatpush1.msra.mxu0 0.0
        %2016 = vmatprep.subr.mxu0 0.0
        %2017 = vmatpush1.msra.mxu0 0.0
        %2018 = vmatprep.subr.mxu0 0.0
        %2019 = vmatpush1.msra.mxu0 0.0
        %2020 = vmatprep.subr.mxu0 0.0
        %2021 = vmatpush1.msra.mxu0 0.0
        %2022 = vmatprep.subr.mxu0 0.0
        %2023 = vmatpush1.msra.mxu0 0.0
        %2024 = vmatprep.subr.mxu0 0.0
        %2025 = vmatpush1.msra.mxu0 0.0
        %2026 = vmatprep.subr.mxu0 0.0
        %2027 = vmatpush1.msra.mxu0 0.0
        %2028 = vmatprep.mubr.f32.mxu0 0.0
        %v2029 = vand.u32 %v858, 4294901760
        %2030 = vmatmul.mubr.f32.gmra.mrb[0].mxu0 %v2029
        %v2031 = vpop.f32.mrb[0].mxu0
        %v2032 = vadd.f32 %v1941, %v2031
        %v2033 = vpop.f32.mrb[0].mxu0
        %2034 = vmatprep.mubr.f32.mxu0 0.0
        %v2035 = vand.u32 %v861, 4294901760
        %2036 = vmatmul.mubr.f32.gmra.mrb[0].mxu0 %v2035
        %v2037 = vpop.f32.mrb[0].mxu0
        %v2038 = vadd.f32 %v1951, %v2037
        %v2039 = vpop.f32.mrb[0].mxu0
        %2040 = vdwg.mxu0
        %2041 = vmatprep.subr.mxu0 0.0
        %v2042 = vand.u32 %v346, 4294901760
        %v2043 = vsub.f32 %v346, %v2042
        %2044 = vmatpush1.msra.mxu0 %v2043
        %2045 = vmatprep.subr.mxu0 0.0
        %v2046 = vand.u32 %v347, 4294901760
        %v2047 = vsub.f32 %v347, %v2046
        %2048 = vmatpush1.msra.mxu0 %v2047
        %2049 = vmatprep.subr.mxu0 0.0
        %2050 = vmatpush1.msra.mxu0 0.0
        %2051 = vmatprep.subr.mxu0 0.0
        %2052 = vmatpush1.msra.mxu0 0.0
        %2053 = vmatprep.subr.mxu0 0.0
        %2054 = vmatpush1.msra.mxu0 0.0
        %2055 = vmatprep.subr.mxu0 0.0
        %2056 = vmatpush1.msra.mxu0 0.0
        %2057 = vmatprep.subr.mxu0 0.0
        %2058 = vmatpush1.msra.mxu0 0.0
        %2059 = vmatprep.subr.mxu0 0.0
        %2060 = vmatpush1.msra.mxu0 0.0
        %2061 = vmatprep.subr.mxu0 0.0
        %2062 = vmatpush1.msra.mxu0 0.0
        %2063 = vmatprep.subr.mxu0 0.0
        %2064 = vmatpush1.msra.mxu0 0.0
        %2065 = vmatprep.subr.mxu0 0.0
        %2066 = vmatpush1.msra.mxu0 0.0
        %2067 = vmatprep.subr.mxu0 0.0
        %2068 = vmatpush1.msra.mxu0 0.0
        %2069 = vmatprep.subr.mxu0 0.0
        %2070 = vmatpush1.msra.mxu0 0.0
        %2071 = vmatprep.subr.mxu0 0.0
        %2072 = vmatpush1.msra.mxu0 0.0
        %2073 = vmatprep.subr.mxu0 0.0
        %2074 = vmatpush1.msra.mxu0 0.0
        %2075 = vmatprep.subr.mxu0 0.0
        %2076 = vmatpush1.msra.mxu0 0.0
        %2077 = vmatprep.subr.mxu0 0.0
        %2078 = vmatpush1.msra.mxu0 0.0
        %2079 = vmatprep.subr.mxu0 0.0
        %2080 = vmatpush1.msra.mxu0 0.0
        %2081 = vmatprep.subr.mxu0 0.0
        %2082 = vmatpush1.msra.mxu0 0.0
        %2083 = vmatprep.subr.mxu0 0.0
        %2084 = vmatpush1.msra.mxu0 0.0
        %2085 = vmatprep.subr.mxu0 0.0
        %2086 = vmatpush1.msra.mxu0 0.0
        %2087 = vmatprep.subr.mxu0 0.0
        %2088 = vmatpush1.msra.mxu0 0.0
        %2089 = vmatprep.subr.mxu0 0.0
        %2090 = vmatpush1.msra.mxu0 0.0
        %2091 = vmatprep.subr.mxu0 0.0
        %2092 = vmatpush1.msra.mxu0 0.0
        %2093 = vmatprep.subr.mxu0 0.0
        %2094 = vmatpush1.msra.mxu0 0.0
        %2095 = vmatprep.subr.mxu0 0.0
        %2096 = vmatpush1.msra.mxu0 0.0
        %2097 = vmatprep.subr.mxu0 0.0
        %2098 = vmatpush1.msra.mxu0 0.0
        %2099 = vmatprep.subr.mxu0 0.0
        %2100 = vmatpush1.msra.mxu0 0.0
        %2101 = vmatprep.subr.mxu0 0.0
        %2102 = vmatpush1.msra.mxu0 0.0
        %2103 = vmatprep.subr.mxu0 0.0
        %2104 = vmatpush1.msra.mxu0 0.0
        %2105 = vmatprep.subr.mxu0 0.0
        %2106 = vmatpush1.msra.mxu0 0.0
        %2107 = vmatprep.subr.mxu0 0.0
        %2108 = vmatpush1.msra.mxu0 0.0
        %2109 = vmatprep.mubr.f32.mxu0 0.0
        %v2110 = vand.u32 %v858, 4294901760
        %v2111 = vsub.f32 %v858, %v2110
        %2112 = vmatmul.mubr.f32.gmra.mrb[0].mxu0 %v2111
        %v2113 = vpop.f32.mrb[0].mxu0
        %v2114 = vadd.f32 %v2032, %v2113
        %v2115 = vpop.f32.mrb[0].mxu0
        %2116 = vmatprep.mubr.f32.mxu0 0.0
        %v2117 = vand.u32 %v861, 4294901760
        %v2118 = vsub.f32 %v861, %v2117
        %2119 = vmatmul.mubr.f32.gmra.mrb[0].mxu0 %v2118
        %v2120 = vpop.f32.mrb[0].mxu0
        %v2121 = vadd.f32 %v2038, %v2120
        %v2122 = vpop.f32.mrb[0].mxu0
        %2123 = vdwg.mxu0
        %2124 = vmatprep.subr.mxu0 0.0
        %v2125 = vand.u32 %v346, 4294901760
        %2126 = vmatpush1.msra.mxu0 %v2125
        %2127 = vmatprep.subr.mxu0 0.0
        %v2128 = vand.u32 %v347, 4294901760
        %2129 = vmatpush1.msra.mxu0 %v2128
        %2130 = vmatprep.subr.mxu0 0.0
        %2131 = vmatpush1.msra.mxu0 0.0
        %2132 = vmatprep.subr.mxu0 0.0
        %2133 = vmatpush1.msra.mxu0 0.0
        %2134 = vmatprep.subr.mxu0 0.0
        %2135 = vmatpush1.msra.mxu0 0.0
        %2136 = vmatprep.subr.mxu0 0.0
        %2137 = vmatpush1.msra.mxu0 0.0
        %2138 = vmatprep.subr.mxu0 0.0
        %2139 = vmatpush1.msra.mxu0 0.0
        %2140 = vmatprep.subr.mxu0 0.0
        %2141 = vmatpush1.msra.mxu0 0.0
        %2142 = vmatprep.subr.mxu0 0.0
        %2143 = vmatpush1.msra.mxu0 0.0
        %2144 = vmatprep.subr.mxu0 0.0
        %2145 = vmatpush1.msra.mxu0 0.0
        %2146 = vmatprep.subr.mxu0 0.0
        %2147 = vmatpush1.msra.mxu0 0.0
        %2148 = vmatprep.subr.mxu0 0.0
        %2149 = vmatpush1.msra.mxu0 0.0
        %2150 = vmatprep.subr.mxu0 0.0
        %2151 = vmatpush1.msra.mxu0 0.0
        %2152 = vmatprep.subr.mxu0 0.0
        %2153 = vmatpush1.msra.mxu0 0.0
        %2154 = vmatprep.subr.mxu0 0.0
        %2155 = vmatpush1.msra.mxu0 0.0
        %2156 = vmatprep.subr.mxu0 0.0
        %2157 = vmatpush1.msra.mxu0 0.0
        %2158 = vmatprep.subr.mxu0 0.0
        %2159 = vmatpush1.msra.mxu0 0.0
        %2160 = vmatprep.subr.mxu0 0.0
        %2161 = vmatpush1.msra.mxu0 0.0
        %2162 = vmatprep.subr.mxu0 0.0
        %2163 = vmatpush1.msra.mxu0 0.0
        %2164 = vmatprep.subr.mxu0 0.0
        %2165 = vmatpush1.msra.mxu0 0.0
        %2166 = vmatprep.subr.mxu0 0.0
        %2167 = vmatpush1.msra.mxu0 0.0
        %2168 = vmatprep.subr.mxu0 0.0
        %2169 = vmatpush1.msra.mxu0 0.0
        %2170 = vmatprep.subr.mxu0 0.0
        %2171 = vmatpush1.msra.mxu0 0.0
        %2172 = vmatprep.subr.mxu0 0.0
        %2173 = vmatpush1.msra.mxu0 0.0
        %2174 = vmatprep.subr.mxu0 0.0
        %2175 = vmatpush1.msra.mxu0 0.0
        %2176 = vmatprep.subr.mxu0 0.0
        %2177 = vmatpush1.msra.mxu0 0.0
        %2178 = vmatprep.subr.mxu0 0.0
        %2179 = vmatpush1.msra.mxu0 0.0
        %2180 = vmatprep.subr.mxu0 0.0
        %2181 = vmatpush1.msra.mxu0 0.0
        %2182 = vmatprep.subr.mxu0 0.0
        %2183 = vmatpush1.msra.mxu0 0.0
        %2184 = vmatprep.subr.mxu0 0.0
        %2185 = vmatpush1.msra.mxu0 0.0
        %2186 = vmatprep.subr.mxu0 0.0
        %2187 = vmatpush1.msra.mxu0 0.0
        %2188 = vmatprep.subr.mxu0 0.0
        %2189 = vmatpush1.msra.mxu0 0.0
        %2190 = vmatprep.mubr.f32.mxu0 0.0
        %v2191 = vand.u32 %v858, 4294901760
        %v2192 = vsub.f32 %v858, %v2191
        %v2193 = vand.u32 %v2192, 4294901760
        %2194 = vmatmul.mubr.f32.gmra.mrb[0].mxu0 %v2193
        %v2195 = vpop.f32.mrb[0].mxu0
        %v2196 = vadd.f32 %v2114, %v2195
        %v2197 = vpop.f32.mrb[0].mxu0
        %2198 = vmatprep.mubr.f32.mxu0 0.0
        %v2199 = vand.u32 %v861, 4294901760
        %v2200 = vsub.f32 %v861, %v2199
        %v2201 = vand.u32 %v2200, 4294901760
        %2202 = vmatmul.mubr.f32.gmra.mrb[0].mxu0 %v2201
        %v2203 = vpop.f32.mrb[0].mxu0
        %v2204 = vadd.f32 %v2121, %v2203
        %v2205 = vpop.f32.mrb[0].mxu0
        %2206 = vdwg.mxu0
        %2207 = vmatprep.subr.mxu0 0.0
        %v2208 = vand.u32 %v346, 4294901760
        %v2209 = vsub.f32 %v346, %v2208
        %v2210 = vand.u32 %v2209, 4294901760
        %2211 = vmatpush1.msra.mxu0 %v2210
        %2212 = vmatprep.subr.mxu0 0.0
        %v2213 = vand.u32 %v347, 4294901760
        %v2214 = vsub.f32 %v347, %v2213
        %v2215 = vand.u32 %v2214, 4294901760
        %2216 = vmatpush1.msra.mxu0 %v2215
        %2217 = vmatprep.subr.mxu0 0.0
        %2218 = vmatpush1.msra.mxu0 0.0
        %2219 = vmatprep.subr.mxu0 0.0
        %2220 = vmatpush1.msra.mxu0 0.0
        %2221 = vmatprep.subr.mxu0 0.0
        %2222 = vmatpush1.msra.mxu0 0.0
        %2223 = vmatprep.subr.mxu0 0.0
        %2224 = vmatpush1.msra.mxu0 0.0
        %2225 = vmatprep.subr.mxu0 0.0
        %2226 = vmatpush1.msra.mxu0 0.0
        %2227 = vmatprep.subr.mxu0 0.0
        %2228 = vmatpush1.msra.mxu0 0.0
        %2229 = vmatprep.subr.mxu0 0.0
        %2230 = vmatpush1.msra.mxu0 0.0
        %2231 = vmatprep.subr.mxu0 0.0
        %2232 = vmatpush1.msra.mxu0 0.0
        %2233 = vmatprep.subr.mxu0 0.0
        %2234 = vmatpush1.msra.mxu0 0.0
        %2235 = vmatprep.subr.mxu0 0.0
        %2236 = vmatpush1.msra.mxu0 0.0
        %2237 = vmatprep.subr.mxu0 0.0
        %2238 = vmatpush1.msra.mxu0 0.0
        %2239 = vmatprep.subr.mxu0 0.0
        %2240 = vmatpush1.msra.mxu0 0.0
        %2241 = vmatprep.subr.mxu0 0.0
        %2242 = vmatpush1.msra.mxu0 0.0
        %2243 = vmatprep.subr.mxu0 0.0
        %2244 = vmatpush1.msra.mxu0 0.0
        %2245 = vmatprep.subr.mxu0 0.0
        %2246 = vmatpush1.msra.mxu0 0.0
        %2247 = vmatprep.subr.mxu0 0.0
        %2248 = vmatpush1.msra.mxu0 0.0
        %2249 = vmatprep.subr.mxu0 0.0
        %2250 = vmatpush1.msra.mxu0 0.0
        %2251 = vmatprep.subr.mxu0 0.0
        %2252 = vmatpush1.msra.mxu0 0.0
        %2253 = vmatprep.subr.mxu0 0.0
        %2254 = vmatpush1.msra.mxu0 0.0
        %2255 = vmatprep.subr.mxu0 0.0
        %2256 = vmatpush1.msra.mxu0 0.0
        %2257 = vmatprep.subr.mxu0 0.0
        %2258 = vmatpush1.msra.mxu0 0.0
        %2259 = vmatprep.subr.mxu0 0.0
        %2260 = vmatpush1.msra.mxu0 0.0
        %2261 = vmatprep.subr.mxu0 0.0
        %2262 = vmatpush1.msra.mxu0 0.0
        %2263 = vmatprep.subr.mxu0 0.0
        %2264 = vmatpush1.msra.mxu0 0.0
        %2265 = vmatprep.subr.mxu0 0.0
        %2266 = vmatpush1.msra.mxu0 0.0
        %2267 = vmatprep.subr.mxu0 0.0
        %2268 = vmatpush1.msra.mxu0 0.0
        %2269 = vmatprep.subr.mxu0 0.0
        %2270 = vmatpush1.msra.mxu0 0.0
        %2271 = vmatprep.subr.mxu0 0.0
        %2272 = vmatpush1.msra.mxu0 0.0
        %2273 = vmatprep.subr.mxu0 0.0
        %2274 = vmatpush1.msra.mxu0 0.0
        %2275 = vmatprep.subr.mxu0 0.0
        %2276 = vmatpush1.msra.mxu0 0.0
        %2277 = vmatprep.mubr.f32.mxu0 0.0
        %v2278 = vand.u32 %v858, 4294901760
        %2279 = vmatmul.mubr.f32.gmra.mrb[0].mxu0 %v2278
        %v2280 = vpop.f32.mrb[0].mxu0
        %v2281 = vadd.f32 %v2196, %v2280
        %v2282 = vpop.f32.mrb[0].mxu0
        %2283 = vmatprep.mubr.f32.mxu0 0.0
        %v2284 = vand.u32 %v861, 4294901760
        %2285 = vmatmul.mubr.f32.gmra.mrb[0].mxu0 %v2284
        %v2286 = vpop.f32.mrb[0].mxu0
        %v2287 = vadd.f32 %v2204, %v2286
        %v2288 = vpop.f32.mrb[0].mxu0
        %2289 = vdwg.mxu0
        %2290 = vmatprep.subr.mxu0 0.0
        %v2291 = vand.u32 %v346, 4294901760
        %2292 = vmatpush1.msra.mxu0 %v2291
        %2293 = vmatprep.subr.mxu0 0.0
        %v2294 = vand.u32 %v347, 4294901760
        %2295 = vmatpush1.msra.mxu0 %v2294
        %2296 = vmatprep.subr.mxu0 0.0
        %2297 = vmatpush1.msra.mxu0 0.0
        %2298 = vmatprep.subr.mxu0 0.0
        %2299 = vmatpush1.msra.mxu0 0.0
        %2300 = vmatprep.subr.mxu0 0.0
        %2301 = vmatpush1.msra.mxu0 0.0
        %2302 = vmatprep.subr.mxu0 0.0
        %2303 = vmatpush1.msra.mxu0 0.0
        %2304 = vmatprep.subr.mxu0 0.0
        %2305 = vmatpush1.msra.mxu0 0.0
        %2306 = vmatprep.subr.mxu0 0.0
        %2307 = vmatpush1.msra.mxu0 0.0
        %2308 = vmatprep.subr.mxu0 0.0
        %2309 = vmatpush1.msra.mxu0 0.0
        %2310 = vmatprep.subr.mxu0 0.0
        %2311 = vmatpush1.msra.mxu0 0.0
        %2312 = vmatprep.subr.mxu0 0.0
        %2313 = vmatpush1.msra.mxu0 0.0
        %2314 = vmatprep.subr.mxu0 0.0
        %2315 = vmatpush1.msra.mxu0 0.0
        %2316 = vmatprep.subr.mxu0 0.0
        %2317 = vmatpush1.msra.mxu0 0.0
        %2318 = vmatprep.subr.mxu0 0.0
        %2319 = vmatpush1.msra.mxu0 0.0
        %2320 = vmatprep.subr.mxu0 0.0
        %2321 = vmatpush1.msra.mxu0 0.0
        %2322 = vmatprep.subr.mxu0 0.0
        %2323 = vmatpush1.msra.mxu0 0.0
        %2324 = vmatprep.subr.mxu0 0.0
        %2325 = vmatpush1.msra.mxu0 0.0
        %2326 = vmatprep.subr.mxu0 0.0
        %2327 = vmatpush1.msra.mxu0 0.0
        %2328 = vmatprep.subr.mxu0 0.0
        %2329 = vmatpush1.msra.mxu0 0.0
        %2330 = vmatprep.subr.mxu0 0.0
        %2331 = vmatpush1.msra.mxu0 0.0
        %2332 = vmatprep.subr.mxu0 0.0
        %2333 = vmatpush1.msra.mxu0 0.0
        %2334 = vmatprep.subr.mxu0 0.0
        %2335 = vmatpush1.msra.mxu0 0.0
        %2336 = vmatprep.subr.mxu0 0.0
        %2337 = vmatpush1.msra.mxu0 0.0
        %2338 = vmatprep.subr.mxu0 0.0
        %2339 = vmatpush1.msra.mxu0 0.0
        %2340 = vmatprep.subr.mxu0 0.0
        %2341 = vmatpush1.msra.mxu0 0.0
        %2342 = vmatprep.subr.mxu0 0.0
        %2343 = vmatpush1.msra.mxu0 0.0
        %2344 = vmatprep.subr.mxu0 0.0
        %2345 = vmatpush1.msra.mxu0 0.0
        %2346 = vmatprep.subr.mxu0 0.0
        %2347 = vmatpush1.msra.mxu0 0.0
        %2348 = vmatprep.subr.mxu0 0.0
        %2349 = vmatpush1.msra.mxu0 0.0
        %2350 = vmatprep.subr.mxu0 0.0
        %2351 = vmatpush1.msra.mxu0 0.0
        %2352 = vmatprep.subr.mxu0 0.0
        %2353 = vmatpush1.msra.mxu0 0.0
        %2354 = vmatprep.subr.mxu0 0.0
        %2355 = vmatpush1.msra.mxu0 0.0
        %2356 = vmatprep.mubr.f32.mxu0 0.0
        %v2357 = vand.u32 %v858, 4294901760
        %2358 = vmatmul.mubr.f32.gmra.mrb[0].mxu0 %v2357
        %v2359 = vpop.f32.mrb[0].mxu0
        %v2360 = vadd.f32 %v2281, %v2359
        %v2361 = vpop.f32.mrb[0].mxu0
        %2362 = vmatprep.mubr.f32.mxu0 0.0
        %v2363 = vand.u32 %v861, 4294901760
        %2364 = vmatmul.mubr.f32.gmra.mrb[0].mxu0 %v2363
        %v2365 = vpop.f32.mrb[0].mxu0
        %v2366 = vadd.f32 %v2287, %v2365
        %v2367 = vpop.f32.mrb[0].mxu0
        %2368 = vdwg.mxu0
        %v2369 = vmul.f32 %v848, %v1858
        %v2370 = vmul.f32 %v854, %v1864
        %v2371 = vmul.f32 %v1356, %v2360
        %v2372 = vmul.f32 %v1362, %v2366
        %v2373 = vadd.f32 %v2369, %v2371
        %v2374 = vadd.f32 %v2370, %v2372
        %v2375 = vmul.f32 %v848, %v2360
        %v2376 = vmul.f32 %v854, %v2366
        %v2377 = vmul.f32 %v1356, %v1858
        %v2378 = vmul.f32 %v1362, %v1864
        %v2379 = vsub.f32 %v2375, %v2377
        %v2380 = vsub.f32 %v2376, %v2378
        %2381 = vmatprep.subr.mxu0 0.0
        %v2382 = vand.u32 %v2373, 4294901760
        %2383 = vmatpush1.msra.mxu0 %v2382
        %2384 = vmatprep.subr.mxu0 0.0
        %v2385 = vand.u32 %v2374, 4294901760
        %2386 = vmatpush1.msra.mxu0 %v2385
        %2387 = vmatprep.subr.mxu0 0.0
        %2388 = vmatpush1.msra.mxu0 0.0
        %2389 = vmatprep.subr.mxu0 0.0
        %2390 = vmatpush1.msra.mxu0 0.0
        %2391 = vmatprep.subr.mxu0 0.0
        %2392 = vmatpush1.msra.mxu0 0.0
        %2393 = vmatprep.subr.mxu0 0.0
        %2394 = vmatpush1.msra.mxu0 0.0
        %2395 = vmatprep.subr.mxu0 0.0
        %2396 = vmatpush1.msra.mxu0 0.0
        %2397 = vmatprep.subr.mxu0 0.0
        %2398 = vmatpush1.msra.mxu0 0.0
        %2399 = vmatprep.subr.mxu0 0.0
        %2400 = vmatpush1.msra.mxu0 0.0
        %2401 = vmatprep.subr.mxu0 0.0
        %2402 = vmatpush1.msra.mxu0 0.0
        %2403 = vmatprep.subr.mxu0 0.0
        %2404 = vmatpush1.msra.mxu0 0.0
        %2405 = vmatprep.subr.mxu0 0.0
        %2406 = vmatpush1.msra.mxu0 0.0
        %2407 = vmatprep.subr.mxu0 0.0
        %2408 = vmatpush1.msra.mxu0 0.0
        %2409 = vmatprep.subr.mxu0 0.0
        %2410 = vmatpush1.msra.mxu0 0.0
        %2411 = vmatprep.subr.mxu0 0.0
        %2412 = vmatpush1.msra.mxu0 0.0
        %2413 = vmatprep.subr.mxu0 0.0
        %2414 = vmatpush1.msra.mxu0 0.0
        %2415 = vmatprep.subr.mxu0 0.0
        %2416 = vmatpush1.msra.mxu0 0.0
        %2417 = vmatprep.subr.mxu0 0.0
        %2418 = vmatpush1.msra.mxu0 0.0
        %2419 = vmatprep.subr.mxu0 0.0
        %2420 = vmatpush1.msra.mxu0 0.0
        %2421 = vmatprep.subr.mxu0 0.0
        %2422 = vmatpush1.msra.mxu0 0.0
        %2423 = vmatprep.subr.mxu0 0.0
        %2424 = vmatpush1.msra.mxu0 0.0
        %2425 = vmatprep.subr.mxu0 0.0
        %2426 = vmatpush1.msra.mxu0 0.0
        %2427 = vmatprep.subr.mxu0 0.0
        %2428 = vmatpush1.msra.mxu0 0.0
        %2429 = vmatprep.subr.mxu0 0.0
        %2430 = vmatpush1.msra.mxu0 0.0
        %2431 = vmatprep.subr.mxu0 0.0
        %2432 = vmatpush1.msra.mxu0 0.0
        %2433 = vmatprep.subr.mxu0 0.0
        %2434 = vmatpush1.msra.mxu0 0.0
        %2435 = vmatprep.subr.mxu0 0.0
        %2436 = vmatpush1.msra.mxu0 0.0
        %2437 = vmatprep.subr.mxu0 0.0
        %2438 = vmatpush1.msra.mxu0 0.0
        %2439 = vmatprep.subr.mxu0 0.0
        %2440 = vmatpush1.msra.mxu0 0.0
        %2441 = vmatprep.subr.mxu0 0.0
        %2442 = vmatpush1.msra.mxu0 0.0
        %2443 = vmatprep.subr.mxu0 0.0
        %2444 = vmatpush1.msra.mxu0 0.0
        %2445 = vmatprep.subr.mxu0 0.0
        %2446 = vmatpush1.msra.mxu0 0.0
        %2447 = vmatprep.mubr.f32.mxu0 0.0
        %v2448 = vand.u32 %v350, 4294901760
        %v2449 = vsub.f32 %v350, %v2448
        %v2450 = vand.u32 %v2449, 4294901760
        %v2451 = vsub.f32 %v2449, %v2450
        %v2452 = vand.u32 %v2451, 4294901760
        %2453 = vmatmul.mubr.f32.gmra.mrb[0].mxu0 %v2452
        %v2454 = vpop.f32.mrb[0].mxu0
        %v2455 = vadd.f32 0.0, %v2454
        %v2456 = vpop.f32.mrb[0].mxu0
        %2457 = vmatprep.mubr.f32.mxu0 0.0
        %v2458 = vand.u32 %v353, 4294901760
        %v2459 = vsub.f32 %v353, %v2458
        %v2460 = vand.u32 %v2459, 4294901760
        %v2461 = vsub.f32 %v2459, %v2460
        %v2462 = vand.u32 %v2461, 4294901760
        %2463 = vmatmul.mubr.f32.gmra.mrb[0].mxu0 %v2462
        %v2464 = vpop.f32.mrb[0].mxu0
        %v2465 = vadd.f32 0.0, %v2464
        %v2466 = vpop.f32.mrb[0].mxu0
        %2467 = vdwg.mxu0
        %2468 = vmatprep.subr.mxu0 0.0
        %v2469 = vand.u32 %v2373, 4294901760
        %v2470 = vsub.f32 %v2373, %v2469
        %v2471 = vand.u32 %v2470, 4294901760
        %v2472 = vsub.f32 %v2470, %v2471
        %v2473 = vand.u32 %v2472, 4294901760
        %2474 = vmatpush1.msra.mxu0 %v2473
        %2475 = vmatprep.subr.mxu0 0.0
        %v2476 = vand.u32 %v2374, 4294901760
        %v2477 = vsub.f32 %v2374, %v2476
        %v2478 = vand.u32 %v2477, 4294901760
        %v2479 = vsub.f32 %v2477, %v2478
        %v2480 = vand.u32 %v2479, 4294901760
        %2481 = vmatpush1.msra.mxu0 %v2480
        %2482 = vmatprep.subr.mxu0 0.0
        %2483 = vmatpush1.msra.mxu0 0.0
        %2484 = vmatprep.subr.mxu0 0.0
        %2485 = vmatpush1.msra.mxu0 0.0
        %2486 = vmatprep.subr.mxu0 0.0
        %2487 = vmatpush1.msra.mxu0 0.0
        %2488 = vmatprep.subr.mxu0 0.0
        %2489 = vmatpush1.msra.mxu0 0.0
        %2490 = vmatprep.subr.mxu0 0.0
        %2491 = vmatpush1.msra.mxu0 0.0
        %2492 = vmatprep.subr.mxu0 0.0
        %2493 = vmatpush1.msra.mxu0 0.0
        %2494 = vmatprep.subr.mxu0 0.0
        %2495 = vmatpush1.msra.mxu0 0.0
        %2496 = vmatprep.subr.mxu0 0.0
        %2497 = vmatpush1.msra.mxu0 0.0
        %2498 = vmatprep.subr.mxu0 0.0
        %2499 = vmatpush1.msra.mxu0 0.0
        %2500 = vmatprep.subr.mxu0 0.0
        %2501 = vmatpush1.msra.mxu0 0.0
        %2502 = vmatprep.subr.mxu0 0.0
        %2503 = vmatpush1.msra.mxu0 0.0
        %2504 = vmatprep.subr.mxu0 0.0
        %2505 = vmatpush1.msra.mxu0 0.0
        %2506 = vmatprep.subr.mxu0 0.0
        %2507 = vmatpush1.msra.mxu0 0.0
        %2508 = vmatprep.subr.mxu0 0.0
        %2509 = vmatpush1.msra.mxu0 0.0
        %2510 = vmatprep.subr.mxu0 0.0
        %2511 = vmatpush1.msra.mxu0 0.0
        %2512 = vmatprep.subr.mxu0 0.0
        %2513 = vmatpush1.msra.mxu0 0.0
        %2514 = vmatprep.subr.mxu0 0.0
        %2515 = vmatpush1.msra.mxu0 0.0
        %2516 = vmatprep.subr.mxu0 0.0
        %2517 = vmatpush1.msra.mxu0 0.0
        %2518 = vmatprep.subr.mxu0 0.0
        %2519 = vmatpush1.msra.mxu0 0.0
        %2520 = vmatprep.subr.mxu0 0.0
        %2521 = vmatpush1.msra.mxu0 0.0
        %2522 = vmatprep.subr.mxu0 0.0
        %2523 = vmatpush1.msra.mxu0 0.0
        %2524 = vmatprep.subr.mxu0 0.0
        %2525 = vmatpush1.msra.mxu0 0.0
        %2526 = vmatprep.subr.mxu0 0.0
        %2527 = vmatpush1.msra.mxu0 0.0
        %2528 = vmatprep.subr.mxu0 0.0
        %2529 = vmatpush1.msra.mxu0 0.0
        %2530 = vmatprep.subr.mxu0 0.0
        %2531 = vmatpush1.msra.mxu0 0.0
        %2532 = vmatprep.subr.mxu0 0.0
        %2533 = vmatpush1.msra.mxu0 0.0
        %2534 = vmatprep.subr.mxu0 0.0
        %2535 = vmatpush1.msra.mxu0 0.0
        %2536 = vmatprep.subr.mxu0 0.0
        %2537 = vmatpush1.msra.mxu0 0.0
        %2538 = vmatprep.subr.mxu0 0.0
        %2539 = vmatpush1.msra.mxu0 0.0
        %2540 = vmatprep.subr.mxu0 0.0
        %2541 = vmatpush1.msra.mxu0 0.0
        %2542 = vmatprep.mubr.f32.mxu0 0.0
        %v2543 = vand.u32 %v350, 4294901760
        %2544 = vmatmul.mubr.f32.gmra.mrb[0].mxu0 %v2543
        %v2545 = vpop.f32.mrb[0].mxu0
        %v2546 = vadd.f32 %v2455, %v2545
        %v2547 = vpop.f32.mrb[0].mxu0
        %2548 = vmatprep.mubr.f32.mxu0 0.0
        %v2549 = vand.u32 %v353, 4294901760
        %2550 = vmatmul.mubr.f32.gmra.mrb[0].mxu0 %v2549
        %v2551 = vpop.f32.mrb[0].mxu0
        %v2552 = vadd.f32 %v2465, %v2551
        %v2553 = vpop.f32.mrb[0].mxu0
        %2554 = vdwg.mxu0
        %2555 = vmatprep.subr.mxu0 0.0
        %v2556 = vand.u32 %v2373, 4294901760
        %v2557 = vsub.f32 %v2373, %v2556
        %2558 = vmatpush1.msra.mxu0 %v2557
        %2559 = vmatprep.subr.mxu0 0.0
        %v2560 = vand.u32 %v2374, 4294901760
        %v2561 = vsub.f32 %v2374, %v2560
        %2562 = vmatpush1.msra.mxu0 %v2561
        %2563 = vmatprep.subr.mxu0 0.0
        %2564 = vmatpush1.msra.mxu0 0.0
        %2565 = vmatprep.subr.mxu0 0.0
        %2566 = vmatpush1.msra.mxu0 0.0
        %2567 = vmatprep.subr.mxu0 0.0
        %2568 = vmatpush1.msra.mxu0 0.0
        %2569 = vmatprep.subr.mxu0 0.0
        %2570 = vmatpush1.msra.mxu0 0.0
        %2571 = vmatprep.subr.mxu0 0.0
        %2572 = vmatpush1.msra.mxu0 0.0
        %2573 = vmatprep.subr.mxu0 0.0
        %2574 = vmatpush1.msra.mxu0 0.0
        %2575 = vmatprep.subr.mxu0 0.0
        %2576 = vmatpush1.msra.mxu0 0.0
        %2577 = vmatprep.subr.mxu0 0.0
        %2578 = vmatpush1.msra.mxu0 0.0
        %2579 = vmatprep.subr.mxu0 0.0
        %2580 = vmatpush1.msra.mxu0 0.0
        %2581 = vmatprep.subr.mxu0 0.0
        %2582 = vmatpush1.msra.mxu0 0.0
        %2583 = vmatprep.subr.mxu0 0.0
        %2584 = vmatpush1.msra.mxu0 0.0
        %2585 = vmatprep.subr.mxu0 0.0
        %2586 = vmatpush1.msra.mxu0 0.0
        %2587 = vmatprep.subr.mxu0 0.0
        %2588 = vmatpush1.msra.mxu0 0.0
        %2589 = vmatprep.subr.mxu0 0.0
        %2590 = vmatpush1.msra.mxu0 0.0
        %2591 = vmatprep.subr.mxu0 0.0
        %2592 = vmatpush1.msra.mxu0 0.0
        %2593 = vmatprep.subr.mxu0 0.0
        %2594 = vmatpush1.msra.mxu0 0.0
        %2595 = vmatprep.subr.mxu0 0.0
        %2596 = vmatpush1.msra.mxu0 0.0
        %2597 = vmatprep.subr.mxu0 0.0
        %2598 = vmatpush1.msra.mxu0 0.0
        %2599 = vmatprep.subr.mxu0 0.0
        %2600 = vmatpush1.msra.mxu0 0.0
        %2601 = vmatprep.subr.mxu0 0.0
        %2602 = vmatpush1.msra.mxu0 0.0
        %2603 = vmatprep.subr.mxu0 0.0
        %2604 = vmatpush1.msra.mxu0 0.0
        %2605 = vmatprep.subr.mxu0 0.0
        %2606 = vmatpush1.msra.mxu0 0.0
        %2607 = vmatprep.subr.mxu0 0.0
        %2608 = vmatpush1.msra.mxu0 0.0
        %2609 = vmatprep.subr.mxu0 0.0
        %2610 = vmatpush1.msra.mxu0 0.0
        %2611 = vmatprep.subr.mxu0 0.0
        %2612 = vmatpush1.msra.mxu0 0.0
        %2613 = vmatprep.subr.mxu0 0.0
        %2614 = vmatpush1.msra.mxu0 0.0
        %2615 = vmatprep.subr.mxu0 0.0
        %2616 = vmatpush1.msra.mxu0 0.0
        %2617 = vmatprep.subr.mxu0 0.0
        %2618 = vmatpush1.msra.mxu0 0.0
        %2619 = vmatprep.subr.mxu0 0.0
        %2620 = vmatpush1.msra.mxu0 0.0
        %2621 = vmatprep.subr.mxu0 0.0
        %2622 = vmatpush1.msra.mxu0 0.0
        %2623 = vmatprep.mubr.f32.mxu0 0.0
        %v2624 = vand.u32 %v350, 4294901760
        %v2625 = vsub.f32 %v350, %v2624
        %2626 = vmatmul.mubr.f32.gmra.mrb[0].mxu0 %v2625
        %v2627 = vpop.f32.mrb[0].mxu0
        %v2628 = vadd.f32 %v2546, %v2627
        %v2629 = vpop.f32.mrb[0].mxu0
        %2630 = vmatprep.mubr.f32.mxu0 0.0
        %v2631 = vand.u32 %v353, 4294901760
        %v2632 = vsub.f32 %v353, %v2631
        %2633 = vmatmul.mubr.f32.gmra.mrb[0].mxu0 %v2632
        %v2634 = vpop.f32.mrb[0].mxu0
        %v2635 = vadd.f32 %v2552, %v2634
        %v2636 = vpop.f32.mrb[0].mxu0
        %2637 = vdwg.mxu0
        %2638 = vmatprep.subr.mxu0 0.0
        %v2639 = vand.u32 %v2373, 4294901760
        %2640 = vmatpush1.msra.mxu0 %v2639
        %2641 = vmatprep.subr.mxu0 0.0
        %v2642 = vand.u32 %v2374, 4294901760
        %2643 = vmatpush1.msra.mxu0 %v2642
        %2644 = vmatprep.subr.mxu0 0.0
        %2645 = vmatpush1.msra.mxu0 0.0
        %2646 = vmatprep.subr.mxu0 0.0
        %2647 = vmatpush1.msra.mxu0 0.0
        %2648 = vmatprep.subr.mxu0 0.0
        %2649 = vmatpush1.msra.mxu0 0.0
        %2650 = vmatprep.subr.mxu0 0.0
        %2651 = vmatpush1.msra.mxu0 0.0
        %2652 = vmatprep.subr.mxu0 0.0
        %2653 = vmatpush1.msra.mxu0 0.0
        %2654 = vmatprep.subr.mxu0 0.0
        %2655 = vmatpush1.msra.mxu0 0.0
        %2656 = vmatprep.subr.mxu0 0.0
        %2657 = vmatpush1.msra.mxu0 0.0
        %2658 = vmatprep.subr.mxu0 0.0
        %2659 = vmatpush1.msra.mxu0 0.0
        %2660 = vmatprep.subr.mxu0 0.0
        %2661 = vmatpush1.msra.mxu0 0.0
        %2662 = vmatprep.subr.mxu0 0.0
        %2663 = vmatpush1.msra.mxu0 0.0
        %2664 = vmatprep.subr.mxu0 0.0
        %2665 = vmatpush1.msra.mxu0 0.0
        %2666 = vmatprep.subr.mxu0 0.0
        %2667 = vmatpush1.msra.mxu0 0.0
        %2668 = vmatprep.subr.mxu0 0.0
        %2669 = vmatpush1.msra.mxu0 0.0
        %2670 = vmatprep.subr.mxu0 0.0
        %2671 = vmatpush1.msra.mxu0 0.0
        %2672 = vmatprep.subr.mxu0 0.0
        %2673 = vmatpush1.msra.mxu0 0.0
        %2674 = vmatprep.subr.mxu0 0.0
        %2675 = vmatpush1.msra.mxu0 0.0
        %2676 = vmatprep.subr.mxu0 0.0
        %2677 = vmatpush1.msra.mxu0 0.0
        %2678 = vmatprep.subr.mxu0 0.0
        %2679 = vmatpush1.msra.mxu0 0.0
        %2680 = vmatprep.subr.mxu0 0.0
        %2681 = vmatpush1.msra.mxu0 0.0
        %2682 = vmatprep.subr.mxu0 0.0
        %2683 = vmatpush1.msra.mxu0 0.0
        %2684 = vmatprep.subr.mxu0 0.0
        %2685 = vmatpush1.msra.mxu0 0.0
        %2686 = vmatprep.subr.mxu0 0.0
        %2687 = vmatpush1.msra.mxu0 0.0
        %2688 = vmatprep.subr.mxu0 0.0
        %2689 = vmatpush1.msra.mxu0 0.0
        %2690 = vmatprep.subr.mxu0 0.0
        %2691 = vmatpush1.msra.mxu0 0.0
        %2692 = vmatprep.subr.mxu0 0.0
        %2693 = vmatpush1.msra.mxu0 0.0
        %2694 = vmatprep.subr.mxu0 0.0
        %2695 = vmatpush1.msra.mxu0 0.0
        %2696 = vmatprep.subr.mxu0 0.0
        %2697 = vmatpush1.msra.mxu0 0.0
        %2698 = vmatprep.subr.mxu0 0.0
        %2699 = vmatpush1.msra.mxu0 0.0
        %2700 = vmatprep.subr.mxu0 0.0
        %2701 = vmatpush1.msra.mxu0 0.0
        %2702 = vmatprep.subr.mxu0 0.0
        %2703 = vmatpush1.msra.mxu0 0.0
        %2704 = vmatprep.mubr.f32.mxu0 0.0
        %v2705 = vand.u32 %v350, 4294901760
        %v2706 = vsub.f32 %v350, %v2705
        %v2707 = vand.u32 %v2706, 4294901760
        %2708 = vmatmul.mubr.f32.gmra.mrb[0].mxu0 %v2707
        %v2709 = vpop.f32.mrb[0].mxu0
        %v2710 = vadd.f32 %v2628, %v2709
        %v2711 = vpop.f32.mrb[0].mxu0
        %2712 = vmatprep.mubr.f32.mxu0 0.0
        %v2713 = vand.u32 %v353, 4294901760
        %v2714 = vsub.f32 %v353, %v2713
        %v2715 = vand.u32 %v2714, 4294901760
        %2716 = vmatmul.mubr.f32.gmra.mrb[0].mxu0 %v2715
        %v2717 = vpop.f32.mrb[0].mxu0
        %v2718 = vadd.f32 %v2635, %v2717
        %v2719 = vpop.f32.mrb[0].mxu0
        %2720 = vdwg.mxu0
        %2721 = vmatprep.subr.mxu0 0.0
        %v2722 = vand.u32 %v2373, 4294901760
        %v2723 = vsub.f32 %v2373, %v2722
        %v2724 = vand.u32 %v2723, 4294901760
        %2725 = vmatpush1.msra.mxu0 %v2724
        %2726 = vmatprep.subr.mxu0 0.0
        %v2727 = vand.u32 %v2374, 4294901760
        %v2728 = vsub.f32 %v2374, %v2727
        %v2729 = vand.u32 %v2728, 4294901760
        %2730 = vmatpush1.msra.mxu0 %v2729
        %2731 = vmatprep.subr.mxu0 0.0
        %2732 = vmatpush1.msra.mxu0 0.0
        %2733 = vmatprep.subr.mxu0 0.0
        %2734 = vmatpush1.msra.mxu0 0.0
        %2735 = vmatprep.subr.mxu0 0.0
        %2736 = vmatpush1.msra.mxu0 0.0
        %2737 = vmatprep.subr.mxu0 0.0
        %2738 = vmatpush1.msra.mxu0 0.0
        %2739 = vmatprep.subr.mxu0 0.0
        %2740 = vmatpush1.msra.mxu0 0.0
        %2741 = vmatprep.subr.mxu0 0.0
        %2742 = vmatpush1.msra.mxu0 0.0
        %2743 = vmatprep.subr.mxu0 0.0
        %2744 = vmatpush1.msra.mxu0 0.0
        %2745 = vmatprep.subr.mxu0 0.0
        %2746 = vmatpush1.msra.mxu0 0.0
        %2747 = vmatprep.subr.mxu0 0.0
        %2748 = vmatpush1.msra.mxu0 0.0
        %2749 = vmatprep.subr.mxu0 0.0
        %2750 = vmatpush1.msra.mxu0 0.0
        %2751 = vmatprep.subr.mxu0 0.0
        %2752 = vmatpush1.msra.mxu0 0.0
        %2753 = vmatprep.subr.mxu0 0.0
        %2754 = vmatpush1.msra.mxu0 0.0
        %2755 = vmatprep.subr.mxu0 0.0
        %2756 = vmatpush1.msra.mxu0 0.0
        %2757 = vmatprep.subr.mxu0 0.0
        %2758 = vmatpush1.msra.mxu0 0.0
        %2759 = vmatprep.subr.mxu0 0.0
        %2760 = vmatpush1.msra.mxu0 0.0
        %2761 = vmatprep.subr.mxu0 0.0
        %2762 = vmatpush1.msra.mxu0 0.0
        %2763 = vmatprep.subr.mxu0 0.0
        %2764 = vmatpush1.msra.mxu0 0.0
        %2765 = vmatprep.subr.mxu0 0.0
        %2766 = vmatpush1.msra.mxu0 0.0
        %2767 = vmatprep.subr.mxu0 0.0
        %2768 = vmatpush1.msra.mxu0 0.0
        %2769 = vmatprep.subr.mxu0 0.0
        %2770 = vmatpush1.msra.mxu0 0.0
        %2771 = vmatprep.subr.mxu0 0.0
        %2772 = vmatpush1.msra.mxu0 0.0
        %2773 = vmatprep.subr.mxu0 0.0
        %2774 = vmatpush1.msra.mxu0 0.0
        %2775 = vmatprep.subr.mxu0 0.0
        %2776 = vmatpush1.msra.mxu0 0.0
        %2777 = vmatprep.subr.mxu0 0.0
        %2778 = vmatpush1.msra.mxu0 0.0
        %2779 = vmatprep.subr.mxu0 0.0
        %2780 = vmatpush1.msra.mxu0 0.0
        %2781 = vmatprep.subr.mxu0 0.0
        %2782 = vmatpush1.msra.mxu0 0.0
        %2783 = vmatprep.subr.mxu0 0.0
        %2784 = vmatpush1.msra.mxu0 0.0
        %2785 = vmatprep.subr.mxu0 0.0
        %2786 = vmatpush1.msra.mxu0 0.0
        %2787 = vmatprep.subr.mxu0 0.0
        %2788 = vmatpush1.msra.mxu0 0.0
        %2789 = vmatprep.subr.mxu0 0.0
        %2790 = vmatpush1.msra.mxu0 0.0
        %2791 = vmatprep.mubr.f32.mxu0 0.0
        %v2792 = vand.u32 %v350, 4294901760
        %2793 = vmatmul.mubr.f32.gmra.mrb[0].mxu0 %v2792
        %v2794 = vpop.f32.mrb[0].mxu0
        %v2795 = vadd.f32 %v2710, %v2794
        %v2796 = vpop.f32.mrb[0].mxu0
        %2797 = vmatprep.mubr.f32.mxu0 0.0
        %v2798 = vand.u32 %v353, 4294901760
        %2799 = vmatmul.mubr.f32.gmra.mrb[0].mxu0 %v2798
        %v2800 = vpop.f32.mrb[0].mxu0
        %v2801 = vadd.f32 %v2718, %v2800
        %v2802 = vpop.f32.mrb[0].mxu0
        %2803 = vdwg.mxu0
        %2804 = vmatprep.subr.mxu0 0.0
        %v2805 = vand.u32 %v2373, 4294901760
        %2806 = vmatpush1.msra.mxu0 %v2805
        %2807 = vmatprep.subr.mxu0 0.0
        %v2808 = vand.u32 %v2374, 4294901760
        %2809 = vmatpush1.msra.mxu0 %v2808
        %2810 = vmatprep.subr.mxu0 0.0
        %2811 = vmatpush1.msra.mxu0 0.0
        %2812 = vmatprep.subr.mxu0 0.0
        %2813 = vmatpush1.msra.mxu0 0.0
        %2814 = vmatprep.subr.mxu0 0.0
        %2815 = vmatpush1.msra.mxu0 0.0
        %2816 = vmatprep.subr.mxu0 0.0
        %2817 = vmatpush1.msra.mxu0 0.0
        %2818 = vmatprep.subr.mxu0 0.0
        %2819 = vmatpush1.msra.mxu0 0.0
        %2820 = vmatprep.subr.mxu0 0.0
        %2821 = vmatpush1.msra.mxu0 0.0
        %2822 = vmatprep.subr.mxu0 0.0
        %2823 = vmatpush1.msra.mxu0 0.0
        %2824 = vmatprep.subr.mxu0 0.0
        %2825 = vmatpush1.msra.mxu0 0.0
        %2826 = vmatprep.subr.mxu0 0.0
        %2827 = vmatpush1.msra.mxu0 0.0
        %2828 = vmatprep.subr.mxu0 0.0
        %2829 = vmatpush1.msra.mxu0 0.0
        %2830 = vmatprep.subr.mxu0 0.0
        %2831 = vmatpush1.msra.mxu0 0.0
        %2832 = vmatprep.subr.mxu0 0.0
        %2833 = vmatpush1.msra.mxu0 0.0
        %2834 = vmatprep.subr.mxu0 0.0
        %2835 = vmatpush1.msra.mxu0 0.0
        %2836 = vmatprep.subr.mxu0 0.0
        %2837 = vmatpush1.msra.mxu0 0.0
        %2838 = vmatprep.subr.mxu0 0.0
        %2839 = vmatpush1.msra.mxu0 0.0
        %2840 = vmatprep.subr.mxu0 0.0
        %2841 = vmatpush1.msra.mxu0 0.0
        %2842 = vmatprep.subr.mxu0 0.0
        %2843 = vmatpush1.msra.mxu0 0.0
        %2844 = vmatprep.subr.mxu0 0.0
        %2845 = vmatpush1.msra.mxu0 0.0
        %2846 = vmatprep.subr.mxu0 0.0
        %2847 = vmatpush1.msra.mxu0 0.0
        %2848 = vmatprep.subr.mxu0 0.0
        %2849 = vmatpush1.msra.mxu0 0.0
        %2850 = vmatprep.subr.mxu0 0.0
        %2851 = vmatpush1.msra.mxu0 0.0
        %2852 = vmatprep.subr.mxu0 0.0
        %2853 = vmatpush1.msra.mxu0 0.0
        %2854 = vmatprep.subr.mxu0 0.0
        %2855 = vmatpush1.msra.mxu0 0.0
        %2856 = vmatprep.subr.mxu0 0.0
        %2857 = vmatpush1.msra.mxu0 0.0
        %2858 = vmatprep.subr.mxu0 0.0
        %2859 = vmatpush1.msra.mxu0 0.0
        %2860 = vmatprep.subr.mxu0 0.0
        %2861 = vmatpush1.msra.mxu0 0.0
        %2862 = vmatprep.subr.mxu0 0.0
        %2863 = vmatpush1.msra.mxu0 0.0
        %2864 = vmatprep.subr.mxu0 0.0
        %2865 = vmatpush1.msra.mxu0 0.0
        %2866 = vmatprep.subr.mxu0 0.0
        %2867 = vmatpush1.msra.mxu0 0.0
        %2868 = vmatprep.subr.mxu0 0.0
        %2869 = vmatpush1.msra.mxu0 0.0
        %2870 = vmatprep.mubr.f32.mxu0 0.0
        %v2871 = vand.u32 %v350, 4294901760
        %2872 = vmatmul.mubr.f32.gmra.mrb[0].mxu0 %v2871
        %v2873 = vpop.f32.mrb[0].mxu0
        %v2874 = vadd.f32 %v2795, %v2873
        %v2875 = vpop.f32.mrb[0].mxu0
        %2876 = vmatprep.mubr.f32.mxu0 0.0
        %v2877 = vand.u32 %v353, 4294901760
        %2878 = vmatmul.mubr.f32.gmra.mrb[0].mxu0 %v2877
        %v2879 = vpop.f32.mrb[0].mxu0
        %v2880 = vadd.f32 %v2801, %v2879
        %v2881 = vpop.f32.mrb[0].mxu0
        %2882 = vdwg.mxu0
        %2883 = vmatprep.subr.mxu0 0.0
        %v2884 = vand.u32 %v2379, 4294901760
        %2885 = vmatpush1.msra.mxu0 %v2884
        %2886 = vmatprep.subr.mxu0 0.0
        %v2887 = vand.u32 %v2380, 4294901760
        %2888 = vmatpush1.msra.mxu0 %v2887
        %2889 = vmatprep.subr.mxu0 0.0
        %2890 = vmatpush1.msra.mxu0 0.0
        %2891 = vmatprep.subr.mxu0 0.0
        %2892 = vmatpush1.msra.mxu0 0.0
        %2893 = vmatprep.subr.mxu0 0.0
        %2894 = vmatpush1.msra.mxu0 0.0
        %2895 = vmatprep.subr.mxu0 0.0
        %2896 = vmatpush1.msra.mxu0 0.0
        %2897 = vmatprep.subr.mxu0 0.0
        %2898 = vmatpush1.msra.mxu0 0.0
        %2899 = vmatprep.subr.mxu0 0.0
        %2900 = vmatpush1.msra.mxu0 0.0
        %2901 = vmatprep.subr.mxu0 0.0
        %2902 = vmatpush1.msra.mxu0 0.0
        %2903 = vmatprep.subr.mxu0 0.0
        %2904 = vmatpush1.msra.mxu0 0.0
        %2905 = vmatprep.subr.mxu0 0.0
        %2906 = vmatpush1.msra.mxu0 0.0
        %2907 = vmatprep.subr.mxu0 0.0
        %2908 = vmatpush1.msra.mxu0 0.0
        %2909 = vmatprep.subr.mxu0 0.0
        %2910 = vmatpush1.msra.mxu0 0.0
        %2911 = vmatprep.subr.mxu0 0.0
        %2912 = vmatpush1.msra.mxu0 0.0
        %2913 = vmatprep.subr.mxu0 0.0
        %2914 = vmatpush1.msra.mxu0 0.0
        %2915 = vmatprep.subr.mxu0 0.0
        %2916 = vmatpush1.msra.mxu0 0.0
        %2917 = vmatprep.subr.mxu0 0.0
        %2918 = vmatpush1.msra.mxu0 0.0
        %2919 = vmatprep.subr.mxu0 0.0
        %2920 = vmatpush1.msra.mxu0 0.0
        %2921 = vmatprep.subr.mxu0 0.0
        %2922 = vmatpush1.msra.mxu0 0.0
        %2923 = vmatprep.subr.mxu0 0.0
        %2924 = vmatpush1.msra.mxu0 0.0
        %2925 = vmatprep.subr.mxu0 0.0
        %2926 = vmatpush1.msra.mxu0 0.0
        %2927 = vmatprep.subr.mxu0 0.0
        %2928 = vmatpush1.msra.mxu0 0.0
        %2929 = vmatprep.subr.mxu0 0.0
        %2930 = vmatpush1.msra.mxu0 0.0
        %2931 = vmatprep.subr.mxu0 0.0
        %2932 = vmatpush1.msra.mxu0 0.0
        %2933 = vmatprep.subr.mxu0 0.0
        %2934 = vmatpush1.msra.mxu0 0.0
        %2935 = vmatprep.subr.mxu0 0.0
        %2936 = vmatpush1.msra.mxu0 0.0
        %2937 = vmatprep.subr.mxu0 0.0
        %2938 = vmatpush1.msra.mxu0 0.0
        %2939 = vmatprep.subr.mxu0 0.0
        %2940 = vmatpush1.msra.mxu0 0.0
        %2941 = vmatprep.subr.mxu0 0.0
        %2942 = vmatpush1.msra.mxu0 0.0
        %2943 = vmatprep.subr.mxu0 0.0
        %2944 = vmatpush1.msra.mxu0 0.0
        %2945 = vmatprep.subr.mxu0 0.0
        %2946 = vmatpush1.msra.mxu0 0.0
        %2947 = vmatprep.subr.mxu0 0.0
        %2948 = vmatpush1.msra.mxu0 0.0
        %2949 = vmatprep.mubr.f32.mxu0 0.0
        %v2950 = vand.u32 %v858, 4294901760
        %v2951 = vsub.f32 %v858, %v2950
        %v2952 = vand.u32 %v2951, 4294901760
        %v2953 = vsub.f32 %v2951, %v2952
        %v2954 = vand.u32 %v2953, 4294901760
        %2955 = vmatmul.mubr.f32.gmra.mrb[0].mxu0 %v2954
        %v2956 = vpop.f32.mrb[0].mxu0
        %v2957 = vadd.f32 0.0, %v2956
        %v2958 = vpop.f32.mrb[0].mxu0
        %2959 = vmatprep.mubr.f32.mxu0 0.0
        %v2960 = vand.u32 %v861, 4294901760
        %v2961 = vsub.f32 %v861, %v2960
        %v2962 = vand.u32 %v2961, 4294901760
        %v2963 = vsub.f32 %v2961, %v2962
        %v2964 = vand.u32 %v2963, 4294901760
        %2965 = vmatmul.mubr.f32.gmra.mrb[0].mxu0 %v2964
        %v2966 = vpop.f32.mrb[0].mxu0
        %v2967 = vadd.f32 0.0, %v2966
        %v2968 = vpop.f32.mrb[0].mxu0
        %2969 = vdwg.mxu0
        %2970 = vmatprep.subr.mxu0 0.0
        %v2971 = vand.u32 %v2379, 4294901760
        %v2972 = vsub.f32 %v2379, %v2971
        %v2973 = vand.u32 %v2972, 4294901760
        %v2974 = vsub.f32 %v2972, %v2973
        %v2975 = vand.u32 %v2974, 4294901760
        %2976 = vmatpush1.msra.mxu0 %v2975
        %2977 = vmatprep.subr.mxu0 0.0
        %v2978 = vand.u32 %v2380, 4294901760
        %v2979 = vsub.f32 %v2380, %v2978
        %v2980 = vand.u32 %v2979, 4294901760
        %v2981 = vsub.f32 %v2979, %v2980
        %v2982 = vand.u32 %v2981, 4294901760
        %2983 = vmatpush1.msra.mxu0 %v2982
        %2984 = vmatprep.subr.mxu0 0.0
        %2985 = vmatpush1.msra.mxu0 0.0
        %2986 = vmatprep.subr.mxu0 0.0
        %2987 = vmatpush1.msra.mxu0 0.0
        %2988 = vmatprep.subr.mxu0 0.0
        %2989 = vmatpush1.msra.mxu0 0.0
        %2990 = vmatprep.subr.mxu0 0.0
        %2991 = vmatpush1.msra.mxu0 0.0
        %2992 = vmatprep.subr.mxu0 0.0
        %2993 = vmatpush1.msra.mxu0 0.0
        %2994 = vmatprep.subr.mxu0 0.0
        %2995 = vmatpush1.msra.mxu0 0.0
        %2996 = vmatprep.subr.mxu0 0.0
        %2997 = vmatpush1.msra.mxu0 0.0
        %2998 = vmatprep.subr.mxu0 0.0
        %2999 = vmatpush1.msra.mxu0 0.0
        %3000 = vmatprep.subr.mxu0 0.0
        %3001 = vmatpush1.msra.mxu0 0.0
        %3002 = vmatprep.subr.mxu0 0.0
        %3003 = vmatpush1.msra.mxu0 0.0
        %3004 = vmatprep.subr.mxu0 0.0
        %3005 = vmatpush1.msra.mxu0 0.0
        %3006 = vmatprep.subr.mxu0 0.0
        %3007 = vmatpush1.msra.mxu0 0.0
        %3008 = vmatprep.subr.mxu0 0.0
        %3009 = vmatpush1.msra.mxu0 0.0
        %3010 = vmatprep.subr.mxu0 0.0
        %3011 = vmatpush1.msra.mxu0 0.0
        %3012 = vmatprep.subr.mxu0 0.0
        %3013 = vmatpush1.msra.mxu0 0.0
        %3014 = vmatprep.subr.mxu0 0.0
        %3015 = vmatpush1.msra.mxu0 0.0
        %3016 = vmatprep.subr.mxu0 0.0
        %3017 = vmatpush1.msra.mxu0 0.0
        %3018 = vmatprep.subr.mxu0 0.0
        %3019 = vmatpush1.msra.mxu0 0.0
        %3020 = vmatprep.subr.mxu0 0.0
        %3021 = vmatpush1.msra.mxu0 0.0
        %3022 = vmatprep.subr.mxu0 0.0
        %3023 = vmatpush1.msra.mxu0 0.0
        %3024 = vmatprep.subr.mxu0 0.0
        %3025 = vmatpush1.msra.mxu0 0.0
        %3026 = vmatprep.subr.mxu0 0.0
        %3027 = vmatpush1.msra.mxu0 0.0
        %3028 = vmatprep.subr.mxu0 0.0
        %3029 = vmatpush1.msra.mxu0 0.0
        %3030 = vmatprep.subr.mxu0 0.0
        %3031 = vmatpush1.msra.mxu0 0.0
        %3032 = vmatprep.subr.mxu0 0.0
        %3033 = vmatpush1.msra.mxu0 0.0
        %3034 = vmatprep.subr.mxu0 0.0
        %3035 = vmatpush1.msra.mxu0 0.0
        %3036 = vmatprep.subr.mxu0 0.0
        %3037 = vmatpush1.msra.mxu0 0.0
        %3038 = vmatprep.subr.mxu0 0.0
        %3039 = vmatpush1.msra.mxu0 0.0
        %3040 = vmatprep.subr.mxu0 0.0
        %3041 = vmatpush1.msra.mxu0 0.0
        %3042 = vmatprep.subr.mxu0 0.0
        %3043 = vmatpush1.msra.mxu0 0.0
        %3044 = vmatprep.mubr.f32.mxu0 0.0
        %v3045 = vand.u32 %v858, 4294901760
        %3046 = vmatmul.mubr.f32.gmra.mrb[0].mxu0 %v3045
        %v3047 = vpop.f32.mrb[0].mxu0
        %v3048 = vadd.f32 %v2957, %v3047
        %v3049 = vpop.f32.mrb[0].mxu0
        %3050 = vmatprep.mubr.f32.mxu0 0.0
        %v3051 = vand.u32 %v861, 4294901760
        %3052 = vmatmul.mubr.f32.gmra.mrb[0].mxu0 %v3051
        %v3053 = vpop.f32.mrb[0].mxu0
        %v3054 = vadd.f32 %v2967, %v3053
        %v3055 = vpop.f32.mrb[0].mxu0
        %3056 = vdwg.mxu0
        %3057 = vmatprep.subr.mxu0 0.0
        %v3058 = vand.u32 %v2379, 4294901760
        %v3059 = vsub.f32 %v2379, %v3058
        %3060 = vmatpush1.msra.mxu0 %v3059
        %3061 = vmatprep.subr.mxu0 0.0
        %v3062 = vand.u32 %v2380, 4294901760
        %v3063 = vsub.f32 %v2380, %v3062
        %3064 = vmatpush1.msra.mxu0 %v3063
        %3065 = vmatprep.subr.mxu0 0.0
        %3066 = vmatpush1.msra.mxu0 0.0
        %3067 = vmatprep.subr.mxu0 0.0
        %3068 = vmatpush1.msra.mxu0 0.0
        %3069 = vmatprep.subr.mxu0 0.0
        %3070 = vmatpush1.msra.mxu0 0.0
        %3071 = vmatprep.subr.mxu0 0.0
        %3072 = vmatpush1.msra.mxu0 0.0
        %3073 = vmatprep.subr.mxu0 0.0
        %3074 = vmatpush1.msra.mxu0 0.0
        %3075 = vmatprep.subr.mxu0 0.0
        %3076 = vmatpush1.msra.mxu0 0.0
        %3077 = vmatprep.subr.mxu0 0.0
        %3078 = vmatpush1.msra.mxu0 0.0
        %3079 = vmatprep.subr.mxu0 0.0
        %3080 = vmatpush1.msra.mxu0 0.0
        %3081 = vmatprep.subr.mxu0 0.0
        %3082 = vmatpush1.msra.mxu0 0.0
        %3083 = vmatprep.subr.mxu0 0.0
        %3084 = vmatpush1.msra.mxu0 0.0
        %3085 = vmatprep.subr.mxu0 0.0
        %3086 = vmatpush1.msra.mxu0 0.0
        %3087 = vmatprep.subr.mxu0 0.0
        %3088 = vmatpush1.msra.mxu0 0.0
        %3089 = vmatprep.subr.mxu0 0.0
        %3090 = vmatpush1.msra.mxu0 0.0
        %3091 = vmatprep.subr.mxu0 0.0
        %3092 = vmatpush1.msra.mxu0 0.0
        %3093 = vmatprep.subr.mxu0 0.0
        %3094 = vmatpush1.msra.mxu0 0.0
        %3095 = vmatprep.subr.mxu0 0.0
        %3096 = vmatpush1.msra.mxu0 0.0
        %3097 = vmatprep.subr.mxu0 0.0
        %3098 = vmatpush1.msra.mxu0 0.0
        %3099 = vmatprep.subr.mxu0 0.0
        %3100 = vmatpush1.msra.mxu0 0.0
        %3101 = vmatprep.subr.mxu0 0.0
        %3102 = vmatpush1.msra.mxu0 0.0
        %3103 = vmatprep.subr.mxu0 0.0
        %3104 = vmatpush1.msra.mxu0 0.0
        %3105 = vmatprep.subr.mxu0 0.0
        %3106 = vmatpush1.msra.mxu0 0.0
        %3107 = vmatprep.subr.mxu0 0.0
        %3108 = vmatpush1.msra.mxu0 0.0
        %3109 = vmatprep.subr.mxu0 0.0
        %3110 = vmatpush1.msra.mxu0 0.0
        %3111 = vmatprep.subr.mxu0 0.0
        %3112 = vmatpush1.msra.mxu0 0.0
        %3113 = vmatprep.subr.mxu0 0.0
        %3114 = vmatpush1.msra.mxu0 0.0
        %3115 = vmatprep.subr.mxu0 0.0
        %3116 = vmatpush1.msra.mxu0 0.0
        %3117 = vmatprep.subr.mxu0 0.0
        %3118 = vmatpush1.msra.mxu0 0.0
        %3119 = vmatprep.subr.mxu0 0.0
        %3120 = vmatpush1.msra.mxu0 0.0
        %3121 = vmatprep.subr.mxu0 0.0
        %3122 = vmatpush1.msra.mxu0 0.0
        %3123 = vmatprep.subr.mxu0 0.0
        %3124 = vmatpush1.msra.mxu0 0.0
        %3125 = vmatprep.mubr.f32.mxu0 0.0
        %v3126 = vand.u32 %v858, 4294901760
        %v3127 = vsub.f32 %v858, %v3126
        %3128 = vmatmul.mubr.f32.gmra.mrb[0].mxu0 %v3127
        %v3129 = vpop.f32.mrb[0].mxu0
        %v3130 = vadd.f32 %v3048, %v3129
        %v3131 = vpop.f32.mrb[0].mxu0
        %3132 = vmatprep.mubr.f32.mxu0 0.0
        %v3133 = vand.u32 %v861, 4294901760
        %v3134 = vsub.f32 %v861, %v3133
        %3135 = vmatmul.mubr.f32.gmra.mrb[0].mxu0 %v3134
        %v3136 = vpop.f32.mrb[0].mxu0
        %v3137 = vadd.f32 %v3054, %v3136
        %v3138 = vpop.f32.mrb[0].mxu0
        %3139 = vdwg.mxu0
        %3140 = vmatprep.subr.mxu0 0.0
        %v3141 = vand.u32 %v2379, 4294901760
        %3142 = vmatpush1.msra.mxu0 %v3141
        %3143 = vmatprep.subr.mxu0 0.0
        %v3144 = vand.u32 %v2380, 4294901760
        %3145 = vmatpush1.msra.mxu0 %v3144
        %3146 = vmatprep.subr.mxu0 0.0
        %3147 = vmatpush1.msra.mxu0 0.0
        %3148 = vmatprep.subr.mxu0 0.0
        %3149 = vmatpush1.msra.mxu0 0.0
        %3150 = vmatprep.subr.mxu0 0.0
        %3151 = vmatpush1.msra.mxu0 0.0
        %3152 = vmatprep.subr.mxu0 0.0
        %3153 = vmatpush1.msra.mxu0 0.0
        %3154 = vmatprep.subr.mxu0 0.0
        %3155 = vmatpush1.msra.mxu0 0.0
        %3156 = vmatprep.subr.mxu0 0.0
        %3157 = vmatpush1.msra.mxu0 0.0
        %3158 = vmatprep.subr.mxu0 0.0
        %3159 = vmatpush1.msra.mxu0 0.0
        %3160 = vmatprep.subr.mxu0 0.0
        %3161 = vmatpush1.msra.mxu0 0.0
        %3162 = vmatprep.subr.mxu0 0.0
        %3163 = vmatpush1.msra.mxu0 0.0
        %3164 = vmatprep.subr.mxu0 0.0
        %3165 = vmatpush1.msra.mxu0 0.0
        %3166 = vmatprep.subr.mxu0 0.0
        %3167 = vmatpush1.msra.mxu0 0.0
        %3168 = vmatprep.subr.mxu0 0.0
        %3169 = vmatpush1.msra.mxu0 0.0
        %3170 = vmatprep.subr.mxu0 0.0
        %3171 = vmatpush1.msra.mxu0 0.0
        %3172 = vmatprep.subr.mxu0 0.0
        %3173 = vmatpush1.msra.mxu0 0.0
        %3174 = vmatprep.subr.mxu0 0.0
        %3175 = vmatpush1.msra.mxu0 0.0
        %3176 = vmatprep.subr.mxu0 0.0
        %3177 = vmatpush1.msra.mxu0 0.0
        %3178 = vmatprep.subr.mxu0 0.0
        %3179 = vmatpush1.msra.mxu0 0.0
        %3180 = vmatprep.subr.mxu0 0.0
        %3181 = vmatpush1.msra.mxu0 0.0
        %3182 = vmatprep.subr.mxu0 0.0
        %3183 = vmatpush1.msra.mxu0 0.0
        %3184 = vmatprep.subr.mxu0 0.0
        %3185 = vmatpush1.msra.mxu0 0.0
        %3186 = vmatprep.subr.mxu0 0.0
        %3187 = vmatpush1.msra.mxu0 0.0
        %3188 = vmatprep.subr.mxu0 0.0
        %3189 = vmatpush1.msra.mxu0 0.0
        %3190 = vmatprep.subr.mxu0 0.0
        %3191 = vmatpush1.msra.mxu0 0.0
        %3192 = vmatprep.subr.mxu0 0.0
        %3193 = vmatpush1.msra.mxu0 0.0
        %3194 = vmatprep.subr.mxu0 0.0
        %3195 = vmatpush1.msra.mxu0 0.0
        %3196 = vmatprep.subr.mxu0 0.0
        %3197 = vmatpush1.msra.mxu0 0.0
        %3198 = vmatprep.subr.mxu0 0.0
        %3199 = vmatpush1.msra.mxu0 0.0
        %3200 = vmatprep.subr.mxu0 0.0
        %3201 = vmatpush1.msra.mxu0 0.0
        %3202 = vmatprep.subr.mxu0 0.0
        %3203 = vmatpush1.msra.mxu0 0.0
        %3204 = vmatprep.subr.mxu0 0.0
        %3205 = vmatpush1.msra.mxu0 0.0
        %3206 = vmatprep.mubr.f32.mxu0 0.0
        %v3207 = vand.u32 %v858, 4294901760
        %v3208 = vsub.f32 %v858, %v3207
        %v3209 = vand.u32 %v3208, 4294901760
        %3210 = vmatmul.mubr.f32.gmra.mrb[0].mxu0 %v3209
        %v3211 = vpop.f32.mrb[0].mxu0
        %v3212 = vadd.f32 %v3130, %v3211
        %v3213 = vpop.f32.mrb[0].mxu0
        %3214 = vmatprep.mubr.f32.mxu0 0.0
        %v3215 = vand.u32 %v861, 4294901760
        %v3216 = vsub.f32 %v861, %v3215
        %v3217 = vand.u32 %v3216, 4294901760
        %3218 = vmatmul.mubr.f32.gmra.mrb[0].mxu0 %v3217
        %v3219 = vpop.f32.mrb[0].mxu0
        %v3220 = vadd.f32 %v3137, %v3219
        %v3221 = vpop.f32.mrb[0].mxu0
        %3222 = vdwg.mxu0
        %3223 = vmatprep.subr.mxu0 0.0
        %v3224 = vand.u32 %v2379, 4294901760
        %v3225 = vsub.f32 %v2379, %v3224
        %v3226 = vand.u32 %v3225, 4294901760
        %3227 = vmatpush1.msra.mxu0 %v3226
        %3228 = vmatprep.subr.mxu0 0.0
        %v3229 = vand.u32 %v2380, 4294901760
        %v3230 = vsub.f32 %v2380, %v3229
        %v3231 = vand.u32 %v3230, 4294901760
        %3232 = vmatpush1.msra.mxu0 %v3231
        %3233 = vmatprep.subr.mxu0 0.0
        %3234 = vmatpush1.msra.mxu0 0.0
        %3235 = vmatprep.subr.mxu0 0.0
        %3236 = vmatpush1.msra.mxu0 0.0
        %3237 = vmatprep.subr.mxu0 0.0
        %3238 = vmatpush1.msra.mxu0 0.0
        %3239 = vmatprep.subr.mxu0 0.0
        %3240 = vmatpush1.msra.mxu0 0.0
        %3241 = vmatprep.subr.mxu0 0.0
        %3242 = vmatpush1.msra.mxu0 0.0
        %3243 = vmatprep.subr.mxu0 0.0
        %3244 = vmatpush1.msra.mxu0 0.0
        %3245 = vmatprep.subr.mxu0 0.0
        %3246 = vmatpush1.msra.mxu0 0.0
        %3247 = vmatprep.subr.mxu0 0.0
        %3248 = vmatpush1.msra.mxu0 0.0
        %3249 = vmatprep.subr.mxu0 0.0
        %3250 = vmatpush1.msra.mxu0 0.0
        %3251 = vmatprep.subr.mxu0 0.0
        %3252 = vmatpush1.msra.mxu0 0.0
        %3253 = vmatprep.subr.mxu0 0.0
        %3254 = vmatpush1.msra.mxu0 0.0
        %3255 = vmatprep.subr.mxu0 0.0
        %3256 = vmatpush1.msra.mxu0 0.0
        %3257 = vmatprep.subr.mxu0 0.0
        %3258 = vmatpush1.msra.mxu0 0.0
        %3259 = vmatprep.subr.mxu0 0.0
        %3260 = vmatpush1.msra.mxu0 0.0
        %3261 = vmatprep.subr.mxu0 0.0
        %3262 = vmatpush1.msra.mxu0 0.0
        %3263 = vmatprep.subr.mxu0 0.0
        %3264 = vmatpush1.msra.mxu0 0.0
        %3265 = vmatprep.subr.mxu0 0.0
        %3266 = vmatpush1.msra.mxu0 0.0
        %3267 = vmatprep.subr.mxu0 0.0
        %3268 = vmatpush1.msra.mxu0 0.0
        %3269 = vmatprep.subr.mxu0 0.0
        %3270 = vmatpush1.msra.mxu0 0.0
        %3271 = vmatprep.subr.mxu0 0.0
        %3272 = vmatpush1.msra.mxu0 0.0
        %3273 = vmatprep.subr.mxu0 0.0
        %3274 = vmatpush1.msra.mxu0 0.0
        %3275 = vmatprep.subr.mxu0 0.0
        %3276 = vmatpush1.msra.mxu0 0.0
        %3277 = vmatprep.subr.mxu0 0.0
        %3278 = vmatpush1.msra.mxu0 0.0
        %3279 = vmatprep.subr.mxu0 0.0
        %3280 = vmatpush1.msra.mxu0 0.0
        %3281 = vmatprep.subr.mxu0 0.0
        %3282 = vmatpush1.msra.mxu0 0.0
        %3283 = vmatprep.subr.mxu0 0.0
        %3284 = vmatpush1.msra.mxu0 0.0
        %3285 = vmatprep.subr.mxu0 0.0
        %3286 = vmatpush1.msra.mxu0 0.0
        %3287 = vmatprep.subr.mxu0 0.0
        %3288 = vmatpush1.msra.mxu0 0.0
        %3289 = vmatprep.subr.mxu0 0.0
        %3290 = vmatpush1.msra.mxu0 0.0
        %3291 = vmatprep.subr.mxu0 0.0
        %3292 = vmatpush1.msra.mxu0 0.0
        %3293 = vmatprep.mubr.f32.mxu0 0.0
        %v3294 = vand.u32 %v858, 4294901760
        %3295 = vmatmul.mubr.f32.gmra.mrb[0].mxu0 %v3294
        %v3296 = vpop.f32.mrb[0].mxu0
        %v3297 = vadd.f32 %v3212, %v3296
        %v3298 = vpop.f32.mrb[0].mxu0
        %3299 = vmatprep.mubr.f32.mxu0 0.0
        %v3300 = vand.u32 %v861, 4294901760
        %3301 = vmatmul.mubr.f32.gmra.mrb[0].mxu0 %v3300
        %v3302 = vpop.f32.mrb[0].mxu0
        %v3303 = vadd.f32 %v3220, %v3302
        %v3304 = vpop.f32.mrb[0].mxu0
        %3305 = vdwg.mxu0
        %3306 = vmatprep.subr.mxu0 0.0
        %v3307 = vand.u32 %v2379, 4294901760
        %3308 = vmatpush1.msra.mxu0 %v3307
        %3309 = vmatprep.subr.mxu0 0.0
        %v3310 = vand.u32 %v2380, 4294901760
        %3311 = vmatpush1.msra.mxu0 %v3310
        %3312 = vmatprep.subr.mxu0 0.0
        %3313 = vmatpush1.msra.mxu0 0.0
        %3314 = vmatprep.subr.mxu0 0.0
        %3315 = vmatpush1.msra.mxu0 0.0
        %3316 = vmatprep.subr.mxu0 0.0
        %3317 = vmatpush1.msra.mxu0 0.0
        %3318 = vmatprep.subr.mxu0 0.0
        %3319 = vmatpush1.msra.mxu0 0.0
        %3320 = vmatprep.subr.mxu0 0.0
        %3321 = vmatpush1.msra.mxu0 0.0
        %3322 = vmatprep.subr.mxu0 0.0
        %3323 = vmatpush1.msra.mxu0 0.0
        %3324 = vmatprep.subr.mxu0 0.0
        %3325 = vmatpush1.msra.mxu0 0.0
        %3326 = vmatprep.subr.mxu0 0.0
        %3327 = vmatpush1.msra.mxu0 0.0
        %3328 = vmatprep.subr.mxu0 0.0
        %3329 = vmatpush1.msra.mxu0 0.0
        %3330 = vmatprep.subr.mxu0 0.0
        %3331 = vmatpush1.msra.mxu0 0.0
        %3332 = vmatprep.subr.mxu0 0.0
        %3333 = vmatpush1.msra.mxu0 0.0
        %3334 = vmatprep.subr.mxu0 0.0
        %3335 = vmatpush1.msra.mxu0 0.0
        %3336 = vmatprep.subr.mxu0 0.0
        %3337 = vmatpush1.msra.mxu0 0.0
        %3338 = vmatprep.subr.mxu0 0.0
        %3339 = vmatpush1.msra.mxu0 0.0
        %3340 = vmatprep.subr.mxu0 0.0
        %3341 = vmatpush1.msra.mxu0 0.0
        %3342 = vmatprep.subr.mxu0 0.0
        %3343 = vmatpush1.msra.mxu0 0.0
        %3344 = vmatprep.subr.mxu0 0.0
        %3345 = vmatpush1.msra.mxu0 0.0
        %3346 = vmatprep.subr.mxu0 0.0
        %3347 = vmatpush1.msra.mxu0 0.0
        %3348 = vmatprep.subr.mxu0 0.0
        %3349 = vmatpush1.msra.mxu0 0.0
        %3350 = vmatprep.subr.mxu0 0.0
        %3351 = vmatpush1.msra.mxu0 0.0
        %3352 = vmatprep.subr.mxu0 0.0
        %3353 = vmatpush1.msra.mxu0 0.0
        %3354 = vmatprep.subr.mxu0 0.0
        %3355 = vmatpush1.msra.mxu0 0.0
        %3356 = vmatprep.subr.mxu0 0.0
        %3357 = vmatpush1.msra.mxu0 0.0
        %3358 = vmatprep.subr.mxu0 0.0
        %3359 = vmatpush1.msra.mxu0 0.0
        %3360 = vmatprep.subr.mxu0 0.0
        %3361 = vmatpush1.msra.mxu0 0.0
        %3362 = vmatprep.subr.mxu0 0.0
        %3363 = vmatpush1.msra.mxu0 0.0
        %3364 = vmatprep.subr.mxu0 0.0
        %3365 = vmatpush1.msra.mxu0 0.0
        %3366 = vmatprep.subr.mxu0 0.0
        %3367 = vmatpush1.msra.mxu0 0.0
        %3368 = vmatprep.subr.mxu0 0.0
        %3369 = vmatpush1.msra.mxu0 0.0
        %3370 = vmatprep.subr.mxu0 0.0
        %3371 = vmatpush1.msra.mxu0 0.0
        %3372 = vmatprep.mubr.f32.mxu0 0.0
        %v3373 = vand.u32 %v858, 4294901760
        %3374 = vmatmul.mubr.f32.gmra.mrb[0].mxu0 %v3373
        %v3375 = vpop.f32.mrb[0].mxu0
        %v3376 = vadd.f32 %v3297, %v3375
        %v3377 = vpop.f32.mrb[0].mxu0
        %3378 = vmatprep.mubr.f32.mxu0 0.0
        %v3379 = vand.u32 %v861, 4294901760
        %3380 = vmatmul.mubr.f32.gmra.mrb[0].mxu0 %v3379
        %v3381 = vpop.f32.mrb[0].mxu0
        %v3382 = vadd.f32 %v3303, %v3381
        %v3383 = vpop.f32.mrb[0].mxu0
        %3384 = vdwg.mxu0
        %v3385 = vsub.f32 %v2874, %v3376
        %v3386 = vsub.f32 %v2880, %v3382
        %v3387 = vmul.f32 %v3385, 0.0625
        %v3388 = vmul.f32 %v3386, 0.0625
        %3389 = vst [vmem:[%s327] sm:$0xff] %v3387
        %3390 = vst [vmem:[%s327 + $0x8] sm:$0xff] %v3388
        %p3391 = scmp.eq.s32.totalorder %s27, 0
        // Predicated region
        $region53: #{tpu_custom_call.1} parent=35 // pred_check
          %p3392 = pneg %p3391
        $region54: #{tpu_custom_call.1} parent=35 // pred_check_branch
          %3394 = sbr.rel (%p3392) target = $region56
        $region55: #{tpu_custom_call.1} parent=35 // pred_region
          %vm3395 = vcmask 7168
          %3396 = vst.msk [vmem:[%s339] sm:$0xff] %vm3395, 0.0
          %3397 = vst.msk [vmem:[%s339 + $0x8] sm:$0xff] %vm3395, 0.0
        $region56: #{tpu_custom_call.1} parent=35 // pred_fallthru
          _
        %v3398 = vld [vmem:[%s339] sm:$0xff]
        %v3399 = vld [vmem:[%s339 + $0x8] sm:$0xff]
        %3400 = vadd.xlane.f32.xlu0 %v3387
        %v3401 = vpop.xlane.xlu0 %3400
        %3402 = vadd.xlane.f32.xlu0 %v3388
        %v3403 = vpop.xlane.xlu0 %3402
        %v3404 = vadd.f32 %v3398, %v3401
        %v3405 = vadd.f32 %v3399, %v3403
        %vm3406 = vcmask 7168
        %3407 = vst.msk [vmem:[%s339] sm:$0xff] %vm3406, %v3404
        %3408 = vst.msk [vmem:[%s339 + $0x8] sm:$0xff] %vm3406, %v3405
        %s3409 = sand.u32 %s142, 1
        %s3410 = scalar_lea.sflag [#allocation4], %s3409
        %s3411 = sand.u32 %s142, 1
        %s3412 = smul.addr %s3411, 16
        %s3413 = scalar_lea.vmem [#allocation9], %s3412
        %p3414 = scmp.lt.s32.totalorder %s26, 1
        %s3415 = scalar_select %p3414, %s26, 1
        %s3416 = smul.addr %s3415, 2
        %s3417 = smul.addr %s3416, 8
        %s3418 = scalar_lea.vmem %s5, %s3417
        // Predicated region
        $region57: #{tpu_custom_call.1} parent=35 // pred_check
          %p3419 = pneg %p152
        $region58: #{tpu_custom_call.1} parent=35 // pred_check_branch
          %3421 = sbr.rel (%p3419) target = $region60
        $region59: #{tpu_custom_call.1} parent=35 // pred_region
          %s3423 = ssub.s32 256, 256
          %3424 = vsyncadd %s3410, %s3423
          %s3425 = smul.addr %s26, 2
          %s3426 = sadd.s32 %s27, %s3425
          %s3427 = smul.addr %s3426, 128
          %s3428 = scalar_lea.hbm %s4, %s3427
          %s3429 = sshll.u32 %s3413, 4
          %s3430 = int_to_ptr.vmem [resolvable:$true] %s3429
          %3435 = dma.vmem_to_hbm [thread:$0]  %s3430, 256, %s3428, %s3410, 128, 128, 8
        $region60: #{tpu_custom_call.1} parent=35 // pred_fallthru
          _
        // Predicated region
        $region61: #{tpu_custom_call.1} parent=35 // pred_check
          %p3436 = pneg %p178
        $region62: #{tpu_custom_call.1} parent=35 // pred_check_branch
          %3438 = sbr.rel (%p3436) target = $region64
        $region63: #{tpu_custom_call.1} parent=35 // pred_region
          _
        $region64: #{tpu_custom_call.1} parent=35 // pred_fallthru
          _
      $region36: #{tpu_custom_call.1} parent=5 // pred_fallthru
        _
      %p3439 = scmp.le.s32.totalorder 2, %s17
      // Predicated region
      $region65: #{tpu_custom_call.1} parent=5 // pred_check
        %p3440 = pneg %p3439
      $region66: #{tpu_custom_call.1} parent=5 // pred_check_branch
        %3442 = sbr.rel (%p3440) target = $region68
      $region67: #{tpu_custom_call.1} parent=5 // pred_region
        %s3443 = ssub.s32 %s17, 2
        // Predicated region
        $region69: #{tpu_custom_call.1} parent=67 // pred_check
          %p3444 = pneg %p158
        $region70: #{tpu_custom_call.1} parent=67 // pred_check_branch
          %3446 = sbr.rel (%p3444) target = $region72
        $region71: #{tpu_custom_call.1} parent=67 // pred_region
          %s3447 = sand.u32 %s143, 1
          %s3448 = scalar_lea.sflag [#allocation4], %s3447
          %s3449 = sand.u32 %s143, 1
          %s3450 = smul.addr %s3449, 16
          %s3451 = scalar_lea.vmem [#allocation9], %s3450
          %3452 = dma.done %s3448, 256
        $region72: #{tpu_custom_call.1} parent=67 // pred_fallthru
          _
        // Predicated region
        $region73: #{tpu_custom_call.1} parent=67 // pred_check
          %p3453 = pneg %p184
        $region74: #{tpu_custom_call.1} parent=67 // pred_check_branch
          %3455 = sbr.rel (%p3453) target = $region76
        $region75: #{tpu_custom_call.1} parent=67 // pred_region
          %p3456 = scmp.lt.s32.totalorder %s28, 1
          %s3457 = scalar_select %p3456, %s28, 1
          %s3458 = smul.addr %s3457, 2
          %s3459 = smul.addr %s3458, 8
          %s3460 = scalar_lea.vmem %s5, %s3459
        $region76: #{tpu_custom_call.1} parent=67 // pred_fallthru
          _
      $region68: #{tpu_custom_call.1} parent=5 // pred_fallthru
        _
    $region6: #{tpu_custom_call.1} parent=1 // loop_footer
      %s21 = sadd.s32 1, %s17
    $region7: #{tpu_custom_call.1} parent=1 // loop_footer_branch
      %16 = sbr.rel target = $region3
    $region8: #{tpu_custom_call.1} parent=1 // loop_exit
      _
    %3461 = vsyncpa [#allocation3], 1
    %s3462 = scalar_lea.sflag [#allocation3], 1
    %3463 = vsyncpa %s3462, 1
    %3464 = vsyncpa [#allocation6], 1
    %3465 = vsyncpa [#allocation4], 1
    %s3466 = scalar_lea.sflag [#allocation4], 1
    %3467 = vsyncpa %s3466, 1

</llo_original>
